<compile_context>
chip_gen: v7x
topology: tpu7x:2x2x1
jax: 0.10.0
libtpu: 0.0.40
codegen_flags: <defaults>
</compile_context>

<pallas_src>
import functools
import math

import jax
import jax.numpy as jnp
from jax.experimental import pallas as pl
from jax.experimental.pallas import tpu as pltpu


def narx_kernel(act_ref, w_ref, o_ref, *, N, in_ch, emb_dim, H, out_ch):
    # Whole-slab loads: everything below is a static slice of an already
    # vreg/VMEM-resident value -- no per-use ref reloads inside the unroll.
    A = act_ref[...]                        # (N + in_ch, in_ch + emb_dim)
    Wm = w_ref[...]                         # (n_rows, 4H)

    x = A[0:N, 0:in_ch]                     # (N, in_ch)
    emb = A[0:N, in_ch:in_ch + emb_dim]     # (N, emb_dim)
    corr = A[N:N + in_ch, 0:in_ch]          # (in_ch, in_ch)

    r = 0
    w_lin = Wm[r:r + in_ch, 0:H];     r += in_ch      # (in_ch, H)
    w_tl = Wm[r:r + emb_dim, 0:H];    r += emb_dim    # (emb_dim, H)
    w_ih_x = Wm[r:r + H, :];          r += H          # (H, 4H)   input-gate, x half
    w_ih_t = Wm[r:r + H, :];          r += H          # (H, 4H)   input-gate, t half
    w_hh = Wm[r:r + H, :];            r += H          # (H, 4H)   hoisted once
    w_out = Wm[r:r + H, 0:out_ch];    r += H          # (H, out_ch)
    b_lin = Wm[r:r + 1, 0:H];         r += 1
    b_tl = Wm[r:r + 1, 0:H];          r += 1
    b_lstm = Wm[r:r + 1, :];          r += 1          # b_ih + b_hh, pre-folded
    b_out = Wm[r:r + 1, 0:out_ch]

    # ---- x path: relu(Linear(x @ corr_x)) -----------------------------------
    xm = jnp.dot(x, corr, preferred_element_type=jnp.float32)
    h1 = jnp.maximum(
        jnp.dot(xm, w_lin, preferred_element_type=jnp.float32) + b_lin, 0.0)

    # ---- time path: Linear(embedding rows gathered in the wrapper) ----------
    ht = jnp.dot(emb, w_tl, preferred_element_type=jnp.float32) + b_tl

    # ---- input-side gate projection, hoisted out of the recurrence ----------
    # gates_x[n] = concat(h1, ht)[n] @ W_ih^T + (b_ih + b_hh), computed without
    # the lane-axis concat by splitting W_ih^T into its top-H / bottom-H rows.
    gates_x = (jnp.dot(h1, w_ih_x, preferred_element_type=jnp.float32)
               + jnp.dot(ht, w_ih_t, preferred_element_type=jnp.float32)
               + b_lstm)                                           # (N, 4H)

    # ---- unbatched single-layer LSTM, fully unrolled, vreg-resident ---------
    h = jnp.zeros((1, H), jnp.float32)
    c = jnp.zeros((1, H), jnp.float32)
    hs = []
    for ts in range(N):                                            # N is static
        gates = gates_x[ts:ts + 1, :] + jnp.dot(
            h, w_hh, preferred_element_type=jnp.float32,
            precision=jax.lax.Precision.HIGHEST)                   # (1, 4H)
        sig = jax.nn.sigmoid(gates)          # one EUP pass over all 4H lanes
        i_g = sig[:, 0:H]
        f_g = sig[:, H:2 * H]
        o_g = sig[:, 3 * H:4 * H]
        g_g = jnp.tanh(gates[:, 2 * H:3 * H])                      # second EUP pass
        c = f_g * c + i_g * g_g
        h = o_g * jnp.tanh(c)
        hs.append(h)
    # NOTE: gate slices sit at lane offsets H/2H/3H (not 128-aligned); at H=12
    # the few XLU realignments are cheaper than padding each gate to 128 lanes.

    h_all = jnp.concatenate(hs, axis=0)                            # (N, H)

    # ---- output projection (one batched matmul, no scratch round-trip) ------
    o_ref[...] = (jnp.dot(h_all, w_out, preferred_element_type=jnp.float32)
                  + b_out)


def narx_forward(x, corr_x, t, p):
    """x: (N, in_ch) f32, corr_x: (in_ch, in_ch) f32, t: (N, 1) int32."""
    N, in_ch = x.shape
    H = p["w_lin"].shape[0]
    out_ch = p["w_out"].shape[0]
    emb_dim = p["embed"].shape[1]
    Wact = in_ch + emb_dim              # activation-slab width
    Wpar = 4 * H                        # parameter-slab width

    # Embedding gather in the wrapper: O(N) row gather instead of an
    # (N,366)x(366,48) one-hot matmul inside the kernel.  Clamp so an
    # out-of-range t cannot become an unchecked read.
    idx = jnp.clip(t[:, 0].astype(jnp.int32), 0, p["embed"].shape[0] - 1)
    emb = p["embed"][idx]                                          # (N, emb_dim)

    # --- activation slab: [x | emb] on top, corr_x padded below -> 1 DMA -----
    act = jnp.concatenate([
        jnp.concatenate([x, emb], axis=1),                         # (N, Wact)
        jnp.pad(corr_x, ((0, 0), (0, Wact - in_ch))),              # (in_ch, Wact)
    ], axis=0)

    # --- parameter slab: every weight/bias padded to width 4H -> 1 DMA -------
    def pad_cols(a):
        return jnp.pad(a, ((0, 0), (0, Wpar - a.shape[1])))

    wih_T = p["w_ih"].T                                            # (2H, 4H)
    wslab = jnp.concatenate([
        pad_cols(p["w_lin"].T),                                    # (in_ch, 4H)
        pad_cols(p["w_tlin"].T),                                   # (emb_dim, 4H)
        wih_T[:H, :],                                              # W_ih, x half
        wih_T[H:, :],                                              # W_ih, t half
        p["w_hh"].T,                                               # (H, 4H)
        pad_cols(p["w_out"].T),                                    # (H, 4H)
        pad_cols(p["b_lin"].reshape(1, -1)),
        pad_cols(p["b_tlin"].reshape(1, -1)),
        (p["b_ih"] + p["b_hh"]).reshape(1, -1),                    # folded LSTM bias
        pad_cols(p["b_out"].reshape(1, -1)),
    ], axis=0)

    kernel = functools.partial(narx_kernel, N=N, in_ch=in_ch, emb_dim=emb_dim,
                               H=H, out_ch=out_ch)
    # NOTE: no grid -- at this size everything is a single VMEM-resident tile.
    # For long series the feed-forward parts would be tiled over an N grid
    # (tile sizes re-derived per chip: 64 MiB VMEM on v7x, 16 MiB default
    # scoped on v5e; N axis marked "parallel" for v7x megacore).
    return pl.pallas_call(
        kernel,
        out_shape=jax.ShapeDtypeStruct((N, out_ch), jnp.float32),
        in_specs=[pl.BlockSpec(memory_space=pltpu.MemorySpace.VMEM),
                  pl.BlockSpec(memory_space=pltpu.MemorySpace.VMEM)],
        out_specs=pl.BlockSpec(memory_space=pltpu.MemorySpace.VMEM),
    )(act, wslab)


def narx_ref(x, corr_x, t, p):
    """Plain-JAX reference mirroring the (fixed) PyTorch forward."""
    H = p["w_lin"].shape[0]
    h1 = jnp.maximum(x @ corr_x @ p["w_lin"].T + p["b_lin"], 0.0)
    emb = p["embed"][t[:, 0]]
    ht = emb @ p["w_tlin"].T + p["b_tlin"]
    y = jnp.concatenate([h1, ht], axis=1)

    def step(carry, x_t):
        h, c = carry
        gates = x_t @ p["w_ih"].T + h @ p["w_hh"].T + p["b_ih"] + p["b_hh"]
        i_g = jax.nn.sigmoid(gates[0:H])
        f_g = jax.nn.sigmoid(gates[H:2 * H])
        g_g = jnp.tanh(gates[2 * H:3 * H])
        o_g = jax.nn.sigmoid(gates[3 * H:4 * H])
        c_new = f_g * c + i_g * g_g
        h_new = o_g * jnp.tanh(c_new)
        return (h_new, c_new), h_new

    h0 = jnp.zeros((H,), jnp.float32)
    c0 = jnp.zeros((H,), jnp.float32)
    _, hs = jax.lax.scan(step, (h0, c0), y)
    return hs @ p["w_out"].T + p["b_out"]


def make_params(key, in_ch=6, hid=12, out_ch=6, vocab=366, emb_dim=48):
    ks = jax.random.split(key, 12)

    def unif(k, shape, fan_in):
        b = 1.0 / math.sqrt(fan_in)
        return jax.random.uniform(k, shape, jnp.float32, -b, b)

    return {
        "w_lin": unif(ks[0], (hid, in_ch), in_ch),
        "b_lin": unif(ks[1], (hid,), in_ch),
        "embed": jax.random.normal(ks[2], (vocab, emb_dim), jnp.float32),
        "w_tlin": unif(ks[3], (hid, emb_dim), emb_dim),
        "b_tlin": unif(ks[4], (hid,), emb_dim),
        "w_ih": unif(ks[5], (4 * hid, 2 * hid), hid),
        "w_hh": unif(ks[6], (4 * hid, hid), hid),
        "b_ih": unif(ks[7], (4 * hid,), hid),
        "b_hh": unif(ks[8], (4 * hid,), hid),
        "w_out": unif(ks[9], (out_ch, hid), hid),
        "b_out": unif(ks[10], (out_ch,), hid),
    }


if __name__ == "__main__":
    in_ch, hid, out_ch, N = 6, 12, 6, 8
    key = jax.random.PRNGKey(0)
    kp, kx, kc, kt = jax.random.split(key, 4)

    params = make_params(kp, in_ch, hid, out_ch)
    x = jax.random.normal(kx, (N, in_ch), jnp.float32)
    corr_x = jax.random.normal(kc, (in_ch, in_ch), jnp.float32)
    t = jax.random.randint(kt, (N, 1), 0, 366, dtype=jnp.int32)

    out = narx_forward(x, corr_x, t, params)
    out = jax.block_until_ready(out)

    ref = narx_ref(x, corr_x, t, params)
    assert out.shape == (N, out_ch), out.shape
    # default-precision MXU (bf16 inputs, f32 accumulate) on the feed-forward
    # dots -> loose tolerance; recurrent dot runs at HIGHEST precision.
    assert jnp.allclose(out, ref, rtol=2e-2, atol=2e-2), (out, ref)

    print("KERNEL_OK")
</pallas_src>

<mosaic_0001>
module attributes {stable_mosaic.version = 11 : i64} {
  func.func @narx_kernel(%arg0: memref<14x54xf32, #tpu.memory_space<vmem>>, %arg1: memref<106x48xf32, #tpu.memory_space<vmem>>, %arg2: memref<8x6xf32, #tpu.memory_space<vmem>>) attributes {dimension_semantics = [], scalar_prefetch = 0 : i64, scratch_operands = 0 : i64, tpu.core_type = #tpu.core_type<tc>} {
    %c0 = arith.constant 0 : index
    %c0_0 = arith.constant 0 : index
    %0 = vector.load %arg0[%c0, %c0_0] : memref<14x54xf32, #tpu.memory_space<vmem>>, vector<14x54xf32>
    %c0_1 = arith.constant 0 : index
    %c0_2 = arith.constant 0 : index
    %1 = vector.load %arg1[%c0_1, %c0_2] : memref<106x48xf32, #tpu.memory_space<vmem>>, vector<106x48xf32>
    %2 = vector.extract_strided_slice %0 {offsets = [0, 0], sizes = [8, 6], strides = [1, 1]} : vector<14x54xf32> to vector<8x6xf32>
    %3 = vector.extract_strided_slice %0 {offsets = [0, 6], sizes = [8, 48], strides = [1, 1]} : vector<14x54xf32> to vector<8x48xf32>
    %4 = vector.extract_strided_slice %0 {offsets = [8, 0], sizes = [6, 6], strides = [1, 1]} : vector<14x54xf32> to vector<6x6xf32>
    %5 = vector.extract_strided_slice %1 {offsets = [0, 0], sizes = [6, 12], strides = [1, 1]} : vector<106x48xf32> to vector<6x12xf32>
    %6 = vector.extract_strided_slice %1 {offsets = [6, 0], sizes = [48, 12], strides = [1, 1]} : vector<106x48xf32> to vector<48x12xf32>
    %7 = vector.extract_strided_slice %1 {offsets = [54, 0], sizes = [12, 48], strides = [1, 1]} : vector<106x48xf32> to vector<12x48xf32>
    %8 = vector.extract_strided_slice %1 {offsets = [66, 0], sizes = [12, 48], strides = [1, 1]} : vector<106x48xf32> to vector<12x48xf32>
    %9 = vector.extract_strided_slice %1 {offsets = [78, 0], sizes = [12, 48], strides = [1, 1]} : vector<106x48xf32> to vector<12x48xf32>
    %10 = vector.extract_strided_slice %1 {offsets = [90, 0], sizes = [12, 6], strides = [1, 1]} : vector<106x48xf32> to vector<12x6xf32>
    %11 = vector.extract_strided_slice %1 {offsets = [102, 0], sizes = [1, 12], strides = [1, 1]} : vector<106x48xf32> to vector<1x12xf32>
    %12 = vector.extract_strided_slice %1 {offsets = [103, 0], sizes = [1, 12], strides = [1, 1]} : vector<106x48xf32> to vector<1x12xf32>
    %13 = vector.extract_strided_slice %1 {offsets = [104, 0], sizes = [1, 48], strides = [1, 1]} : vector<106x48xf32> to vector<1x48xf32>
    %14 = vector.extract_strided_slice %1 {offsets = [105, 0], sizes = [1, 6], strides = [1, 1]} : vector<106x48xf32> to vector<1x6xf32>
    %cst = arith.constant dense<0.000000e+00> : vector<8x6xf32>
    %15 = tpu.matmul %2, %4, %cst {dimension_numbers = #tpu.dot_dimension_numbers<[1], [0], [0], [1], [0, 0, 1, 1], [], []>} : vector<8x6xf32>, vector<6x6xf32>, vector<8x6xf32> -> vector<8x6xf32>
    %cst_3 = arith.constant dense<0.000000e+00> : vector<8x12xf32>
    %16 = tpu.matmul %15, %5, %cst_3 {dimension_numbers = #tpu.dot_dimension_numbers<[1], [0], [0], [1], [0, 0, 1, 1], [], []>} : vector<8x6xf32>, vector<6x12xf32>, vector<8x12xf32> -> vector<8x12xf32>
    %17 = vector.broadcast %11 : vector<1x12xf32> to vector<8x12xf32>
    %18 = arith.addf %16, %17 : vector<8x12xf32>
    %cst_4 = arith.constant 0.000000e+00 : f32
    %19 = vector.broadcast %cst_4 : f32 to vector<8x12xf32>
    %20 = arith.maximumf %18, %19 : vector<8x12xf32>
    %cst_5 = arith.constant dense<0.000000e+00> : vector<8x12xf32>
    %21 = tpu.matmul %3, %6, %cst_5 {dimension_numbers = #tpu.dot_dimension_numbers<[1], [0], [0], [1], [0, 0, 1, 1], [], []>} : vector<8x48xf32>, vector<48x12xf32>, vector<8x12xf32> -> vector<8x12xf32>
    %22 = vector.broadcast %12 : vector<1x12xf32> to vector<8x12xf32>
    %23 = arith.addf %21, %22 : vector<8x12xf32>
    %cst_6 = arith.constant dense<0.000000e+00> : vector<8x48xf32>
    %24 = tpu.matmul %20, %7, %cst_6 {dimension_numbers = #tpu.dot_dimension_numbers<[1], [0], [0], [1], [0, 0, 1, 1], [], []>} : vector<8x12xf32>, vector<12x48xf32>, vector<8x48xf32> -> vector<8x48xf32>
    %cst_7 = arith.constant dense<0.000000e+00> : vector<8x48xf32>
    %25 = tpu.matmul %23, %8, %cst_7 {dimension_numbers = #tpu.dot_dimension_numbers<[1], [0], [0], [1], [0, 0, 1, 1], [], []>} : vector<8x12xf32>, vector<12x48xf32>, vector<8x48xf32> -> vector<8x48xf32>
    %26 = arith.addf %24, %25 : vector<8x48xf32>
    %27 = vector.broadcast %13 : vector<1x48xf32> to vector<8x48xf32>
    %28 = arith.addf %26, %27 : vector<8x48xf32>
    %cst_8 = arith.constant 0.000000e+00 : f32
    %29 = vector.broadcast %cst_8 : f32 to vector<1x12xf32>
    %cst_9 = arith.constant 0.000000e+00 : f32
    %30 = vector.broadcast %cst_9 : f32 to vector<1x12xf32>
    %31 = vector.extract_strided_slice %28 {offsets = [0, 0], sizes = [1, 48], strides = [1, 1]} : vector<8x48xf32> to vector<1x48xf32>
    %cst_10 = arith.constant dense<0.000000e+00> : vector<1x48xf32>
    %32 = tpu.matmul %29, %9, %cst_10 {dimension_numbers = #tpu.dot_dimension_numbers<[1], [0], [0], [1], [0, 0, 1, 1], [], []>, precision = #tpu.contract_precision<fp32>} : vector<1x12xf32>, vector<12x48xf32>, vector<1x48xf32> -> vector<1x48xf32>
    %33 = arith.addf %31, %32 : vector<1x48xf32>
    %34 = arith.negf %33 : vector<1x48xf32>
    %35 = math.exp %34 : vector<1x48xf32>
    %cst_11 = arith.constant 1.000000e+00 : f32
    %36 = vector.broadcast %cst_11 : f32 to vector<1x48xf32>
    %37 = arith.addf %36, %35 : vector<1x48xf32>
    %38 = arith.divf %36, %37 : vector<1x48xf32>
    %39 = vector.extract_strided_slice %38 {offsets = [0, 0], sizes = [1, 12], strides = [1, 1]} : vector<1x48xf32> to vector<1x12xf32>
    %40 = vector.extract_strided_slice %38 {offsets = [0, 12], sizes = [1, 12], strides = [1, 1]} : vector<1x48xf32> to vector<1x12xf32>
    %41 = vector.extract_strided_slice %38 {offsets = [0, 36], sizes = [1, 12], strides = [1, 1]} : vector<1x48xf32> to vector<1x12xf32>
    %42 = vector.extract_strided_slice %33 {offsets = [0, 24], sizes = [1, 12], strides = [1, 1]} : vector<1x48xf32> to vector<1x12xf32>
    %43 = math.tanh %42 : vector<1x12xf32>
    %44 = arith.mulf %40, %30 : vector<1x12xf32>
    %45 = arith.mulf %39, %43 : vector<1x12xf32>
    %46 = arith.addf %44, %45 : vector<1x12xf32>
    %47 = math.tanh %46 : vector<1x12xf32>
    %48 = arith.mulf %41, %47 : vector<1x12xf32>
    %49 = vector.extract_strided_slice %28 {offsets = [1, 0], sizes = [1, 48], strides = [1, 1]} : vector<8x48xf32> to vector<1x48xf32>
    %cst_12 = arith.constant dense<0.000000e+00> : vector<1x48xf32>
    %50 = tpu.matmul %48, %9, %cst_12 {dimension_numbers = #tpu.dot_dimension_numbers<[1], [0], [0], [1], [0, 0, 1, 1], [], []>, precision = #tpu.contract_precision<fp32>} : vector<1x12xf32>, vector<12x48xf32>, vector<1x48xf32> -> vector<1x48xf32>
    %51 = arith.addf %49, %50 : vector<1x48xf32>
    %52 = arith.negf %51 : vector<1x48xf32>
    %53 = math.exp %52 : vector<1x48xf32>
    %cst_13 = arith.constant 1.000000e+00 : f32
    %54 = vector.broadcast %cst_13 : f32 to vector<1x48xf32>
    %55 = arith.addf %54, %53 : vector<1x48xf32>
    %56 = arith.divf %54, %55 : vector<1x48xf32>
    %57 = vector.extract_strided_slice %56 {offsets = [0, 0], sizes = [1, 12], strides = [1, 1]} : vector<1x48xf32> to vector<1x12xf32>
    %58 = vector.extract_strided_slice %56 {offsets = [0, 12], sizes = [1, 12], strides = [1, 1]} : vector<1x48xf32> to vector<1x12xf32>
    %59 = vector.extract_strided_slice %56 {offsets = [0, 36], sizes = [1, 12], strides = [1, 1]} : vector<1x48xf32> to vector<1x12xf32>
    %60 = vector.extract_strided_slice %51 {offsets = [0, 24], sizes = [1, 12], strides = [1, 1]} : vector<1x48xf32> to vector<1x12xf32>
    %61 = math.tanh %60 : vector<1x12xf32>
    %62 = arith.mulf %58, %46 : vector<1x12xf32>
    %63 = arith.mulf %57, %61 : vector<1x12xf32>
    %64 = arith.addf %62, %63 : vector<1x12xf32>
    %65 = math.tanh %64 : vector<1x12xf32>
    %66 = arith.mulf %59, %65 : vector<1x12xf32>
    %67 = vector.extract_strided_slice %28 {offsets = [2, 0], sizes = [1, 48], strides = [1, 1]} : vector<8x48xf32> to vector<1x48xf32>
    %cst_14 = arith.constant dense<0.000000e+00> : vector<1x48xf32>
    %68 = tpu.matmul %66, %9, %cst_14 {dimension_numbers = #tpu.dot_dimension_numbers<[1], [0], [0], [1], [0, 0, 1, 1], [], []>, precision = #tpu.contract_precision<fp32>} : vector<1x12xf32>, vector<12x48xf32>, vector<1x48xf32> -> vector<1x48xf32>
    %69 = arith.addf %67, %68 : vector<1x48xf32>
    %70 = arith.negf %69 : vector<1x48xf32>
    %71 = math.exp %70 : vector<1x48xf32>
    %cst_15 = arith.constant 1.000000e+00 : f32
    %72 = vector.broadcast %cst_15 : f32 to vector<1x48xf32>
    %73 = arith.addf %72, %71 : vector<1x48xf32>
    %74 = arith.divf %72, %73 : vector<1x48xf32>
    %75 = vector.extract_strided_slice %74 {offsets = [0, 0], sizes = [1, 12], strides = [1, 1]} : vector<1x48xf32> to vector<1x12xf32>
    %76 = vector.extract_strided_slice %74 {offsets = [0, 12], sizes = [1, 12], strides = [1, 1]} : vector<1x48xf32> to vector<1x12xf32>
    %77 = vector.extract_strided_slice %74 {offsets = [0, 36], sizes = [1, 12], strides = [1, 1]} : vector<1x48xf32> to vector<1x12xf32>
    %78 = vector.extract_strided_slice %69 {offsets = [0, 24], sizes = [1, 12], strides = [1, 1]} : vector<1x48xf32> to vector<1x12xf32>
    %79 = math.tanh %78 : vector<1x12xf32>
    %80 = arith.mulf %76, %64 : vector<1x12xf32>
    %81 = arith.mulf %75, %79 : vector<1x12xf32>
    %82 = arith.addf %80, %81 : vector<1x12xf32>
    %83 = math.tanh %82 : vector<1x12xf32>
    %84 = arith.mulf %77, %83 : vector<1x12xf32>
    %85 = vector.extract_strided_slice %28 {offsets = [3, 0], sizes = [1, 48], strides = [1, 1]} : vector<8x48xf32> to vector<1x48xf32>
    %cst_16 = arith.constant dense<0.000000e+00> : vector<1x48xf32>
    %86 = tpu.matmul %84, %9, %cst_16 {dimension_numbers = #tpu.dot_dimension_numbers<[1], [0], [0], [1], [0, 0, 1, 1], [], []>, precision = #tpu.contract_precision<fp32>} : vector<1x12xf32>, vector<12x48xf32>, vector<1x48xf32> -> vector<1x48xf32>
    %87 = arith.addf %85, %86 : vector<1x48xf32>
    %88 = arith.negf %87 : vector<1x48xf32>
    %89 = math.exp %88 : vector<1x48xf32>
    %cst_17 = arith.constant 1.000000e+00 : f32
    %90 = vector.broadcast %cst_17 : f32 to vector<1x48xf32>
    %91 = arith.addf %90, %89 : vector<1x48xf32>
    %92 = arith.divf %90, %91 : vector<1x48xf32>
    %93 = vector.extract_strided_slice %92 {offsets = [0, 0], sizes = [1, 12], strides = [1, 1]} : vector<1x48xf32> to vector<1x12xf32>
    %94 = vector.extract_strided_slice %92 {offsets = [0, 12], sizes = [1, 12], strides = [1, 1]} : vector<1x48xf32> to vector<1x12xf32>
    %95 = vector.extract_strided_slice %92 {offsets = [0, 36], sizes = [1, 12], strides = [1, 1]} : vector<1x48xf32> to vector<1x12xf32>
    %96 = vector.extract_strided_slice %87 {offsets = [0, 24], sizes = [1, 12], strides = [1, 1]} : vector<1x48xf32> to vector<1x12xf32>
    %97 = math.tanh %96 : vector<1x12xf32>
    %98 = arith.mulf %94, %82 : vector<1x12xf32>
    %99 = arith.mulf %93, %97 : vector<1x12xf32>
    %100 = arith.addf %98, %99 : vector<1x12xf32>
    %101 = math.tanh %100 : vector<1x12xf32>
    %102 = arith.mulf %95, %101 : vector<1x12xf32>
    %103 = vector.extract_strided_slice %28 {offsets = [4, 0], sizes = [1, 48], strides = [1, 1]} : vector<8x48xf32> to vector<1x48xf32>
    %cst_18 = arith.constant dense<0.000000e+00> : vector<1x48xf32>
    %104 = tpu.matmul %102, %9, %cst_18 {dimension_numbers = #tpu.dot_dimension_numbers<[1], [0], [0], [1], [0, 0, 1, 1], [], []>, precision = #tpu.contract_precision<fp32>} : vector<1x12xf32>, vector<12x48xf32>, vector<1x48xf32> -> vector<1x48xf32>
    %105 = arith.addf %103, %104 : vector<1x48xf32>
    %106 = arith.negf %105 : vector<1x48xf32>
    %107 = math.exp %106 : vector<1x48xf32>
    %cst_19 = arith.constant 1.000000e+00 : f32
    %108 = vector.broadcast %cst_19 : f32 to vector<1x48xf32>
    %109 = arith.addf %108, %107 : vector<1x48xf32>
    %110 = arith.divf %108, %109 : vector<1x48xf32>
    %111 = vector.extract_strided_slice %110 {offsets = [0, 0], sizes = [1, 12], strides = [1, 1]} : vector<1x48xf32> to vector<1x12xf32>
    %112 = vector.extract_strided_slice %110 {offsets = [0, 12], sizes = [1, 12], strides = [1, 1]} : vector<1x48xf32> to vector<1x12xf32>
    %113 = vector.extract_strided_slice %110 {offsets = [0, 36], sizes = [1, 12], strides = [1, 1]} : vector<1x48xf32> to vector<1x12xf32>
    %114 = vector.extract_strided_slice %105 {offsets = [0, 24], sizes = [1, 12], strides = [1, 1]} : vector<1x48xf32> to vector<1x12xf32>
    %115 = math.tanh %114 : vector<1x12xf32>
    %116 = arith.mulf %112, %100 : vector<1x12xf32>
    %117 = arith.mulf %111, %115 : vector<1x12xf32>
    %118 = arith.addf %116, %117 : vector<1x12xf32>
    %119 = math.tanh %118 : vector<1x12xf32>
    %120 = arith.mulf %113, %119 : vector<1x12xf32>
    %121 = vector.extract_strided_slice %28 {offsets = [5, 0], sizes = [1, 48], strides = [1, 1]} : vector<8x48xf32> to vector<1x48xf32>
    %cst_20 = arith.constant dense<0.000000e+00> : vector<1x48xf32>
    %122 = tpu.matmul %120, %9, %cst_20 {dimension_numbers = #tpu.dot_dimension_numbers<[1], [0], [0], [1], [0, 0, 1, 1], [], []>, precision = #tpu.contract_precision<fp32>} : vector<1x12xf32>, vector<12x48xf32>, vector<1x48xf32> -> vector<1x48xf32>
    %123 = arith.addf %121, %122 : vector<1x48xf32>
    %124 = arith.negf %123 : vector<1x48xf32>
    %125 = math.exp %124 : vector<1x48xf32>
    %cst_21 = arith.constant 1.000000e+00 : f32
    %126 = vector.broadcast %cst_21 : f32 to vector<1x48xf32>
    %127 = arith.addf %126, %125 : vector<1x48xf32>
    %128 = arith.divf %126, %127 : vector<1x48xf32>
    %129 = vector.extract_strided_slice %128 {offsets = [0, 0], sizes = [1, 12], strides = [1, 1]} : vector<1x48xf32> to vector<1x12xf32>
    %130 = vector.extract_strided_slice %128 {offsets = [0, 12], sizes = [1, 12], strides = [1, 1]} : vector<1x48xf32> to vector<1x12xf32>
    %131 = vector.extract_strided_slice %128 {offsets = [0, 36], sizes = [1, 12], strides = [1, 1]} : vector<1x48xf32> to vector<1x12xf32>
    %132 = vector.extract_strided_slice %123 {offsets = [0, 24], sizes = [1, 12], strides = [1, 1]} : vector<1x48xf32> to vector<1x12xf32>
    %133 = math.tanh %132 : vector<1x12xf32>
    %134 = arith.mulf %130, %118 : vector<1x12xf32>
    %135 = arith.mulf %129, %133 : vector<1x12xf32>
    %136 = arith.addf %134, %135 : vector<1x12xf32>
    %137 = math.tanh %136 : vector<1x12xf32>
    %138 = arith.mulf %131, %137 : vector<1x12xf32>
    %139 = vector.extract_strided_slice %28 {offsets = [6, 0], sizes = [1, 48], strides = [1, 1]} : vector<8x48xf32> to vector<1x48xf32>
    %cst_22 = arith.constant dense<0.000000e+00> : vector<1x48xf32>
    %140 = tpu.matmul %138, %9, %cst_22 {dimension_numbers = #tpu.dot_dimension_numbers<[1], [0], [0], [1], [0, 0, 1, 1], [], []>, precision = #tpu.contract_precision<fp32>} : vector<1x12xf32>, vector<12x48xf32>, vector<1x48xf32> -> vector<1x48xf32>
    %141 = arith.addf %139, %140 : vector<1x48xf32>
    %142 = arith.negf %141 : vector<1x48xf32>
    %143 = math.exp %142 : vector<1x48xf32>
    %cst_23 = arith.constant 1.000000e+00 : f32
    %144 = vector.broadcast %cst_23 : f32 to vector<1x48xf32>
    %145 = arith.addf %144, %143 : vector<1x48xf32>
    %146 = arith.divf %144, %145 : vector<1x48xf32>
    %147 = vector.extract_strided_slice %146 {offsets = [0, 0], sizes = [1, 12], strides = [1, 1]} : vector<1x48xf32> to vector<1x12xf32>
    %148 = vector.extract_strided_slice %146 {offsets = [0, 12], sizes = [1, 12], strides = [1, 1]} : vector<1x48xf32> to vector<1x12xf32>
    %149 = vector.extract_strided_slice %146 {offsets = [0, 36], sizes = [1, 12], strides = [1, 1]} : vector<1x48xf32> to vector<1x12xf32>
    %150 = vector.extract_strided_slice %141 {offsets = [0, 24], sizes = [1, 12], strides = [1, 1]} : vector<1x48xf32> to vector<1x12xf32>
    %151 = math.tanh %150 : vector<1x12xf32>
    %152 = arith.mulf %148, %136 : vector<1x12xf32>
    %153 = arith.mulf %147, %151 : vector<1x12xf32>
    %154 = arith.addf %152, %153 : vector<1x12xf32>
    %155 = math.tanh %154 : vector<1x12xf32>
    %156 = arith.mulf %149, %155 : vector<1x12xf32>
    %157 = vector.extract_strided_slice %28 {offsets = [7, 0], sizes = [1, 48], strides = [1, 1]} : vector<8x48xf32> to vector<1x48xf32>
    %cst_24 = arith.constant dense<0.000000e+00> : vector<1x48xf32>
    %158 = tpu.matmul %156, %9, %cst_24 {dimension_numbers = #tpu.dot_dimension_numbers<[1], [0], [0], [1], [0, 0, 1, 1], [], []>, precision = #tpu.contract_precision<fp32>} : vector<1x12xf32>, vector<12x48xf32>, vector<1x48xf32> -> vector<1x48xf32>
    %159 = arith.addf %157, %158 : vector<1x48xf32>
    %160 = arith.negf %159 : vector<1x48xf32>
    %161 = math.exp %160 : vector<1x48xf32>
    %cst_25 = arith.constant 1.000000e+00 : f32
    %162 = vector.broadcast %cst_25 : f32 to vector<1x48xf32>
    %163 = arith.addf %162, %161 : vector<1x48xf32>
    %164 = arith.divf %162, %163 : vector<1x48xf32>
    %165 = vector.extract_strided_slice %164 {offsets = [0, 0], sizes = [1, 12], strides = [1, 1]} : vector<1x48xf32> to vector<1x12xf32>
    %166 = vector.extract_strided_slice %164 {offsets = [0, 12], sizes = [1, 12], strides = [1, 1]} : vector<1x48xf32> to vector<1x12xf32>
    %167 = vector.extract_strided_slice %164 {offsets = [0, 36], sizes = [1, 12], strides = [1, 1]} : vector<1x48xf32> to vector<1x12xf32>
    %168 = vector.extract_strided_slice %159 {offsets = [0, 24], sizes = [1, 12], strides = [1, 1]} : vector<1x48xf32> to vector<1x12xf32>
    %169 = math.tanh %168 : vector<1x12xf32>
    %170 = arith.mulf %166, %154 : vector<1x12xf32>
    %171 = arith.mulf %165, %169 : vector<1x12xf32>
    %172 = arith.addf %170, %171 : vector<1x12xf32>
    %173 = math.tanh %172 : vector<1x12xf32>
    %174 = arith.mulf %167, %173 : vector<1x12xf32>
    %175 = tpu.concatenate %48, %66, %84, %102, %120, %138, %156, %174 in 0 : vector<1x12xf32>, vector<1x12xf32>, vector<1x12xf32>, vector<1x12xf32>, vector<1x12xf32>, vector<1x12xf32>, vector<1x12xf32>, vector<1x12xf32> -> vector<8x12xf32>
    %cst_26 = arith.constant dense<0.000000e+00> : vector<8x6xf32>
    %176 = tpu.matmul %175, %10, %cst_26 {dimension_numbers = #tpu.dot_dimension_numbers<[1], [0], [0], [1], [0, 0, 1, 1], [], []>} : vector<8x12xf32>, vector<12x6xf32>, vector<8x6xf32> -> vector<8x6xf32>
    %177 = vector.broadcast %14 : vector<1x6xf32> to vector<8x6xf32>
    %178 = arith.addf %176, %177 : vector<8x6xf32>
    %c0_27 = arith.constant 0 : index
    %c0_28 = arith.constant 0 : index
    %179 = vector.load %arg2[%c0_27, %c0_28] : memref<8x6xf32, #tpu.memory_space<vmem>>, vector<8x6xf32>
    tpu.vector_store %arg2[%c0_27, %c0_28], %178 {strides = array<i32>} : memref<8x6xf32, #tpu.memory_space<vmem>>, vector<8x6xf32>,
    return
  }
}

</mosaic_0001>

<llo_original>
// kernel: tpu_custom_call.1
$region0: #{tpu_custom_call.1}
  #allocation0 [shape = 'u32[]', space=smem, size = 0x4, offset = 0x4, fixed_abs, tag = 'smem constant byte address 0x4 - core index']
  #allocation1 [shape = 'u32[144,128]{1,0:T(1,128)}', space=vmem, size = 0x12000, scoped, tag = 'internal scratch']
  %s0 = inlined_call_operand.vmem [shape: f32[14,54], index: 0, kind: input, shape index: {}]
  %s1 = inlined_call_operand.vmem [shape: f32[106,48], index: 1, kind: input, shape index: {}]
  %s2 = inlined_call_operand.hbm [shape: f32[8,6], index: 2, kind: output, shape index: {}]
  %s3 = sld [smem:[#allocation0]]
  $region18: #{tpu_custom_call.1} parent=0
    _
  %s5 = ssub.s32 1, %s3
  %s6 = scalar_select 0, %s5, %s3
  $region1: #{tpu_custom_call.1} parent=0
    #allocation2 [shape = 'u8[4096]{0}', space=vmem, size = 0x1000, scoped, tag = 'output window, operand 0, single buffered']
    #allocation3 [shape = 's32[1]{0}', space=sflag, size = 0x4, scoped, tag = 'scoped memory for tpu_custom_call.1']
    %7 = vsyncpa [#allocation3], 0
    // Predicated region
    $region2: #{tpu_custom_call.1} parent=1 // pred_check
      _
    $region3: #{tpu_custom_call.1} parent=1 // pred_check_branch
      %9 = sbr.rel (0) target = $region5
    $region4: #{tpu_custom_call.1} parent=1 // pred_region
      _
    $region5: #{tpu_custom_call.1} parent=1 // pred_fallthru
      _
    // Predicated region
    $region6: #{tpu_custom_call.1} parent=1 // pred_check
      _
    $region7: #{tpu_custom_call.1} parent=1 // pred_check_branch
      %11 = sbr.rel (0) target = $region9
    $region8: #{tpu_custom_call.1} parent=1 // pred_region
      _
    $region9: #{tpu_custom_call.1} parent=1 // pred_fallthru
      _
    %v12 = vld [vmem:[%s0] sm:$0xff]
    %v13 = vld [vmem:[%s0 + $0x8] sm:$0x3f]
    %v14 = vld [vmem:[%s1] sm:$0xff]
    %v15 = vld [vmem:[%s1 + $0x8] sm:$0xff]
    %v16 = vld [vmem:[%s1 + $0x10] sm:$0xff]
    %v17 = vld [vmem:[%s1 + $0x18] sm:$0xff]
    %v18 = vld [vmem:[%s1 + $0x20] sm:$0xff]
    %v19 = vld [vmem:[%s1 + $0x28] sm:$0xff]
    %v20 = vld [vmem:[%s1 + $0x30] sm:$0xff]
    %v21 = vld [vmem:[%s1 + $0x38] sm:$0xff]
    %v22 = vld [vmem:[%s1 + $0x40] sm:$0xff]
    %v23 = vld [vmem:[%s1 + $0x48] sm:$0xff]
    %v24 = vld [vmem:[%s1 + $0x50] sm:$0xff]
    %v25 = vld [vmem:[%s1 + $0x58] sm:$0xff]
    %v26 = vld [vmem:[%s1 + $0x60] sm:$0xff]
    %v27 = vld [vmem:[%s1 + $0x68] sm:$0x3]
    %vm28 = vcmask 48128
    %v30 = vsel %vm28, %v12, 0
    %vm32 = vcmask 1045504
    %v34 = vsel %vm32, %v13, 0
    %36 = vmatprep.subr.mxu0 0.0
    %37 = vmatpush1.msra.mxu0 %v34
    %38 = vmatprep.subr.mxu0 0.0
    %39 = vmatpush1.msra.mxu0 0.0
    %40 = vmatprep.subr.mxu0 0.0
    %41 = vmatpush1.msra.mxu0 0.0
    %42 = vmatprep.subr.mxu0 0.0
    %43 = vmatpush1.msra.mxu0 0.0
    %44 = vmatprep.subr.mxu0 0.0
    %45 = vmatpush1.msra.mxu0 0.0
    %46 = vmatprep.subr.mxu0 0.0
    %47 = vmatpush1.msra.mxu0 0.0
    %48 = vmatprep.subr.mxu0 0.0
    %49 = vmatpush1.msra.mxu0 0.0
    %50 = vmatprep.subr.mxu0 0.0
    %51 = vmatpush1.msra.mxu0 0.0
    %52 = vmatprep.subr.mxu0 0.0
    %53 = vmatpush1.msra.mxu0 0.0
    %54 = vmatprep.subr.mxu0 0.0
    %55 = vmatpush1.msra.mxu0 0.0
    %56 = vmatprep.subr.mxu0 0.0
    %57 = vmatpush1.msra.mxu0 0.0
    %58 = vmatprep.subr.mxu0 0.0
    %59 = vmatpush1.msra.mxu0 0.0
    %60 = vmatprep.subr.mxu0 0.0
    %61 = vmatpush1.msra.mxu0 0.0
    %62 = vmatprep.subr.mxu0 0.0
    %63 = vmatpush1.msra.mxu0 0.0
    %64 = vmatprep.subr.mxu0 0.0
    %65 = vmatpush1.msra.mxu0 0.0
    %66 = vmatprep.subr.mxu0 0.0
    %67 = vmatpush1.msra.mxu0 0.0
    %68 = vmatprep.subr.mxu0 0.0
    %69 = vmatpush1.msra.mxu0 0.0
    %70 = vmatprep.subr.mxu0 0.0
    %71 = vmatpush1.msra.mxu0 0.0
    %72 = vmatprep.subr.mxu0 0.0
    %73 = vmatpush1.msra.mxu0 0.0
    %74 = vmatprep.subr.mxu0 0.0
    %75 = vmatpush1.msra.mxu0 0.0
    %76 = vmatprep.subr.mxu0 0.0
    %77 = vmatpush1.msra.mxu0 0.0
    %78 = vmatprep.subr.mxu0 0.0
    %79 = vmatpush1.msra.mxu0 0.0
    %80 = vmatprep.subr.mxu0 0.0
    %81 = vmatpush1.msra.mxu0 0.0
    %82 = vmatprep.subr.mxu0 0.0
    %83 = vmatpush1.msra.mxu0 0.0
    %84 = vmatprep.subr.mxu0 0.0
    %85 = vmatpush1.msra.mxu0 0.0
    %86 = vmatprep.subr.mxu0 0.0
    %87 = vmatpush1.msra.mxu0 0.0
    %88 = vmatprep.subr.mxu0 0.0
    %89 = vmatpush1.msra.mxu0 0.0
    %90 = vmatprep.subr.mxu0 0.0
    %91 = vmatpush1.msra.mxu0 0.0
    %92 = vmatprep.subr.mxu0 0.0
    %93 = vmatpush1.msra.mxu0 0.0
    %94 = vmatprep.subr.mxu0 0.0
    %95 = vmatpush1.msra.mxu0 0.0
    %96 = vmatprep.subr.mxu0 0.0
    %97 = vmatpush1.msra.mxu0 0.0
    %98 = vmatprep.subr.mxu0 0.0
    %99 = vmatpush1.msra.mxu0 0.0
    %100 = vmatprep.mubr.f32.mxu0 0.0
    %101 = vmatmul.mubr.f32.gmra.mrb[0].mxu0 %v30
    %v102 = vpop.f32.mrb[0].mxu0
    %v103 = vadd.f32 0.0, %v102
    %v104 = vpop.f32.mrb[0].mxu0
    %105 = vdwg.mxu0
    %v106 = vlaneseq
    %v107 = vshrl.u32 %v106, 7
    %v108 = vsub.s32 6, %v107
    %v109 = vrot.slane %v26, %v108
    %v111 = vsel %vm28, %v103, 0
    %v114 = vsel %vm32, %v14, 0
    %116 = vmatprep.subr.mxu0 0.0
    %117 = vmatpush1.msra.mxu0 %v114
    %118 = vmatprep.subr.mxu0 0.0
    %119 = vmatpush1.msra.mxu0 0.0
    %120 = vmatprep.subr.mxu0 0.0
    %121 = vmatpush1.msra.mxu0 0.0
    %122 = vmatprep.subr.mxu0 0.0
    %123 = vmatpush1.msra.mxu0 0.0
    %124 = vmatprep.subr.mxu0 0.0
    %125 = vmatpush1.msra.mxu0 0.0
    %126 = vmatprep.subr.mxu0 0.0
    %127 = vmatpush1.msra.mxu0 0.0
    %128 = vmatprep.subr.mxu0 0.0
    %129 = vmatpush1.msra.mxu0 0.0
    %130 = vmatprep.subr.mxu0 0.0
    %131 = vmatpush1.msra.mxu0 0.0
    %132 = vmatprep.subr.mxu0 0.0
    %133 = vmatpush1.msra.mxu0 0.0
    %134 = vmatprep.subr.mxu0 0.0
    %135 = vmatpush1.msra.mxu0 0.0
    %136 = vmatprep.subr.mxu0 0.0
    %137 = vmatpush1.msra.mxu0 0.0
    %138 = vmatprep.subr.mxu0 0.0
    %139 = vmatpush1.msra.mxu0 0.0
    %140 = vmatprep.subr.mxu0 0.0
    %141 = vmatpush1.msra.mxu0 0.0
    %142 = vmatprep.subr.mxu0 0.0
    %143 = vmatpush1.msra.mxu0 0.0
    %144 = vmatprep.subr.mxu0 0.0
    %145 = vmatpush1.msra.mxu0 0.0
    %146 = vmatprep.subr.mxu0 0.0
    %147 = vmatpush1.msra.mxu0 0.0
    %148 = vmatprep.subr.mxu0 0.0
    %149 = vmatpush1.msra.mxu0 0.0
    %150 = vmatprep.subr.mxu0 0.0
    %151 = vmatpush1.msra.mxu0 0.0
    %152 = vmatprep.subr.mxu0 0.0
    %153 = vmatpush1.msra.mxu0 0.0
    %154 = vmatprep.subr.mxu0 0.0
    %155 = vmatpush1.msra.mxu0 0.0
    %156 = vmatprep.subr.mxu0 0.0
    %157 = vmatpush1.msra.mxu0 0.0
    %158 = vmatprep.subr.mxu0 0.0
    %159 = vmatpush1.msra.mxu0 0.0
    %160 = vmatprep.subr.mxu0 0.0
    %161 = vmatpush1.msra.mxu0 0.0
    %162 = vmatprep.subr.mxu0 0.0
    %163 = vmatpush1.msra.mxu0 0.0
    %164 = vmatprep.subr.mxu0 0.0
    %165 = vmatpush1.msra.mxu0 0.0
    %166 = vmatprep.subr.mxu0 0.0
    %167 = vmatpush1.msra.mxu0 0.0
    %168 = vmatprep.subr.mxu0 0.0
    %169 = vmatpush1.msra.mxu0 0.0
    %170 = vmatprep.subr.mxu0 0.0
    %171 = vmatpush1.msra.mxu0 0.0
    %172 = vmatprep.subr.mxu0 0.0
    %173 = vmatpush1.msra.mxu0 0.0
    %174 = vmatprep.subr.mxu0 0.0
    %175 = vmatpush1.msra.mxu0 0.0
    %176 = vmatprep.subr.mxu0 0.0
    %177 = vmatpush1.msra.mxu0 0.0
    %178 = vmatprep.subr.mxu0 0.0
    %179 = vmatpush1.msra.mxu0 0.0
    %180 = vmatprep.mubr.f32.mxu0 0.0
    %181 = vmatmul.mubr.f32.gmra.mrb[0].mxu0 %v111
    %v182 = vpop.f32.mrb[0].mxu0
    %v183 = vadd.f32 %v109, %v182
    %v184 = vpop.f32.mrb[0].mxu0
    %185 = vdwg.mxu0
    %v186 = vmax.f32 %v183, 0.0
    %v187 = vlaneseq
    %v188 = vshrl.u32 %v187, 7
    %v189 = vsub.s32 7, %v188
    %v190 = vrot.slane %v26, %v189
    %191 = vrot.lane.b32.xlu0 %v12, 122
    %v192 = vpop.permute.xlu0 %191
    %vm199 = vcmask 1041408
    %v200 = vrot.slane %v14, 6
    %v201 = vrot.slane %v15, 6
    %v202 = vsel %vm199, %v200, %v201
    %v203 = vrot.slane %v16, 6
    %v204 = vsel %vm199, %v201, %v203
    %v205 = vrot.slane %v17, 6
    %v206 = vsel %vm199, %v203, %v205
    %v207 = vrot.slane %v18, 6
    %v208 = vsel %vm199, %v205, %v207
    %v209 = vrot.slane %v19, 6
    %v210 = vsel %vm199, %v207, %v209
    %v211 = vrot.slane %v20, 6
    %v212 = vsel %vm199, %v209, %v211
    %vm219 = vcmask 392192
    %v220 = vsel %vm219, %v192, 0
    %222 = vmatprep.subr.mxu0 0.0
    %223 = vmatpush1.msra.mxu0 %v202
    %224 = vmatprep.subr.mxu0 0.0
    %225 = vmatpush1.msra.mxu0 %v204
    %226 = vmatprep.subr.mxu0 0.0
    %227 = vmatpush1.msra.mxu0 %v206
    %228 = vmatprep.subr.mxu0 0.0
    %229 = vmatpush1.msra.mxu0 %v208
    %230 = vmatprep.subr.mxu0 0.0
    %231 = vmatpush1.msra.mxu0 %v210
    %232 = vmatprep.subr.mxu0 0.0
    %233 = vmatpush1.msra.mxu0 %v212
    %234 = vmatprep.subr.mxu0 0.0
    %235 = vmatpush1.msra.mxu0 0.0
    %236 = vmatprep.subr.mxu0 0.0
    %237 = vmatpush1.msra.mxu0 0.0
    %238 = vmatprep.subr.mxu0 0.0
    %239 = vmatpush1.msra.mxu0 0.0
    %240 = vmatprep.subr.mxu0 0.0
    %241 = vmatpush1.msra.mxu0 0.0
    %242 = vmatprep.subr.mxu0 0.0
    %243 = vmatpush1.msra.mxu0 0.0
    %244 = vmatprep.subr.mxu0 0.0
    %245 = vmatpush1.msra.mxu0 0.0
    %246 = vmatprep.subr.mxu0 0.0
    %247 = vmatpush1.msra.mxu0 0.0
    %248 = vmatprep.subr.mxu0 0.0
    %249 = vmatpush1.msra.mxu0 0.0
    %250 = vmatprep.subr.mxu0 0.0
    %251 = vmatpush1.msra.mxu0 0.0
    %252 = vmatprep.subr.mxu0 0.0
    %253 = vmatpush1.msra.mxu0 0.0
    %254 = vmatprep.subr.mxu0 0.0
    %255 = vmatpush1.msra.mxu0 0.0
    %256 = vmatprep.subr.mxu0 0.0
    %257 = vmatpush1.msra.mxu0 0.0
    %258 = vmatprep.subr.mxu0 0.0
    %259 = vmatpush1.msra.mxu0 0.0
    %260 = vmatprep.subr.mxu0 0.0
    %261 = vmatpush1.msra.mxu0 0.0
    %262 = vmatprep.subr.mxu0 0.0
    %263 = vmatpush1.msra.mxu0 0.0
    %264 = vmatprep.subr.mxu0 0.0
    %265 = vmatpush1.msra.mxu0 0.0
    %266 = vmatprep.subr.mxu0 0.0
    %267 = vmatpush1.msra.mxu0 0.0
    %268 = vmatprep.subr.mxu0 0.0
    %269 = vmatpush1.msra.mxu0 0.0
    %270 = vmatprep.subr.mxu0 0.0
    %271 = vmatpush1.msra.mxu0 0.0
    %272 = vmatprep.subr.mxu0 0.0
    %273 = vmatpush1.msra.mxu0 0.0
    %274 = vmatprep.subr.mxu0 0.0
    %275 = vmatpush1.msra.mxu0 0.0
    %276 = vmatprep.subr.mxu0 0.0
    %277 = vmatpush1.msra.mxu0 0.0
    %278 = vmatprep.subr.mxu0 0.0
    %279 = vmatpush1.msra.mxu0 0.0
    %280 = vmatprep.subr.mxu0 0.0
    %281 = vmatpush1.msra.mxu0 0.0
    %282 = vmatprep.subr.mxu0 0.0
    %283 = vmatpush1.msra.mxu0 0.0
    %284 = vmatprep.subr.mxu0 0.0
    %285 = vmatpush1.msra.mxu0 0.0
    %286 = vmatprep.mubr.f32.mxu0 0.0
    %287 = vmatmul.mubr.f32.gmra.mrb[0].mxu0 %v220
    %v288 = vpop.f32.mrb[0].mxu0
    %v289 = vadd.f32 %v190, %v288
    %v290 = vpop.f32.mrb[0].mxu0
    %291 = vdwg.mxu0
    %v294 = vrot.slane %v22, 2
    %v295 = vrot.slane %v23, 2
    %v296 = vsel %vm32, %v294, %v295
    %vm298 = vcmask 97280
    %v300 = vsel %vm298, %v289, 0
    %vm302 = vcmask 1043456
    %v303 = vsel %vm302, %v295, 0
    %305 = vmatprep.subr.mxu0 0.0
    %306 = vmatpush1.msra.mxu0 %v296
    %307 = vmatprep.subr.mxu0 0.0
    %308 = vmatpush1.msra.mxu0 %v303
    %309 = vmatprep.subr.mxu0 0.0
    %310 = vmatpush1.msra.mxu0 0.0
    %311 = vmatprep.subr.mxu0 0.0
    %312 = vmatpush1.msra.mxu0 0.0
    %313 = vmatprep.subr.mxu0 0.0
    %314 = vmatpush1.msra.mxu0 0.0
    %315 = vmatprep.subr.mxu0 0.0
    %316 = vmatpush1.msra.mxu0 0.0
    %317 = vmatprep.subr.mxu0 0.0
    %318 = vmatpush1.msra.mxu0 0.0
    %319 = vmatprep.subr.mxu0 0.0
    %320 = vmatpush1.msra.mxu0 0.0
    %321 = vmatprep.subr.mxu0 0.0
    %322 = vmatpush1.msra.mxu0 0.0
    %323 = vmatprep.subr.mxu0 0.0
    %324 = vmatpush1.msra.mxu0 0.0
    %325 = vmatprep.subr.mxu0 0.0
    %326 = vmatpush1.msra.mxu0 0.0
    %327 = vmatprep.subr.mxu0 0.0
    %328 = vmatpush1.msra.mxu0 0.0
    %329 = vmatprep.subr.mxu0 0.0
    %330 = vmatpush1.msra.mxu0 0.0
    %331 = vmatprep.subr.mxu0 0.0
    %332 = vmatpush1.msra.mxu0 0.0
    %333 = vmatprep.subr.mxu0 0.0
    %334 = vmatpush1.msra.mxu0 0.0
    %335 = vmatprep.subr.mxu0 0.0
    %336 = vmatpush1.msra.mxu0 0.0
    %337 = vmatprep.subr.mxu0 0.0
    %338 = vmatpush1.msra.mxu0 0.0
    %339 = vmatprep.subr.mxu0 0.0
    %340 = vmatpush1.msra.mxu0 0.0
    %341 = vmatprep.subr.mxu0 0.0
    %342 = vmatpush1.msra.mxu0 0.0
    %343 = vmatprep.subr.mxu0 0.0
    %344 = vmatpush1.msra.mxu0 0.0
    %345 = vmatprep.subr.mxu0 0.0
    %346 = vmatpush1.msra.mxu0 0.0
    %347 = vmatprep.subr.mxu0 0.0
    %348 = vmatpush1.msra.mxu0 0.0
    %349 = vmatprep.subr.mxu0 0.0
    %350 = vmatpush1.msra.mxu0 0.0
    %351 = vmatprep.subr.mxu0 0.0
    %352 = vmatpush1.msra.mxu0 0.0
    %353 = vmatprep.subr.mxu0 0.0
    %354 = vmatpush1.msra.mxu0 0.0
    %355 = vmatprep.subr.mxu0 0.0
    %356 = vmatpush1.msra.mxu0 0.0
    %357 = vmatprep.subr.mxu0 0.0
    %358 = vmatpush1.msra.mxu0 0.0
    %359 = vmatprep.subr.mxu0 0.0
    %360 = vmatpush1.msra.mxu0 0.0
    %361 = vmatprep.subr.mxu0 0.0
    %362 = vmatpush1.msra.mxu0 0.0
    %363 = vmatprep.subr.mxu0 0.0
    %364 = vmatpush1.msra.mxu0 0.0
    %365 = vmatprep.subr.mxu0 0.0
    %366 = vmatpush1.msra.mxu0 0.0
    %367 = vmatprep.subr.mxu0 0.0
    %368 = vmatpush1.msra.mxu0 0.0
    %369 = vmatprep.mubr.f32.mxu0 0.0
    %370 = vmatmul.mubr.f32.gmra.mrb[0].mxu0 %v300
    %v371 = vpop.f32.mrb[0].mxu0
    %v372 = vadd.f32 0.0, %v371
    %v373 = vpop.f32.mrb[0].mxu0
    %374 = vdwg.mxu0
    %v376 = vrot.slane %v21, 6
    %v377 = vsel %vm199, %v211, %v376
    %v378 = vrot.slane %v22, 6
    %v379 = vsel %vm199, %v376, %v378
    %v382 = vsel %vm298, %v186, 0
    %v384 = vsel %vm302, %v379, 0
    %386 = vmatprep.subr.mxu0 0.0
    %387 = vmatpush1.msra.mxu0 %v377
    %388 = vmatprep.subr.mxu0 0.0
    %389 = vmatpush1.msra.mxu0 %v384
    %390 = vmatprep.subr.mxu0 0.0
    %391 = vmatpush1.msra.mxu0 0.0
    %392 = vmatprep.subr.mxu0 0.0
    %393 = vmatpush1.msra.mxu0 0.0
    %394 = vmatprep.subr.mxu0 0.0
    %395 = vmatpush1.msra.mxu0 0.0
    %396 = vmatprep.subr.mxu0 0.0
    %397 = vmatpush1.msra.mxu0 0.0
    %398 = vmatprep.subr.mxu0 0.0
    %399 = vmatpush1.msra.mxu0 0.0
    %400 = vmatprep.subr.mxu0 0.0
    %401 = vmatpush1.msra.mxu0 0.0
    %402 = vmatprep.subr.mxu0 0.0
    %403 = vmatpush1.msra.mxu0 0.0
    %404 = vmatprep.subr.mxu0 0.0
    %405 = vmatpush1.msra.mxu0 0.0
    %406 = vmatprep.subr.mxu0 0.0
    %407 = vmatpush1.msra.mxu0 0.0
    %408 = vmatprep.subr.mxu0 0.0
    %409 = vmatpush1.msra.mxu0 0.0
    %410 = vmatprep.subr.mxu0 0.0
    %411 = vmatpush1.msra.mxu0 0.0
    %412 = vmatprep.subr.mxu0 0.0
    %413 = vmatpush1.msra.mxu0 0.0
    %414 = vmatprep.subr.mxu0 0.0
    %415 = vmatpush1.msra.mxu0 0.0
    %416 = vmatprep.subr.mxu0 0.0
    %417 = vmatpush1.msra.mxu0 0.0
    %418 = vmatprep.subr.mxu0 0.0
    %419 = vmatpush1.msra.mxu0 0.0
    %420 = vmatprep.subr.mxu0 0.0
    %421 = vmatpush1.msra.mxu0 0.0
    %422 = vmatprep.subr.mxu0 0.0
    %423 = vmatpush1.msra.mxu0 0.0
    %424 = vmatprep.subr.mxu0 0.0
    %425 = vmatpush1.msra.mxu0 0.0
    %426 = vmatprep.subr.mxu0 0.0
    %427 = vmatpush1.msra.mxu0 0.0
    %428 = vmatprep.subr.mxu0 0.0
    %429 = vmatpush1.msra.mxu0 0.0
    %430 = vmatprep.subr.mxu0 0.0
    %431 = vmatpush1.msra.mxu0 0.0
    %432 = vmatprep.subr.mxu0 0.0
    %433 = vmatpush1.msra.mxu0 0.0
    %434 = vmatprep.subr.mxu0 0.0
    %435 = vmatpush1.msra.mxu0 0.0
    %436 = vmatprep.subr.mxu0 0.0
    %437 = vmatpush1.msra.mxu0 0.0
    %438 = vmatprep.subr.mxu0 0.0
    %439 = vmatpush1.msra.mxu0 0.0
    %440 = vmatprep.subr.mxu0 0.0
    %441 = vmatpush1.msra.mxu0 0.0
    %442 = vmatprep.subr.mxu0 0.0
    %443 = vmatpush1.msra.mxu0 0.0
    %444 = vmatprep.subr.mxu0 0.0
    %445 = vmatpush1.msra.mxu0 0.0
    %446 = vmatprep.subr.mxu0 0.0
    %447 = vmatpush1.msra.mxu0 0.0
    %448 = vmatprep.subr.mxu0 0.0
    %449 = vmatpush1.msra.mxu0 0.0
    %450 = vmatprep.mubr.f32.mxu0 0.0
    %451 = vmatmul.mubr.f32.gmra.mrb[0].mxu0 %v382
    %v452 = vpop.f32.mrb[0].mxu0
    %v453 = vadd.f32 %v372, %v452
    %v454 = vpop.f32.mrb[0].mxu0
    %455 = vdwg.mxu0
    %v456 = vlaneseq
    %v457 = vshrl.u32 %v456, 7
    %v458 = vsub.s32 0, %v457
    %v459 = vrot.slane %v27, %v458
    %v460 = vadd.f32 %v453, %v459
    %v463 = vrot.slane %v23, 6
    %v464 = vrot.slane %v24, 6
    %v465 = vsel %vm199, %v463, %v464
    %v466 = vrot.slane %v25, 6
    %v467 = vsel %vm199, %v464, %v466
    %v470 = vsel %vm298, 0.0, 0
    %v472 = vsel %vm302, %v467, 0
    %474 = vmatprep.subr.mxu0 0.0
    %v475 = vand.u32 %v465, 4294901760
    %476 = vmatpush1.msra.mxu0 %v475
    %477 = vmatprep.subr.mxu0 0.0
    %v478 = vand.u32 %v472, 4294901760
    %479 = vmatpush1.msra.mxu0 %v478
    %480 = vmatprep.subr.mxu0 0.0
    %481 = vmatpush1.msra.mxu0 0.0
    %482 = vmatprep.subr.mxu0 0.0
    %483 = vmatpush1.msra.mxu0 0.0
    %484 = vmatprep.subr.mxu0 0.0
    %485 = vmatpush1.msra.mxu0 0.0
    %486 = vmatprep.subr.mxu0 0.0
    %487 = vmatpush1.msra.mxu0 0.0
    %488 = vmatprep.subr.mxu0 0.0
    %489 = vmatpush1.msra.mxu0 0.0
    %490 = vmatprep.subr.mxu0 0.0
    %491 = vmatpush1.msra.mxu0 0.0
    %492 = vmatprep.subr.mxu0 0.0
    %493 = vmatpush1.msra.mxu0 0.0
    %494 = vmatprep.subr.mxu0 0.0
    %495 = vmatpush1.msra.mxu0 0.0
    %496 = vmatprep.subr.mxu0 0.0
    %497 = vmatpush1.msra.mxu0 0.0
    %498 = vmatprep.subr.mxu0 0.0
    %499 = vmatpush1.msra.mxu0 0.0
    %500 = vmatprep.subr.mxu0 0.0
    %501 = vmatpush1.msra.mxu0 0.0
    %502 = vmatprep.subr.mxu0 0.0
    %503 = vmatpush1.msra.mxu0 0.0
    %504 = vmatprep.subr.mxu0 0.0
    %505 = vmatpush1.msra.mxu0 0.0
    %506 = vmatprep.subr.mxu0 0.0
    %507 = vmatpush1.msra.mxu0 0.0
    %508 = vmatprep.subr.mxu0 0.0
    %509 = vmatpush1.msra.mxu0 0.0
    %510 = vmatprep.subr.mxu0 0.0
    %511 = vmatpush1.msra.mxu0 0.0
    %512 = vmatprep.subr.mxu0 0.0
    %513 = vmatpush1.msra.mxu0 0.0
    %514 = vmatprep.subr.mxu0 0.0
    %515 = vmatpush1.msra.mxu0 0.0
    %516 = vmatprep.subr.mxu0 0.0
    %517 = vmatpush1.msra.mxu0 0.0
    %518 = vmatprep.subr.mxu0 0.0
    %519 = vmatpush1.msra.mxu0 0.0
    %520 = vmatprep.subr.mxu0 0.0
    %521 = vmatpush1.msra.mxu0 0.0
    %522 = vmatprep.subr.mxu0 0.0
    %523 = vmatpush1.msra.mxu0 0.0
    %524 = vmatprep.subr.mxu0 0.0
    %525 = vmatpush1.msra.mxu0 0.0
    %526 = vmatprep.subr.mxu0 0.0
    %527 = vmatpush1.msra.mxu0 0.0
    %528 = vmatprep.subr.mxu0 0.0
    %529 = vmatpush1.msra.mxu0 0.0
    %530 = vmatprep.subr.mxu0 0.0
    %531 = vmatpush1.msra.mxu0 0.0
    %532 = vmatprep.subr.mxu0 0.0
    %533 = vmatpush1.msra.mxu0 0.0
    %534 = vmatprep.subr.mxu0 0.0
    %535 = vmatpush1.msra.mxu0 0.0
    %536 = vmatprep.subr.mxu0 0.0
    %537 = vmatpush1.msra.mxu0 0.0
    %538 = vmatprep.subr.mxu0 0.0
    %539 = vmatpush1.msra.mxu0 0.0
    %540 = vmatprep.mubr.f32.mxu0 0.0
    %v541 = vand.u32 %v470, 4294901760
    %v542 = vsub.f32 %v470, %v541
    %v543 = vand.u32 %v542, 4294901760
    %v544 = vsub.f32 %v542, %v543
    %v545 = vand.u32 %v544, 4294901760
    %546 = vmatmul.mubr.f32.gmra.mrb[0].mxu0 %v545
    %v547 = vpop.f32.mrb[0].mxu0
    %v548 = vadd.f32 0.0, %v547
    %v549 = vpop.f32.mrb[0].mxu0
    %550 = vdwg.mxu0
    %551 = vmatprep.subr.mxu0 0.0
    %v552 = vand.u32 %v465, 4294901760
    %v553 = vsub.f32 %v465, %v552
    %v554 = vand.u32 %v553, 4294901760
    %v555 = vsub.f32 %v553, %v554
    %v556 = vand.u32 %v555, 4294901760
    %557 = vmatpush1.msra.mxu0 %v556
    %558 = vmatprep.subr.mxu0 0.0
    %v559 = vand.u32 %v472, 4294901760
    %v560 = vsub.f32 %v472, %v559
    %v561 = vand.u32 %v560, 4294901760
    %v562 = vsub.f32 %v560, %v561
    %v563 = vand.u32 %v562, 4294901760
    %564 = vmatpush1.msra.mxu0 %v563
    %565 = vmatprep.subr.mxu0 0.0
    %566 = vmatpush1.msra.mxu0 0.0
    %567 = vmatprep.subr.mxu0 0.0
    %568 = vmatpush1.msra.mxu0 0.0
    %569 = vmatprep.subr.mxu0 0.0
    %570 = vmatpush1.msra.mxu0 0.0
    %571 = vmatprep.subr.mxu0 0.0
    %572 = vmatpush1.msra.mxu0 0.0
    %573 = vmatprep.subr.mxu0 0.0
    %574 = vmatpush1.msra.mxu0 0.0
    %575 = vmatprep.subr.mxu0 0.0
    %576 = vmatpush1.msra.mxu0 0.0
    %577 = vmatprep.subr.mxu0 0.0
    %578 = vmatpush1.msra.mxu0 0.0
    %579 = vmatprep.subr.mxu0 0.0
    %580 = vmatpush1.msra.mxu0 0.0
    %581 = vmatprep.subr.mxu0 0.0
    %582 = vmatpush1.msra.mxu0 0.0
    %583 = vmatprep.subr.mxu0 0.0
    %584 = vmatpush1.msra.mxu0 0.0
    %585 = vmatprep.subr.mxu0 0.0
    %586 = vmatpush1.msra.mxu0 0.0
    %587 = vmatprep.subr.mxu0 0.0
    %588 = vmatpush1.msra.mxu0 0.0
    %589 = vmatprep.subr.mxu0 0.0
    %590 = vmatpush1.msra.mxu0 0.0
    %591 = vmatprep.subr.mxu0 0.0
    %592 = vmatpush1.msra.mxu0 0.0
    %593 = vmatprep.subr.mxu0 0.0
    %594 = vmatpush1.msra.mxu0 0.0
    %595 = vmatprep.subr.mxu0 0.0
    %596 = vmatpush1.msra.mxu0 0.0
    %597 = vmatprep.subr.mxu0 0.0
    %598 = vmatpush1.msra.mxu0 0.0
    %599 = vmatprep.subr.mxu0 0.0
    %600 = vmatpush1.msra.mxu0 0.0
    %601 = vmatprep.subr.mxu0 0.0
    %602 = vmatpush1.msra.mxu0 0.0
    %603 = vmatprep.subr.mxu0 0.0
    %604 = vmatpush1.msra.mxu0 0.0
    %605 = vmatprep.subr.mxu0 0.0
    %606 = vmatpush1.msra.mxu0 0.0
    %607 = vmatprep.subr.mxu0 0.0
    %608 = vmatpush1.msra.mxu0 0.0
    %609 = vmatprep.subr.mxu0 0.0
    %610 = vmatpush1.msra.mxu0 0.0
    %611 = vmatprep.subr.mxu0 0.0
    %612 = vmatpush1.msra.mxu0 0.0
    %613 = vmatprep.subr.mxu0 0.0
    %614 = vmatpush1.msra.mxu0 0.0
    %615 = vmatprep.subr.mxu0 0.0
    %616 = vmatpush1.msra.mxu0 0.0
    %617 = vmatprep.subr.mxu0 0.0
    %618 = vmatpush1.msra.mxu0 0.0
    %619 = vmatprep.subr.mxu0 0.0
    %620 = vmatpush1.msra.mxu0 0.0
    %621 = vmatprep.subr.mxu0 0.0
    %622 = vmatpush1.msra.mxu0 0.0
    %623 = vmatprep.subr.mxu0 0.0
    %624 = vmatpush1.msra.mxu0 0.0
    %625 = vmatprep.mubr.f32.mxu0 0.0
    %v626 = vand.u32 %v470, 4294901760
    %627 = vmatmul.mubr.f32.gmra.mrb[0].mxu0 %v626
    %v628 = vpop.f32.mrb[0].mxu0
    %v629 = vadd.f32 %v548, %v628
    %v630 = vpop.f32.mrb[0].mxu0
    %631 = vdwg.mxu0
    %632 = vmatprep.subr.mxu0 0.0
    %v633 = vand.u32 %v465, 4294901760
    %v634 = vsub.f32 %v465, %v633
    %635 = vmatpush1.msra.mxu0 %v634
    %636 = vmatprep.subr.mxu0 0.0
    %v637 = vand.u32 %v472, 4294901760
    %v638 = vsub.f32 %v472, %v637
    %639 = vmatpush1.msra.mxu0 %v638
    %640 = vmatprep.subr.mxu0 0.0
    %641 = vmatpush1.msra.mxu0 0.0
    %642 = vmatprep.subr.mxu0 0.0
    %643 = vmatpush1.msra.mxu0 0.0
    %644 = vmatprep.subr.mxu0 0.0
    %645 = vmatpush1.msra.mxu0 0.0
    %646 = vmatprep.subr.mxu0 0.0
    %647 = vmatpush1.msra.mxu0 0.0
    %648 = vmatprep.subr.mxu0 0.0
    %649 = vmatpush1.msra.mxu0 0.0
    %650 = vmatprep.subr.mxu0 0.0
    %651 = vmatpush1.msra.mxu0 0.0
    %652 = vmatprep.subr.mxu0 0.0
    %653 = vmatpush1.msra.mxu0 0.0
    %654 = vmatprep.subr.mxu0 0.0
    %655 = vmatpush1.msra.mxu0 0.0
    %656 = vmatprep.subr.mxu0 0.0
    %657 = vmatpush1.msra.mxu0 0.0
    %658 = vmatprep.subr.mxu0 0.0
    %659 = vmatpush1.msra.mxu0 0.0
    %660 = vmatprep.subr.mxu0 0.0
    %661 = vmatpush1.msra.mxu0 0.0
    %662 = vmatprep.subr.mxu0 0.0
    %663 = vmatpush1.msra.mxu0 0.0
    %664 = vmatprep.subr.mxu0 0.0
    %665 = vmatpush1.msra.mxu0 0.0
    %666 = vmatprep.subr.mxu0 0.0
    %667 = vmatpush1.msra.mxu0 0.0
    %668 = vmatprep.subr.mxu0 0.0
    %669 = vmatpush1.msra.mxu0 0.0
    %670 = vmatprep.subr.mxu0 0.0
    %671 = vmatpush1.msra.mxu0 0.0
    %672 = vmatprep.subr.mxu0 0.0
    %673 = vmatpush1.msra.mxu0 0.0
    %674 = vmatprep.subr.mxu0 0.0
    %675 = vmatpush1.msra.mxu0 0.0
    %676 = vmatprep.subr.mxu0 0.0
    %677 = vmatpush1.msra.mxu0 0.0
    %678 = vmatprep.subr.mxu0 0.0
    %679 = vmatpush1.msra.mxu0 0.0
    %680 = vmatprep.subr.mxu0 0.0
    %681 = vmatpush1.msra.mxu0 0.0
    %682 = vmatprep.subr.mxu0 0.0
    %683 = vmatpush1.msra.mxu0 0.0
    %684 = vmatprep.subr.mxu0 0.0
    %685 = vmatpush1.msra.mxu0 0.0
    %686 = vmatprep.subr.mxu0 0.0
    %687 = vmatpush1.msra.mxu0 0.0
    %688 = vmatprep.subr.mxu0 0.0
    %689 = vmatpush1.msra.mxu0 0.0
    %690 = vmatprep.subr.mxu0 0.0
    %691 = vmatpush1.msra.mxu0 0.0
    %692 = vmatprep.subr.mxu0 0.0
    %693 = vmatpush1.msra.mxu0 0.0
    %694 = vmatprep.subr.mxu0 0.0
    %695 = vmatpush1.msra.mxu0 0.0
    %696 = vmatprep.subr.mxu0 0.0
    %697 = vmatpush1.msra.mxu0 0.0
    %698 = vmatprep.subr.mxu0 0.0
    %699 = vmatpush1.msra.mxu0 0.0
    %700 = vmatprep.mubr.f32.mxu0 0.0
    %v701 = vand.u32 %v470, 4294901760
    %v702 = vsub.f32 %v470, %v701
    %703 = vmatmul.mubr.f32.gmra.mrb[0].mxu0 %v702
    %v704 = vpop.f32.mrb[0].mxu0
    %v705 = vadd.f32 %v629, %v704
    %v706 = vpop.f32.mrb[0].mxu0
    %707 = vdwg.mxu0
    %708 = vmatprep.subr.mxu0 0.0
    %v709 = vand.u32 %v465, 4294901760
    %710 = vmatpush1.msra.mxu0 %v709
    %711 = vmatprep.subr.mxu0 0.0
    %v712 = vand.u32 %v472, 4294901760
    %713 = vmatpush1.msra.mxu0 %v712
    %714 = vmatprep.subr.mxu0 0.0
    %715 = vmatpush1.msra.mxu0 0.0
    %716 = vmatprep.subr.mxu0 0.0
    %717 = vmatpush1.msra.mxu0 0.0
    %718 = vmatprep.subr.mxu0 0.0
    %719 = vmatpush1.msra.mxu0 0.0
    %720 = vmatprep.subr.mxu0 0.0
    %721 = vmatpush1.msra.mxu0 0.0
    %722 = vmatprep.subr.mxu0 0.0
    %723 = vmatpush1.msra.mxu0 0.0
    %724 = vmatprep.subr.mxu0 0.0
    %725 = vmatpush1.msra.mxu0 0.0
    %726 = vmatprep.subr.mxu0 0.0
    %727 = vmatpush1.msra.mxu0 0.0
    %728 = vmatprep.subr.mxu0 0.0
    %729 = vmatpush1.msra.mxu0 0.0
    %730 = vmatprep.subr.mxu0 0.0
    %731 = vmatpush1.msra.mxu0 0.0
    %732 = vmatprep.subr.mxu0 0.0
    %733 = vmatpush1.msra.mxu0 0.0
    %734 = vmatprep.subr.mxu0 0.0
    %735 = vmatpush1.msra.mxu0 0.0
    %736 = vmatprep.subr.mxu0 0.0
    %737 = vmatpush1.msra.mxu0 0.0
    %738 = vmatprep.subr.mxu0 0.0
    %739 = vmatpush1.msra.mxu0 0.0
    %740 = vmatprep.subr.mxu0 0.0
    %741 = vmatpush1.msra.mxu0 0.0
    %742 = vmatprep.subr.mxu0 0.0
    %743 = vmatpush1.msra.mxu0 0.0
    %744 = vmatprep.subr.mxu0 0.0
    %745 = vmatpush1.msra.mxu0 0.0
    %746 = vmatprep.subr.mxu0 0.0
    %747 = vmatpush1.msra.mxu0 0.0
    %748 = vmatprep.subr.mxu0 0.0
    %749 = vmatpush1.msra.mxu0 0.0
    %750 = vmatprep.subr.mxu0 0.0
    %751 = vmatpush1.msra.mxu0 0.0
    %752 = vmatprep.subr.mxu0 0.0
    %753 = vmatpush1.msra.mxu0 0.0
    %754 = vmatprep.subr.mxu0 0.0
    %755 = vmatpush1.msra.mxu0 0.0
    %756 = vmatprep.subr.mxu0 0.0
    %757 = vmatpush1.msra.mxu0 0.0
    %758 = vmatprep.subr.mxu0 0.0
    %759 = vmatpush1.msra.mxu0 0.0
    %760 = vmatprep.subr.mxu0 0.0
    %761 = vmatpush1.msra.mxu0 0.0
    %762 = vmatprep.subr.mxu0 0.0
    %763 = vmatpush1.msra.mxu0 0.0
    %764 = vmatprep.subr.mxu0 0.0
    %765 = vmatpush1.msra.mxu0 0.0
    %766 = vmatprep.subr.mxu0 0.0
    %767 = vmatpush1.msra.mxu0 0.0
    %768 = vmatprep.subr.mxu0 0.0
    %769 = vmatpush1.msra.mxu0 0.0
    %770 = vmatprep.subr.mxu0 0.0
    %771 = vmatpush1.msra.mxu0 0.0
    %772 = vmatprep.subr.mxu0 0.0
    %773 = vmatpush1.msra.mxu0 0.0
    %774 = vmatprep.mubr.f32.mxu0 0.0
    %v775 = vand.u32 %v470, 4294901760
    %v776 = vsub.f32 %v470, %v775
    %v777 = vand.u32 %v776, 4294901760
    %778 = vmatmul.mubr.f32.gmra.mrb[0].mxu0 %v777
    %v779 = vpop.f32.mrb[0].mxu0
    %v780 = vadd.f32 %v705, %v779
    %v781 = vpop.f32.mrb[0].mxu0
    %782 = vdwg.mxu0
    %783 = vmatprep.subr.mxu0 0.0
    %v784 = vand.u32 %v465, 4294901760
    %v785 = vsub.f32 %v465, %v784
    %v786 = vand.u32 %v785, 4294901760
    %787 = vmatpush1.msra.mxu0 %v786
    %788 = vmatprep.subr.mxu0 0.0
    %v789 = vand.u32 %v472, 4294901760
    %v790 = vsub.f32 %v472, %v789
    %v791 = vand.u32 %v790, 4294901760
    %792 = vmatpush1.msra.mxu0 %v791
    %793 = vmatprep.subr.mxu0 0.0
    %794 = vmatpush1.msra.mxu0 0.0
    %795 = vmatprep.subr.mxu0 0.0
    %796 = vmatpush1.msra.mxu0 0.0
    %797 = vmatprep.subr.mxu0 0.0
    %798 = vmatpush1.msra.mxu0 0.0
    %799 = vmatprep.subr.mxu0 0.0
    %800 = vmatpush1.msra.mxu0 0.0
    %801 = vmatprep.subr.mxu0 0.0
    %802 = vmatpush1.msra.mxu0 0.0
    %803 = vmatprep.subr.mxu0 0.0
    %804 = vmatpush1.msra.mxu0 0.0
    %805 = vmatprep.subr.mxu0 0.0
    %806 = vmatpush1.msra.mxu0 0.0
    %807 = vmatprep.subr.mxu0 0.0
    %808 = vmatpush1.msra.mxu0 0.0
    %809 = vmatprep.subr.mxu0 0.0
    %810 = vmatpush1.msra.mxu0 0.0
    %811 = vmatprep.subr.mxu0 0.0
    %812 = vmatpush1.msra.mxu0 0.0
    %813 = vmatprep.subr.mxu0 0.0
    %814 = vmatpush1.msra.mxu0 0.0
    %815 = vmatprep.subr.mxu0 0.0
    %816 = vmatpush1.msra.mxu0 0.0
    %817 = vmatprep.subr.mxu0 0.0
    %818 = vmatpush1.msra.mxu0 0.0
    %819 = vmatprep.subr.mxu0 0.0
    %820 = vmatpush1.msra.mxu0 0.0
    %821 = vmatprep.subr.mxu0 0.0
    %822 = vmatpush1.msra.mxu0 0.0
    %823 = vmatprep.subr.mxu0 0.0
    %824 = vmatpush1.msra.mxu0 0.0
    %825 = vmatprep.subr.mxu0 0.0
    %826 = vmatpush1.msra.mxu0 0.0
    %827 = vmatprep.subr.mxu0 0.0
    %828 = vmatpush1.msra.mxu0 0.0
    %829 = vmatprep.subr.mxu0 0.0
    %830 = vmatpush1.msra.mxu0 0.0
    %831 = vmatprep.subr.mxu0 0.0
    %832 = vmatpush1.msra.mxu0 0.0
    %833 = vmatprep.subr.mxu0 0.0
    %834 = vmatpush1.msra.mxu0 0.0
    %835 = vmatprep.subr.mxu0 0.0
    %836 = vmatpush1.msra.mxu0 0.0
    %837 = vmatprep.subr.mxu0 0.0
    %838 = vmatpush1.msra.mxu0 0.0
    %839 = vmatprep.subr.mxu0 0.0
    %840 = vmatpush1.msra.mxu0 0.0
    %841 = vmatprep.subr.mxu0 0.0
    %842 = vmatpush1.msra.mxu0 0.0
    %843 = vmatprep.subr.mxu0 0.0
    %844 = vmatpush1.msra.mxu0 0.0
    %845 = vmatprep.subr.mxu0 0.0
    %846 = vmatpush1.msra.mxu0 0.0
    %847 = vmatprep.subr.mxu0 0.0
    %848 = vmatpush1.msra.mxu0 0.0
    %849 = vmatprep.subr.mxu0 0.0
    %850 = vmatpush1.msra.mxu0 0.0
    %851 = vmatprep.subr.mxu0 0.0
    %852 = vmatpush1.msra.mxu0 0.0
    %853 = vmatprep.mubr.f32.mxu0 0.0
    %v854 = vand.u32 %v470, 4294901760
    %855 = vmatmul.mubr.f32.gmra.mrb[0].mxu0 %v854
    %v856 = vpop.f32.mrb[0].mxu0
    %v857 = vadd.f32 %v780, %v856
    %v858 = vpop.f32.mrb[0].mxu0
    %859 = vdwg.mxu0
    %860 = vmatprep.subr.mxu0 0.0
    %v861 = vand.u32 %v465, 4294901760
    %862 = vmatpush1.msra.mxu0 %v861
    %863 = vmatprep.subr.mxu0 0.0
    %v864 = vand.u32 %v472, 4294901760
    %865 = vmatpush1.msra.mxu0 %v864
    %866 = vmatprep.subr.mxu0 0.0
    %867 = vmatpush1.msra.mxu0 0.0
    %868 = vmatprep.subr.mxu0 0.0
    %869 = vmatpush1.msra.mxu0 0.0
    %870 = vmatprep.subr.mxu0 0.0
    %871 = vmatpush1.msra.mxu0 0.0
    %872 = vmatprep.subr.mxu0 0.0
    %873 = vmatpush1.msra.mxu0 0.0
    %874 = vmatprep.subr.mxu0 0.0
    %875 = vmatpush1.msra.mxu0 0.0
    %876 = vmatprep.subr.mxu0 0.0
    %877 = vmatpush1.msra.mxu0 0.0
    %878 = vmatprep.subr.mxu0 0.0
    %879 = vmatpush1.msra.mxu0 0.0
    %880 = vmatprep.subr.mxu0 0.0
    %881 = vmatpush1.msra.mxu0 0.0
    %882 = vmatprep.subr.mxu0 0.0
    %883 = vmatpush1.msra.mxu0 0.0
    %884 = vmatprep.subr.mxu0 0.0
    %885 = vmatpush1.msra.mxu0 0.0
    %886 = vmatprep.subr.mxu0 0.0
    %887 = vmatpush1.msra.mxu0 0.0
    %888 = vmatprep.subr.mxu0 0.0
    %889 = vmatpush1.msra.mxu0 0.0
    %890 = vmatprep.subr.mxu0 0.0
    %891 = vmatpush1.msra.mxu0 0.0
    %892 = vmatprep.subr.mxu0 0.0
    %893 = vmatpush1.msra.mxu0 0.0
    %894 = vmatprep.subr.mxu0 0.0
    %895 = vmatpush1.msra.mxu0 0.0
    %896 = vmatprep.subr.mxu0 0.0
    %897 = vmatpush1.msra.mxu0 0.0
    %898 = vmatprep.subr.mxu0 0.0
    %899 = vmatpush1.msra.mxu0 0.0
    %900 = vmatprep.subr.mxu0 0.0
    %901 = vmatpush1.msra.mxu0 0.0
    %902 = vmatprep.subr.mxu0 0.0
    %903 = vmatpush1.msra.mxu0 0.0
    %904 = vmatprep.subr.mxu0 0.0
    %905 = vmatpush1.msra.mxu0 0.0
    %906 = vmatprep.subr.mxu0 0.0
    %907 = vmatpush1.msra.mxu0 0.0
    %908 = vmatprep.subr.mxu0 0.0
    %909 = vmatpush1.msra.mxu0 0.0
    %910 = vmatprep.subr.mxu0 0.0
    %911 = vmatpush1.msra.mxu0 0.0
    %912 = vmatprep.subr.mxu0 0.0
    %913 = vmatpush1.msra.mxu0 0.0
    %914 = vmatprep.subr.mxu0 0.0
    %915 = vmatpush1.msra.mxu0 0.0
    %916 = vmatprep.subr.mxu0 0.0
    %917 = vmatpush1.msra.mxu0 0.0
    %918 = vmatprep.subr.mxu0 0.0
    %919 = vmatpush1.msra.mxu0 0.0
    %920 = vmatprep.subr.mxu0 0.0
    %921 = vmatpush1.msra.mxu0 0.0
    %922 = vmatprep.subr.mxu0 0.0
    %923 = vmatpush1.msra.mxu0 0.0
    %924 = vmatprep.subr.mxu0 0.0
    %925 = vmatpush1.msra.mxu0 0.0
    %926 = vmatprep.mubr.f32.mxu0 0.0
    %v927 = vand.u32 %v470, 4294901760
    %928 = vmatmul.mubr.f32.gmra.mrb[0].mxu0 %v927
    %v929 = vpop.f32.mrb[0].mxu0
    %v930 = vadd.f32 %v857, %v929
    %v931 = vpop.f32.mrb[0].mxu0
    %932 = vdwg.mxu0
    %v933 = vadd.f32 %v460, %v930
    %v934 = vxor.u32 %v933, 2147483648
    %v935 = vmul.f32 %v934, 1.442695
    %v936 = vpow.pop %v935
    %v937 = vadd.f32 %v936, 1.0
    %v938 = vrcp.pop %v937
    %v939 = vmul.f32 1.0, %v938
    %v940 = vtanh.pop %v933
    %v941 = vmul.f32 %v939, 0.0
    %943 = vrot.lane.b32.xlu0 %v940, 104
    %v944 = vpop.permute.xlu0 %943
    %v946 = vmul.f32 %v939, %v944
    %948 = vrot.lane.b32.xlu0 %v946, 12
    %v949 = vpop.permute.xlu0 %948
    %v951 = vadd.f32 %v941, %v949
    %v952 = vtanh.pop %v951
    %954 = vrot.lane.b32.xlu0 %v952, 24
    %v955 = vpop.permute.xlu0 %954
    %v957 = vmul.f32 %v939, %v955
    %959 = vrot.lane.b32.xlu0 %v957, 92
    %v960 = vpop.permute.xlu0 %959
    %v961 = vsel %vm298, %v960, 0
    %963 = vmatprep.subr.mxu0 0.0
    %v964 = vand.u32 %v465, 4294901760
    %965 = vmatpush1.msra.mxu0 %v964
    %966 = vmatprep.subr.mxu0 0.0
    %v967 = vand.u32 %v472, 4294901760
    %968 = vmatpush1.msra.mxu0 %v967
    %969 = vmatprep.subr.mxu0 0.0
    %970 = vmatpush1.msra.mxu0 0.0
    %971 = vmatprep.subr.mxu0 0.0
    %972 = vmatpush1.msra.mxu0 0.0
    %973 = vmatprep.subr.mxu0 0.0
    %974 = vmatpush1.msra.mxu0 0.0
    %975 = vmatprep.subr.mxu0 0.0
    %976 = vmatpush1.msra.mxu0 0.0
    %977 = vmatprep.subr.mxu0 0.0
    %978 = vmatpush1.msra.mxu0 0.0
    %979 = vmatprep.subr.mxu0 0.0
    %980 = vmatpush1.msra.mxu0 0.0
    %981 = vmatprep.subr.mxu0 0.0
    %982 = vmatpush1.msra.mxu0 0.0
    %983 = vmatprep.subr.mxu0 0.0
    %984 = vmatpush1.msra.mxu0 0.0
    %985 = vmatprep.subr.mxu0 0.0
    %986 = vmatpush1.msra.mxu0 0.0
    %987 = vmatprep.subr.mxu0 0.0
    %988 = vmatpush1.msra.mxu0 0.0
    %989 = vmatprep.subr.mxu0 0.0
    %990 = vmatpush1.msra.mxu0 0.0
    %991 = vmatprep.subr.mxu0 0.0
    %992 = vmatpush1.msra.mxu0 0.0
    %993 = vmatprep.subr.mxu0 0.0
    %994 = vmatpush1.msra.mxu0 0.0
    %995 = vmatprep.subr.mxu0 0.0
    %996 = vmatpush1.msra.mxu0 0.0
    %997 = vmatprep.subr.mxu0 0.0
    %998 = vmatpush1.msra.mxu0 0.0
    %999 = vmatprep.subr.mxu0 0.0
    %1000 = vmatpush1.msra.mxu0 0.0
    %1001 = vmatprep.subr.mxu0 0.0
    %1002 = vmatpush1.msra.mxu0 0.0
    %1003 = vmatprep.subr.mxu0 0.0
    %1004 = vmatpush1.msra.mxu0 0.0
    %1005 = vmatprep.subr.mxu0 0.0
    %1006 = vmatpush1.msra.mxu0 0.0
    %1007 = vmatprep.subr.mxu0 0.0
    %1008 = vmatpush1.msra.mxu0 0.0
    %1009 = vmatprep.subr.mxu0 0.0
    %1010 = vmatpush1.msra.mxu0 0.0
    %1011 = vmatprep.subr.mxu0 0.0
    %1012 = vmatpush1.msra.mxu0 0.0
    %1013 = vmatprep.subr.mxu0 0.0
    %1014 = vmatpush1.msra.mxu0 0.0
    %1015 = vmatprep.subr.mxu0 0.0
    %1016 = vmatpush1.msra.mxu0 0.0
    %1017 = vmatprep.subr.mxu0 0.0
    %1018 = vmatpush1.msra.mxu0 0.0
    %1019 = vmatprep.subr.mxu0 0.0
    %1020 = vmatpush1.msra.mxu0 0.0
    %1021 = vmatprep.subr.mxu0 0.0
    %1022 = vmatpush1.msra.mxu0 0.0
    %1023 = vmatprep.subr.mxu0 0.0
    %1024 = vmatpush1.msra.mxu0 0.0
    %1025 = vmatprep.subr.mxu0 0.0
    %1026 = vmatpush1.msra.mxu0 0.0
    %1027 = vmatprep.subr.mxu0 0.0
    %1028 = vmatpush1.msra.mxu0 0.0
    %1029 = vmatprep.mubr.f32.mxu0 0.0
    %v1030 = vand.u32 %v961, 4294901760
    %v1031 = vsub.f32 %v961, %v1030
    %v1032 = vand.u32 %v1031, 4294901760
    %v1033 = vsub.f32 %v1031, %v1032
    %v1034 = vand.u32 %v1033, 4294901760
    %1035 = vmatmul.mubr.f32.gmra.mrb[0].mxu0 %v1034
    %v1036 = vpop.f32.mrb[0].mxu0
    %v1037 = vadd.f32 0.0, %v1036
    %v1038 = vpop.f32.mrb[0].mxu0
    %1039 = vdwg.mxu0
    %1040 = vmatprep.subr.mxu0 0.0
    %v1041 = vand.u32 %v465, 4294901760
    %v1042 = vsub.f32 %v465, %v1041
    %v1043 = vand.u32 %v1042, 4294901760
    %v1044 = vsub.f32 %v1042, %v1043
    %v1045 = vand.u32 %v1044, 4294901760
    %1046 = vmatpush1.msra.mxu0 %v1045
    %1047 = vmatprep.subr.mxu0 0.0
    %v1048 = vand.u32 %v472, 4294901760
    %v1049 = vsub.f32 %v472, %v1048
    %v1050 = vand.u32 %v1049, 4294901760
    %v1051 = vsub.f32 %v1049, %v1050
    %v1052 = vand.u32 %v1051, 4294901760
    %1053 = vmatpush1.msra.mxu0 %v1052
    %1054 = vmatprep.subr.mxu0 0.0
    %1055 = vmatpush1.msra.mxu0 0.0
    %1056 = vmatprep.subr.mxu0 0.0
    %1057 = vmatpush1.msra.mxu0 0.0
    %1058 = vmatprep.subr.mxu0 0.0
    %1059 = vmatpush1.msra.mxu0 0.0
    %1060 = vmatprep.subr.mxu0 0.0
    %1061 = vmatpush1.msra.mxu0 0.0
    %1062 = vmatprep.subr.mxu0 0.0
    %1063 = vmatpush1.msra.mxu0 0.0
    %1064 = vmatprep.subr.mxu0 0.0
    %1065 = vmatpush1.msra.mxu0 0.0
    %1066 = vmatprep.subr.mxu0 0.0
    %1067 = vmatpush1.msra.mxu0 0.0
    %1068 = vmatprep.subr.mxu0 0.0
    %1069 = vmatpush1.msra.mxu0 0.0
    %1070 = vmatprep.subr.mxu0 0.0
    %1071 = vmatpush1.msra.mxu0 0.0
    %1072 = vmatprep.subr.mxu0 0.0
    %1073 = vmatpush1.msra.mxu0 0.0
    %1074 = vmatprep.subr.mxu0 0.0
    %1075 = vmatpush1.msra.mxu0 0.0
    %1076 = vmatprep.subr.mxu0 0.0
    %1077 = vmatpush1.msra.mxu0 0.0
    %1078 = vmatprep.subr.mxu0 0.0
    %1079 = vmatpush1.msra.mxu0 0.0
    %1080 = vmatprep.subr.mxu0 0.0
    %1081 = vmatpush1.msra.mxu0 0.0
    %1082 = vmatprep.subr.mxu0 0.0
    %1083 = vmatpush1.msra.mxu0 0.0
    %1084 = vmatprep.subr.mxu0 0.0
    %1085 = vmatpush1.msra.mxu0 0.0
    %1086 = vmatprep.subr.mxu0 0.0
    %1087 = vmatpush1.msra.mxu0 0.0
    %1088 = vmatprep.subr.mxu0 0.0
    %1089 = vmatpush1.msra.mxu0 0.0
    %1090 = vmatprep.subr.mxu0 0.0
    %1091 = vmatpush1.msra.mxu0 0.0
    %1092 = vmatprep.subr.mxu0 0.0
    %1093 = vmatpush1.msra.mxu0 0.0
    %1094 = vmatprep.subr.mxu0 0.0
    %1095 = vmatpush1.msra.mxu0 0.0
    %1096 = vmatprep.subr.mxu0 0.0
    %1097 = vmatpush1.msra.mxu0 0.0
    %1098 = vmatprep.subr.mxu0 0.0
    %1099 = vmatpush1.msra.mxu0 0.0
    %1100 = vmatprep.subr.mxu0 0.0
    %1101 = vmatpush1.msra.mxu0 0.0
    %1102 = vmatprep.subr.mxu0 0.0
    %1103 = vmatpush1.msra.mxu0 0.0
    %1104 = vmatprep.subr.mxu0 0.0
    %1105 = vmatpush1.msra.mxu0 0.0
    %1106 = vmatprep.subr.mxu0 0.0
    %1107 = vmatpush1.msra.mxu0 0.0
    %1108 = vmatprep.subr.mxu0 0.0
    %1109 = vmatpush1.msra.mxu0 0.0
    %1110 = vmatprep.subr.mxu0 0.0
    %1111 = vmatpush1.msra.mxu0 0.0
    %1112 = vmatprep.subr.mxu0 0.0
    %1113 = vmatpush1.msra.mxu0 0.0
    %1114 = vmatprep.mubr.f32.mxu0 0.0
    %v1115 = vand.u32 %v961, 4294901760
    %1116 = vmatmul.mubr.f32.gmra.mrb[0].mxu0 %v1115
    %v1117 = vpop.f32.mrb[0].mxu0
    %v1118 = vadd.f32 %v1037, %v1117
    %v1119 = vpop.f32.mrb[0].mxu0
    %1120 = vdwg.mxu0
    %1121 = vmatprep.subr.mxu0 0.0
    %v1122 = vand.u32 %v465, 4294901760
    %v1123 = vsub.f32 %v465, %v1122
    %1124 = vmatpush1.msra.mxu0 %v1123
    %1125 = vmatprep.subr.mxu0 0.0
    %v1126 = vand.u32 %v472, 4294901760
    %v1127 = vsub.f32 %v472, %v1126
    %1128 = vmatpush1.msra.mxu0 %v1127
    %1129 = vmatprep.subr.mxu0 0.0
    %1130 = vmatpush1.msra.mxu0 0.0
    %1131 = vmatprep.subr.mxu0 0.0
    %1132 = vmatpush1.msra.mxu0 0.0
    %1133 = vmatprep.subr.mxu0 0.0
    %1134 = vmatpush1.msra.mxu0 0.0
    %1135 = vmatprep.subr.mxu0 0.0
    %1136 = vmatpush1.msra.mxu0 0.0
    %1137 = vmatprep.subr.mxu0 0.0
    %1138 = vmatpush1.msra.mxu0 0.0
    %1139 = vmatprep.subr.mxu0 0.0
    %1140 = vmatpush1.msra.mxu0 0.0
    %1141 = vmatprep.subr.mxu0 0.0
    %1142 = vmatpush1.msra.mxu0 0.0
    %1143 = vmatprep.subr.mxu0 0.0
    %1144 = vmatpush1.msra.mxu0 0.0
    %1145 = vmatprep.subr.mxu0 0.0
    %1146 = vmatpush1.msra.mxu0 0.0
    %1147 = vmatprep.subr.mxu0 0.0
    %1148 = vmatpush1.msra.mxu0 0.0
    %1149 = vmatprep.subr.mxu0 0.0
    %1150 = vmatpush1.msra.mxu0 0.0
    %1151 = vmatprep.subr.mxu0 0.0
    %1152 = vmatpush1.msra.mxu0 0.0
    %1153 = vmatprep.subr.mxu0 0.0
    %1154 = vmatpush1.msra.mxu0 0.0
    %1155 = vmatprep.subr.mxu0 0.0
    %1156 = vmatpush1.msra.mxu0 0.0
    %1157 = vmatprep.subr.mxu0 0.0
    %1158 = vmatpush1.msra.mxu0 0.0
    %1159 = vmatprep.subr.mxu0 0.0
    %1160 = vmatpush1.msra.mxu0 0.0
    %1161 = vmatprep.subr.mxu0 0.0
    %1162 = vmatpush1.msra.mxu0 0.0
    %1163 = vmatprep.subr.mxu0 0.0
    %1164 = vmatpush1.msra.mxu0 0.0
    %1165 = vmatprep.subr.mxu0 0.0
    %1166 = vmatpush1.msra.mxu0 0.0
    %1167 = vmatprep.subr.mxu0 0.0
    %1168 = vmatpush1.msra.mxu0 0.0
    %1169 = vmatprep.subr.mxu0 0.0
    %1170 = vmatpush1.msra.mxu0 0.0
    %1171 = vmatprep.subr.mxu0 0.0
    %1172 = vmatpush1.msra.mxu0 0.0
    %1173 = vmatprep.subr.mxu0 0.0
    %1174 = vmatpush1.msra.mxu0 0.0
    %1175 = vmatprep.subr.mxu0 0.0
    %1176 = vmatpush1.msra.mxu0 0.0
    %1177 = vmatprep.subr.mxu0 0.0
    %1178 = vmatpush1.msra.mxu0 0.0
    %1179 = vmatprep.subr.mxu0 0.0
    %1180 = vmatpush1.msra.mxu0 0.0
    %1181 = vmatprep.subr.mxu0 0.0
    %1182 = vmatpush1.msra.mxu0 0.0
    %1183 = vmatprep.subr.mxu0 0.0
    %1184 = vmatpush1.msra.mxu0 0.0
    %1185 = vmatprep.subr.mxu0 0.0
    %1186 = vmatpush1.msra.mxu0 0.0
    %1187 = vmatprep.subr.mxu0 0.0
    %1188 = vmatpush1.msra.mxu0 0.0
    %1189 = vmatprep.mubr.f32.mxu0 0.0
    %v1190 = vand.u32 %v961, 4294901760
    %v1191 = vsub.f32 %v961, %v1190
    %1192 = vmatmul.mubr.f32.gmra.mrb[0].mxu0 %v1191
    %v1193 = vpop.f32.mrb[0].mxu0
    %v1194 = vadd.f32 %v1118, %v1193
    %v1195 = vpop.f32.mrb[0].mxu0
    %1196 = vdwg.mxu0
    %1197 = vmatprep.subr.mxu0 0.0
    %v1198 = vand.u32 %v465, 4294901760
    %1199 = vmatpush1.msra.mxu0 %v1198
    %1200 = vmatprep.subr.mxu0 0.0
    %v1201 = vand.u32 %v472, 4294901760
    %1202 = vmatpush1.msra.mxu0 %v1201
    %1203 = vmatprep.subr.mxu0 0.0
    %1204 = vmatpush1.msra.mxu0 0.0
    %1205 = vmatprep.subr.mxu0 0.0
    %1206 = vmatpush1.msra.mxu0 0.0
    %1207 = vmatprep.subr.mxu0 0.0
    %1208 = vmatpush1.msra.mxu0 0.0
    %1209 = vmatprep.subr.mxu0 0.0
    %1210 = vmatpush1.msra.mxu0 0.0
    %1211 = vmatprep.subr.mxu0 0.0
    %1212 = vmatpush1.msra.mxu0 0.0
    %1213 = vmatprep.subr.mxu0 0.0
    %1214 = vmatpush1.msra.mxu0 0.0
    %1215 = vmatprep.subr.mxu0 0.0
    %1216 = vmatpush1.msra.mxu0 0.0
    %1217 = vmatprep.subr.mxu0 0.0
    %1218 = vmatpush1.msra.mxu0 0.0
    %1219 = vmatprep.subr.mxu0 0.0
    %1220 = vmatpush1.msra.mxu0 0.0
    %1221 = vmatprep.subr.mxu0 0.0
    %1222 = vmatpush1.msra.mxu0 0.0
    %1223 = vmatprep.subr.mxu0 0.0
    %1224 = vmatpush1.msra.mxu0 0.0
    %1225 = vmatprep.subr.mxu0 0.0
    %1226 = vmatpush1.msra.mxu0 0.0
    %1227 = vmatprep.subr.mxu0 0.0
    %1228 = vmatpush1.msra.mxu0 0.0
    %1229 = vmatprep.subr.mxu0 0.0
    %1230 = vmatpush1.msra.mxu0 0.0
    %1231 = vmatprep.subr.mxu0 0.0
    %1232 = vmatpush1.msra.mxu0 0.0
    %1233 = vmatprep.subr.mxu0 0.0
    %1234 = vmatpush1.msra.mxu0 0.0
    %1235 = vmatprep.subr.mxu0 0.0
    %1236 = vmatpush1.msra.mxu0 0.0
    %1237 = vmatprep.subr.mxu0 0.0
    %1238 = vmatpush1.msra.mxu0 0.0
    %1239 = vmatprep.subr.mxu0 0.0
    %1240 = vmatpush1.msra.mxu0 0.0
    %1241 = vmatprep.subr.mxu0 0.0
    %1242 = vmatpush1.msra.mxu0 0.0
    %1243 = vmatprep.subr.mxu0 0.0
    %1244 = vmatpush1.msra.mxu0 0.0
    %1245 = vmatprep.subr.mxu0 0.0
    %1246 = vmatpush1.msra.mxu0 0.0
    %1247 = vmatprep.subr.mxu0 0.0
    %1248 = vmatpush1.msra.mxu0 0.0
    %1249 = vmatprep.subr.mxu0 0.0
    %1250 = vmatpush1.msra.mxu0 0.0
    %1251 = vmatprep.subr.mxu0 0.0
    %1252 = vmatpush1.msra.mxu0 0.0
    %1253 = vmatprep.subr.mxu0 0.0
    %1254 = vmatpush1.msra.mxu0 0.0
    %1255 = vmatprep.subr.mxu0 0.0
    %1256 = vmatpush1.msra.mxu0 0.0
    %1257 = vmatprep.subr.mxu0 0.0
    %1258 = vmatpush1.msra.mxu0 0.0
    %1259 = vmatprep.subr.mxu0 0.0
    %1260 = vmatpush1.msra.mxu0 0.0
    %1261 = vmatprep.subr.mxu0 0.0
    %1262 = vmatpush1.msra.mxu0 0.0
    %1263 = vmatprep.mubr.f32.mxu0 0.0
    %v1264 = vand.u32 %v961, 4294901760
    %v1265 = vsub.f32 %v961, %v1264
    %v1266 = vand.u32 %v1265, 4294901760
    %1267 = vmatmul.mubr.f32.gmra.mrb[0].mxu0 %v1266
    %v1268 = vpop.f32.mrb[0].mxu0
    %v1269 = vadd.f32 %v1194, %v1268
    %v1270 = vpop.f32.mrb[0].mxu0
    %1271 = vdwg.mxu0
    %1272 = vmatprep.subr.mxu0 0.0
    %v1273 = vand.u32 %v465, 4294901760
    %v1274 = vsub.f32 %v465, %v1273
    %v1275 = vand.u32 %v1274, 4294901760
    %1276 = vmatpush1.msra.mxu0 %v1275
    %1277 = vmatprep.subr.mxu0 0.0
    %v1278 = vand.u32 %v472, 4294901760
    %v1279 = vsub.f32 %v472, %v1278
    %v1280 = vand.u32 %v1279, 4294901760
    %1281 = vmatpush1.msra.mxu0 %v1280
    %1282 = vmatprep.subr.mxu0 0.0
    %1283 = vmatpush1.msra.mxu0 0.0
    %1284 = vmatprep.subr.mxu0 0.0
    %1285 = vmatpush1.msra.mxu0 0.0
    %1286 = vmatprep.subr.mxu0 0.0
    %1287 = vmatpush1.msra.mxu0 0.0
    %1288 = vmatprep.subr.mxu0 0.0
    %1289 = vmatpush1.msra.mxu0 0.0
    %1290 = vmatprep.subr.mxu0 0.0
    %1291 = vmatpush1.msra.mxu0 0.0
    %1292 = vmatprep.subr.mxu0 0.0
    %1293 = vmatpush1.msra.mxu0 0.0
    %1294 = vmatprep.subr.mxu0 0.0
    %1295 = vmatpush1.msra.mxu0 0.0
    %1296 = vmatprep.subr.mxu0 0.0
    %1297 = vmatpush1.msra.mxu0 0.0
    %1298 = vmatprep.subr.mxu0 0.0
    %1299 = vmatpush1.msra.mxu0 0.0
    %1300 = vmatprep.subr.mxu0 0.0
    %1301 = vmatpush1.msra.mxu0 0.0
    %1302 = vmatprep.subr.mxu0 0.0
    %1303 = vmatpush1.msra.mxu0 0.0
    %1304 = vmatprep.subr.mxu0 0.0
    %1305 = vmatpush1.msra.mxu0 0.0
    %1306 = vmatprep.subr.mxu0 0.0
    %1307 = vmatpush1.msra.mxu0 0.0
    %1308 = vmatprep.subr.mxu0 0.0
    %1309 = vmatpush1.msra.mxu0 0.0
    %1310 = vmatprep.subr.mxu0 0.0
    %1311 = vmatpush1.msra.mxu0 0.0
    %1312 = vmatprep.subr.mxu0 0.0
    %1313 = vmatpush1.msra.mxu0 0.0
    %1314 = vmatprep.subr.mxu0 0.0
    %1315 = vmatpush1.msra.mxu0 0.0
    %1316 = vmatprep.subr.mxu0 0.0
    %1317 = vmatpush1.msra.mxu0 0.0
    %1318 = vmatprep.subr.mxu0 0.0
    %1319 = vmatpush1.msra.mxu0 0.0
    %1320 = vmatprep.subr.mxu0 0.0
    %1321 = vmatpush1.msra.mxu0 0.0
    %1322 = vmatprep.subr.mxu0 0.0
    %1323 = vmatpush1.msra.mxu0 0.0
    %1324 = vmatprep.subr.mxu0 0.0
    %1325 = vmatpush1.msra.mxu0 0.0
    %1326 = vmatprep.subr.mxu0 0.0
    %1327 = vmatpush1.msra.mxu0 0.0
    %1328 = vmatprep.subr.mxu0 0.0
    %1329 = vmatpush1.msra.mxu0 0.0
    %1330 = vmatprep.subr.mxu0 0.0
    %1331 = vmatpush1.msra.mxu0 0.0
    %1332 = vmatprep.subr.mxu0 0.0
    %1333 = vmatpush1.msra.mxu0 0.0
    %1334 = vmatprep.subr.mxu0 0.0
    %1335 = vmatpush1.msra.mxu0 0.0
    %1336 = vmatprep.subr.mxu0 0.0
    %1337 = vmatpush1.msra.mxu0 0.0
    %1338 = vmatprep.subr.mxu0 0.0
    %1339 = vmatpush1.msra.mxu0 0.0
    %1340 = vmatprep.subr.mxu0 0.0
    %1341 = vmatpush1.msra.mxu0 0.0
    %1342 = vmatprep.mubr.f32.mxu0 0.0
    %v1343 = vand.u32 %v961, 4294901760
    %1344 = vmatmul.mubr.f32.gmra.mrb[0].mxu0 %v1343
    %v1345 = vpop.f32.mrb[0].mxu0
    %v1346 = vadd.f32 %v1269, %v1345
    %v1347 = vpop.f32.mrb[0].mxu0
    %1348 = vdwg.mxu0
    %1349 = vmatprep.subr.mxu0 0.0
    %v1350 = vand.u32 %v465, 4294901760
    %1351 = vmatpush1.msra.mxu0 %v1350
    %1352 = vmatprep.subr.mxu0 0.0
    %v1353 = vand.u32 %v472, 4294901760
    %1354 = vmatpush1.msra.mxu0 %v1353
    %1355 = vmatprep.subr.mxu0 0.0
    %1356 = vmatpush1.msra.mxu0 0.0
    %1357 = vmatprep.subr.mxu0 0.0
    %1358 = vmatpush1.msra.mxu0 0.0
    %1359 = vmatprep.subr.mxu0 0.0
    %1360 = vmatpush1.msra.mxu0 0.0
    %1361 = vmatprep.subr.mxu0 0.0
    %1362 = vmatpush1.msra.mxu0 0.0
    %1363 = vmatprep.subr.mxu0 0.0
    %1364 = vmatpush1.msra.mxu0 0.0
    %1365 = vmatprep.subr.mxu0 0.0
    %1366 = vmatpush1.msra.mxu0 0.0
    %1367 = vmatprep.subr.mxu0 0.0
    %1368 = vmatpush1.msra.mxu0 0.0
    %1369 = vmatprep.subr.mxu0 0.0
    %1370 = vmatpush1.msra.mxu0 0.0
    %1371 = vmatprep.subr.mxu0 0.0
    %1372 = vmatpush1.msra.mxu0 0.0
    %1373 = vmatprep.subr.mxu0 0.0
    %1374 = vmatpush1.msra.mxu0 0.0
    %1375 = vmatprep.subr.mxu0 0.0
    %1376 = vmatpush1.msra.mxu0 0.0
    %1377 = vmatprep.subr.mxu0 0.0
    %1378 = vmatpush1.msra.mxu0 0.0
    %1379 = vmatprep.subr.mxu0 0.0
    %1380 = vmatpush1.msra.mxu0 0.0
    %1381 = vmatprep.subr.mxu0 0.0
    %1382 = vmatpush1.msra.mxu0 0.0
    %1383 = vmatprep.subr.mxu0 0.0
    %1384 = vmatpush1.msra.mxu0 0.0
    %1385 = vmatprep.subr.mxu0 0.0
    %1386 = vmatpush1.msra.mxu0 0.0
    %1387 = vmatprep.subr.mxu0 0.0
    %1388 = vmatpush1.msra.mxu0 0.0
    %1389 = vmatprep.subr.mxu0 0.0
    %1390 = vmatpush1.msra.mxu0 0.0
    %1391 = vmatprep.subr.mxu0 0.0
    %1392 = vmatpush1.msra.mxu0 0.0
    %1393 = vmatprep.subr.mxu0 0.0
    %1394 = vmatpush1.msra.mxu0 0.0
    %1395 = vmatprep.subr.mxu0 0.0
    %1396 = vmatpush1.msra.mxu0 0.0
    %1397 = vmatprep.subr.mxu0 0.0
    %1398 = vmatpush1.msra.mxu0 0.0
    %1399 = vmatprep.subr.mxu0 0.0
    %1400 = vmatpush1.msra.mxu0 0.0
    %1401 = vmatprep.subr.mxu0 0.0
    %1402 = vmatpush1.msra.mxu0 0.0
    %1403 = vmatprep.subr.mxu0 0.0
    %1404 = vmatpush1.msra.mxu0 0.0
    %1405 = vmatprep.subr.mxu0 0.0
    %1406 = vmatpush1.msra.mxu0 0.0
    %1407 = vmatprep.subr.mxu0 0.0
    %1408 = vmatpush1.msra.mxu0 0.0
    %1409 = vmatprep.subr.mxu0 0.0
    %1410 = vmatpush1.msra.mxu0 0.0
    %1411 = vmatprep.subr.mxu0 0.0
    %1412 = vmatpush1.msra.mxu0 0.0
    %1413 = vmatprep.subr.mxu0 0.0
    %1414 = vmatpush1.msra.mxu0 0.0
    %1415 = vmatprep.mubr.f32.mxu0 0.0
    %v1416 = vand.u32 %v961, 4294901760
    %1417 = vmatmul.mubr.f32.gmra.mrb[0].mxu0 %v1416
    %v1418 = vpop.f32.mrb[0].mxu0
    %v1419 = vadd.f32 %v1346, %v1418
    %v1420 = vpop.f32.mrb[0].mxu0
    %1421 = vdwg.mxu0
    %v1423 = vrot.slane %v1419, 7
    %v1425 = vadd.f32 %v460, %v1423
    %v1426 = vxor.u32 %v1425, 2147483648
    %v1427 = vmul.f32 %v1426, 1.442695
    %v1428 = vpow.pop %v1427
    %v1429 = vadd.f32 %v1428, 1.0
    %v1430 = vrcp.pop %v1429
    %v1431 = vmul.f32 1.0, %v1430
    %v1432 = vtanh.pop %v1425
    %v1434 = vrot.slane %v951, 7
    %v1436 = vmul.f32 %v1431, %v1434
    %1438 = vrot.lane.b32.xlu0 %v1432, 104
    %v1439 = vpop.permute.xlu0 %1438
    %v1441 = vmul.f32 %v1431, %v1439
    %1443 = vrot.lane.b32.xlu0 %v1441, 12
    %v1444 = vpop.permute.xlu0 %1443
    %v1446 = vadd.f32 %v1436, %v1444
    %v1447 = vtanh.pop %v1446
    %1449 = vrot.lane.b32.xlu0 %v1447, 24
    %v1450 = vpop.permute.xlu0 %1449
    %v1452 = vmul.f32 %v1431, %v1450
    %v1454 = vrot.slane %v1452, 1
    %1455 = vrot.lane.b32.xlu0 %v1454, 92
    %v1456 = vpop.permute.xlu0 %1455
    %v1457 = vsel %vm298, %v1456, 0
    %1459 = vmatprep.subr.mxu0 0.0
    %v1460 = vand.u32 %v465, 4294901760
    %1461 = vmatpush1.msra.mxu0 %v1460
    %1462 = vmatprep.subr.mxu0 0.0
    %v1463 = vand.u32 %v472, 4294901760
    %1464 = vmatpush1.msra.mxu0 %v1463
    %1465 = vmatprep.subr.mxu0 0.0
    %1466 = vmatpush1.msra.mxu0 0.0
    %1467 = vmatprep.subr.mxu0 0.0
    %1468 = vmatpush1.msra.mxu0 0.0
    %1469 = vmatprep.subr.mxu0 0.0
    %1470 = vmatpush1.msra.mxu0 0.0
    %1471 = vmatprep.subr.mxu0 0.0
    %1472 = vmatpush1.msra.mxu0 0.0
    %1473 = vmatprep.subr.mxu0 0.0
    %1474 = vmatpush1.msra.mxu0 0.0
    %1475 = vmatprep.subr.mxu0 0.0
    %1476 = vmatpush1.msra.mxu0 0.0
    %1477 = vmatprep.subr.mxu0 0.0
    %1478 = vmatpush1.msra.mxu0 0.0
    %1479 = vmatprep.subr.mxu0 0.0
    %1480 = vmatpush1.msra.mxu0 0.0
    %1481 = vmatprep.subr.mxu0 0.0
    %1482 = vmatpush1.msra.mxu0 0.0
    %1483 = vmatprep.subr.mxu0 0.0
    %1484 = vmatpush1.msra.mxu0 0.0
    %1485 = vmatprep.subr.mxu0 0.0
    %1486 = vmatpush1.msra.mxu0 0.0
    %1487 = vmatprep.subr.mxu0 0.0
    %1488 = vmatpush1.msra.mxu0 0.0
    %1489 = vmatprep.subr.mxu0 0.0
    %1490 = vmatpush1.msra.mxu0 0.0
    %1491 = vmatprep.subr.mxu0 0.0
    %1492 = vmatpush1.msra.mxu0 0.0
    %1493 = vmatprep.subr.mxu0 0.0
    %1494 = vmatpush1.msra.mxu0 0.0
    %1495 = vmatprep.subr.mxu0 0.0
    %1496 = vmatpush1.msra.mxu0 0.0
    %1497 = vmatprep.subr.mxu0 0.0
    %1498 = vmatpush1.msra.mxu0 0.0
    %1499 = vmatprep.subr.mxu0 0.0
    %1500 = vmatpush1.msra.mxu0 0.0
    %1501 = vmatprep.subr.mxu0 0.0
    %1502 = vmatpush1.msra.mxu0 0.0
    %1503 = vmatprep.subr.mxu0 0.0
    %1504 = vmatpush1.msra.mxu0 0.0
    %1505 = vmatprep.subr.mxu0 0.0
    %1506 = vmatpush1.msra.mxu0 0.0
    %1507 = vmatprep.subr.mxu0 0.0
    %1508 = vmatpush1.msra.mxu0 0.0
    %1509 = vmatprep.subr.mxu0 0.0
    %1510 = vmatpush1.msra.mxu0 0.0
    %1511 = vmatprep.subr.mxu0 0.0
    %1512 = vmatpush1.msra.mxu0 0.0
    %1513 = vmatprep.subr.mxu0 0.0
    %1514 = vmatpush1.msra.mxu0 0.0
    %1515 = vmatprep.subr.mxu0 0.0
    %1516 = vmatpush1.msra.mxu0 0.0
    %1517 = vmatprep.subr.mxu0 0.0
    %1518 = vmatpush1.msra.mxu0 0.0
    %1519 = vmatprep.subr.mxu0 0.0
    %1520 = vmatpush1.msra.mxu0 0.0
    %1521 = vmatprep.subr.mxu0 0.0
    %1522 = vmatpush1.msra.mxu0 0.0
    %1523 = vmatprep.subr.mxu0 0.0
    %1524 = vmatpush1.msra.mxu0 0.0
    %1525 = vmatprep.mubr.f32.mxu0 0.0
    %v1526 = vand.u32 %v1457, 4294901760
    %v1527 = vsub.f32 %v1457, %v1526
    %v1528 = vand.u32 %v1527, 4294901760
    %v1529 = vsub.f32 %v1527, %v1528
    %v1530 = vand.u32 %v1529, 4294901760
    %1531 = vmatmul.mubr.f32.gmra.mrb[0].mxu0 %v1530
    %v1532 = vpop.f32.mrb[0].mxu0
    %v1533 = vadd.f32 0.0, %v1532
    %v1534 = vpop.f32.mrb[0].mxu0
    %1535 = vdwg.mxu0
    %1536 = vmatprep.subr.mxu0 0.0
    %v1537 = vand.u32 %v465, 4294901760
    %v1538 = vsub.f32 %v465, %v1537
    %v1539 = vand.u32 %v1538, 4294901760
    %v1540 = vsub.f32 %v1538, %v1539
    %v1541 = vand.u32 %v1540, 4294901760
    %1542 = vmatpush1.msra.mxu0 %v1541
    %1543 = vmatprep.subr.mxu0 0.0
    %v1544 = vand.u32 %v472, 4294901760
    %v1545 = vsub.f32 %v472, %v1544
    %v1546 = vand.u32 %v1545, 4294901760
    %v1547 = vsub.f32 %v1545, %v1546
    %v1548 = vand.u32 %v1547, 4294901760
    %1549 = vmatpush1.msra.mxu0 %v1548
    %1550 = vmatprep.subr.mxu0 0.0
    %1551 = vmatpush1.msra.mxu0 0.0
    %1552 = vmatprep.subr.mxu0 0.0
    %1553 = vmatpush1.msra.mxu0 0.0
    %1554 = vmatprep.subr.mxu0 0.0
    %1555 = vmatpush1.msra.mxu0 0.0
    %1556 = vmatprep.subr.mxu0 0.0
    %1557 = vmatpush1.msra.mxu0 0.0
    %1558 = vmatprep.subr.mxu0 0.0
    %1559 = vmatpush1.msra.mxu0 0.0
    %1560 = vmatprep.subr.mxu0 0.0
    %1561 = vmatpush1.msra.mxu0 0.0
    %1562 = vmatprep.subr.mxu0 0.0
    %1563 = vmatpush1.msra.mxu0 0.0
    %1564 = vmatprep.subr.mxu0 0.0
    %1565 = vmatpush1.msra.mxu0 0.0
    %1566 = vmatprep.subr.mxu0 0.0
    %1567 = vmatpush1.msra.mxu0 0.0
    %1568 = vmatprep.subr.mxu0 0.0
    %1569 = vmatpush1.msra.mxu0 0.0
    %1570 = vmatprep.subr.mxu0 0.0
    %1571 = vmatpush1.msra.mxu0 0.0
    %1572 = vmatprep.subr.mxu0 0.0
    %1573 = vmatpush1.msra.mxu0 0.0
    %1574 = vmatprep.subr.mxu0 0.0
    %1575 = vmatpush1.msra.mxu0 0.0
    %1576 = vmatprep.subr.mxu0 0.0
    %1577 = vmatpush1.msra.mxu0 0.0
    %1578 = vmatprep.subr.mxu0 0.0
    %1579 = vmatpush1.msra.mxu0 0.0
    %1580 = vmatprep.subr.mxu0 0.0
    %1581 = vmatpush1.msra.mxu0 0.0
    %1582 = vmatprep.subr.mxu0 0.0
    %1583 = vmatpush1.msra.mxu0 0.0
    %1584 = vmatprep.subr.mxu0 0.0
    %1585 = vmatpush1.msra.mxu0 0.0
    %1586 = vmatprep.subr.mxu0 0.0
    %1587 = vmatpush1.msra.mxu0 0.0
    %1588 = vmatprep.subr.mxu0 0.0
    %1589 = vmatpush1.msra.mxu0 0.0
    %1590 = vmatprep.subr.mxu0 0.0
    %1591 = vmatpush1.msra.mxu0 0.0
    %1592 = vmatprep.subr.mxu0 0.0
    %1593 = vmatpush1.msra.mxu0 0.0
    %1594 = vmatprep.subr.mxu0 0.0
    %1595 = vmatpush1.msra.mxu0 0.0
    %1596 = vmatprep.subr.mxu0 0.0
    %1597 = vmatpush1.msra.mxu0 0.0
    %1598 = vmatprep.subr.mxu0 0.0
    %1599 = vmatpush1.msra.mxu0 0.0
    %1600 = vmatprep.subr.mxu0 0.0
    %1601 = vmatpush1.msra.mxu0 0.0
    %1602 = vmatprep.subr.mxu0 0.0
    %1603 = vmatpush1.msra.mxu0 0.0
    %1604 = vmatprep.subr.mxu0 0.0
    %1605 = vmatpush1.msra.mxu0 0.0
    %1606 = vmatprep.subr.mxu0 0.0
    %1607 = vmatpush1.msra.mxu0 0.0
    %1608 = vmatprep.subr.mxu0 0.0
    %1609 = vmatpush1.msra.mxu0 0.0
    %1610 = vmatprep.mubr.f32.mxu0 0.0
    %v1611 = vand.u32 %v1457, 4294901760
    %1612 = vmatmul.mubr.f32.gmra.mrb[0].mxu0 %v1611
    %v1613 = vpop.f32.mrb[0].mxu0
    %v1614 = vadd.f32 %v1533, %v1613
    %v1615 = vpop.f32.mrb[0].mxu0
    %1616 = vdwg.mxu0
    %1617 = vmatprep.subr.mxu0 0.0
    %v1618 = vand.u32 %v465, 4294901760
    %v1619 = vsub.f32 %v465, %v1618
    %1620 = vmatpush1.msra.mxu0 %v1619
    %1621 = vmatprep.subr.mxu0 0.0
    %v1622 = vand.u32 %v472, 4294901760
    %v1623 = vsub.f32 %v472, %v1622
    %1624 = vmatpush1.msra.mxu0 %v1623
    %1625 = vmatprep.subr.mxu0 0.0
    %1626 = vmatpush1.msra.mxu0 0.0
    %1627 = vmatprep.subr.mxu0 0.0
    %1628 = vmatpush1.msra.mxu0 0.0
    %1629 = vmatprep.subr.mxu0 0.0
    %1630 = vmatpush1.msra.mxu0 0.0
    %1631 = vmatprep.subr.mxu0 0.0
    %1632 = vmatpush1.msra.mxu0 0.0
    %1633 = vmatprep.subr.mxu0 0.0
    %1634 = vmatpush1.msra.mxu0 0.0
    %1635 = vmatprep.subr.mxu0 0.0
    %1636 = vmatpush1.msra.mxu0 0.0
    %1637 = vmatprep.subr.mxu0 0.0
    %1638 = vmatpush1.msra.mxu0 0.0
    %1639 = vmatprep.subr.mxu0 0.0
    %1640 = vmatpush1.msra.mxu0 0.0
    %1641 = vmatprep.subr.mxu0 0.0
    %1642 = vmatpush1.msra.mxu0 0.0
    %1643 = vmatprep.subr.mxu0 0.0
    %1644 = vmatpush1.msra.mxu0 0.0
    %1645 = vmatprep.subr.mxu0 0.0
    %1646 = vmatpush1.msra.mxu0 0.0
    %1647 = vmatprep.subr.mxu0 0.0
    %1648 = vmatpush1.msra.mxu0 0.0
    %1649 = vmatprep.subr.mxu0 0.0
    %1650 = vmatpush1.msra.mxu0 0.0
    %1651 = vmatprep.subr.mxu0 0.0
    %1652 = vmatpush1.msra.mxu0 0.0
    %1653 = vmatprep.subr.mxu0 0.0
    %1654 = vmatpush1.msra.mxu0 0.0
    %1655 = vmatprep.subr.mxu0 0.0
    %1656 = vmatpush1.msra.mxu0 0.0
    %1657 = vmatprep.subr.mxu0 0.0
    %1658 = vmatpush1.msra.mxu0 0.0
    %1659 = vmatprep.subr.mxu0 0.0
    %1660 = vmatpush1.msra.mxu0 0.0
    %1661 = vmatprep.subr.mxu0 0.0
    %1662 = vmatpush1.msra.mxu0 0.0
    %1663 = vmatprep.subr.mxu0 0.0
    %1664 = vmatpush1.msra.mxu0 0.0
    %1665 = vmatprep.subr.mxu0 0.0
    %1666 = vmatpush1.msra.mxu0 0.0
    %1667 = vmatprep.subr.mxu0 0.0
    %1668 = vmatpush1.msra.mxu0 0.0
    %1669 = vmatprep.subr.mxu0 0.0
    %1670 = vmatpush1.msra.mxu0 0.0
    %1671 = vmatprep.subr.mxu0 0.0
    %1672 = vmatpush1.msra.mxu0 0.0
    %1673 = vmatprep.subr.mxu0 0.0
    %1674 = vmatpush1.msra.mxu0 0.0
    %1675 = vmatprep.subr.mxu0 0.0
    %1676 = vmatpush1.msra.mxu0 0.0
    %1677 = vmatprep.subr.mxu0 0.0
    %1678 = vmatpush1.msra.mxu0 0.0
    %1679 = vmatprep.subr.mxu0 0.0
    %1680 = vmatpush1.msra.mxu0 0.0
    %1681 = vmatprep.subr.mxu0 0.0
    %1682 = vmatpush1.msra.mxu0 0.0
    %1683 = vmatprep.subr.mxu0 0.0
    %1684 = vmatpush1.msra.mxu0 0.0
    %1685 = vmatprep.mubr.f32.mxu0 0.0
    %v1686 = vand.u32 %v1457, 4294901760
    %v1687 = vsub.f32 %v1457, %v1686
    %1688 = vmatmul.mubr.f32.gmra.mrb[0].mxu0 %v1687
    %v1689 = vpop.f32.mrb[0].mxu0
    %v1690 = vadd.f32 %v1614, %v1689
    %v1691 = vpop.f32.mrb[0].mxu0
    %1692 = vdwg.mxu0
    %1693 = vmatprep.subr.mxu0 0.0
    %v1694 = vand.u32 %v465, 4294901760
    %1695 = vmatpush1.msra.mxu0 %v1694
    %1696 = vmatprep.subr.mxu0 0.0
    %v1697 = vand.u32 %v472, 4294901760
    %1698 = vmatpush1.msra.mxu0 %v1697
    %1699 = vmatprep.subr.mxu0 0.0
    %1700 = vmatpush1.msra.mxu0 0.0
    %1701 = vmatprep.subr.mxu0 0.0
    %1702 = vmatpush1.msra.mxu0 0.0
    %1703 = vmatprep.subr.mxu0 0.0
    %1704 = vmatpush1.msra.mxu0 0.0
    %1705 = vmatprep.subr.mxu0 0.0
    %1706 = vmatpush1.msra.mxu0 0.0
    %1707 = vmatprep.subr.mxu0 0.0
    %1708 = vmatpush1.msra.mxu0 0.0
    %1709 = vmatprep.subr.mxu0 0.0
    %1710 = vmatpush1.msra.mxu0 0.0
    %1711 = vmatprep.subr.mxu0 0.0
    %1712 = vmatpush1.msra.mxu0 0.0
    %1713 = vmatprep.subr.mxu0 0.0
    %1714 = vmatpush1.msra.mxu0 0.0
    %1715 = vmatprep.subr.mxu0 0.0
    %1716 = vmatpush1.msra.mxu0 0.0
    %1717 = vmatprep.subr.mxu0 0.0
    %1718 = vmatpush1.msra.mxu0 0.0
    %1719 = vmatprep.subr.mxu0 0.0
    %1720 = vmatpush1.msra.mxu0 0.0
    %1721 = vmatprep.subr.mxu0 0.0
    %1722 = vmatpush1.msra.mxu0 0.0
    %1723 = vmatprep.subr.mxu0 0.0
    %1724 = vmatpush1.msra.mxu0 0.0
    %1725 = vmatprep.subr.mxu0 0.0
    %1726 = vmatpush1.msra.mxu0 0.0
    %1727 = vmatprep.subr.mxu0 0.0
    %1728 = vmatpush1.msra.mxu0 0.0
    %1729 = vmatprep.subr.mxu0 0.0
    %1730 = vmatpush1.msra.mxu0 0.0
    %1731 = vmatprep.subr.mxu0 0.0
    %1732 = vmatpush1.msra.mxu0 0.0
    %1733 = vmatprep.subr.mxu0 0.0
    %1734 = vmatpush1.msra.mxu0 0.0
    %1735 = vmatprep.subr.mxu0 0.0
    %1736 = vmatpush1.msra.mxu0 0.0
    %1737 = vmatprep.subr.mxu0 0.0
    %1738 = vmatpush1.msra.mxu0 0.0
    %1739 = vmatprep.subr.mxu0 0.0
    %1740 = vmatpush1.msra.mxu0 0.0
    %1741 = vmatprep.subr.mxu0 0.0
    %1742 = vmatpush1.msra.mxu0 0.0
    %1743 = vmatprep.subr.mxu0 0.0
    %1744 = vmatpush1.msra.mxu0 0.0
    %1745 = vmatprep.subr.mxu0 0.0
    %1746 = vmatpush1.msra.mxu0 0.0
    %1747 = vmatprep.subr.mxu0 0.0
    %1748 = vmatpush1.msra.mxu0 0.0
    %1749 = vmatprep.subr.mxu0 0.0
    %1750 = vmatpush1.msra.mxu0 0.0
    %1751 = vmatprep.subr.mxu0 0.0
    %1752 = vmatpush1.msra.mxu0 0.0
    %1753 = vmatprep.subr.mxu0 0.0
    %1754 = vmatpush1.msra.mxu0 0.0
    %1755 = vmatprep.subr.mxu0 0.0
    %1756 = vmatpush1.msra.mxu0 0.0
    %1757 = vmatprep.subr.mxu0 0.0
    %1758 = vmatpush1.msra.mxu0 0.0
    %1759 = vmatprep.mubr.f32.mxu0 0.0
    %v1760 = vand.u32 %v1457, 4294901760
    %v1761 = vsub.f32 %v1457, %v1760
    %v1762 = vand.u32 %v1761, 4294901760
    %1763 = vmatmul.mubr.f32.gmra.mrb[0].mxu0 %v1762
    %v1764 = vpop.f32.mrb[0].mxu0
    %v1765 = vadd.f32 %v1690, %v1764
    %v1766 = vpop.f32.mrb[0].mxu0
    %1767 = vdwg.mxu0
    %1768 = vmatprep.subr.mxu0 0.0
    %v1769 = vand.u32 %v465, 4294901760
    %v1770 = vsub.f32 %v465, %v1769
    %v1771 = vand.u32 %v1770, 4294901760
    %1772 = vmatpush1.msra.mxu0 %v1771
    %1773 = vmatprep.subr.mxu0 0.0
    %v1774 = vand.u32 %v472, 4294901760
    %v1775 = vsub.f32 %v472, %v1774
    %v1776 = vand.u32 %v1775, 4294901760
    %1777 = vmatpush1.msra.mxu0 %v1776
    %1778 = vmatprep.subr.mxu0 0.0
    %1779 = vmatpush1.msra.mxu0 0.0
    %1780 = vmatprep.subr.mxu0 0.0
    %1781 = vmatpush1.msra.mxu0 0.0
    %1782 = vmatprep.subr.mxu0 0.0
    %1783 = vmatpush1.msra.mxu0 0.0
    %1784 = vmatprep.subr.mxu0 0.0
    %1785 = vmatpush1.msra.mxu0 0.0
    %1786 = vmatprep.subr.mxu0 0.0
    %1787 = vmatpush1.msra.mxu0 0.0
    %1788 = vmatprep.subr.mxu0 0.0
    %1789 = vmatpush1.msra.mxu0 0.0
    %1790 = vmatprep.subr.mxu0 0.0
    %1791 = vmatpush1.msra.mxu0 0.0
    %1792 = vmatprep.subr.mxu0 0.0
    %1793 = vmatpush1.msra.mxu0 0.0
    %1794 = vmatprep.subr.mxu0 0.0
    %1795 = vmatpush1.msra.mxu0 0.0
    %1796 = vmatprep.subr.mxu0 0.0
    %1797 = vmatpush1.msra.mxu0 0.0
    %1798 = vmatprep.subr.mxu0 0.0
    %1799 = vmatpush1.msra.mxu0 0.0
    %1800 = vmatprep.subr.mxu0 0.0
    %1801 = vmatpush1.msra.mxu0 0.0
    %1802 = vmatprep.subr.mxu0 0.0
    %1803 = vmatpush1.msra.mxu0 0.0
    %1804 = vmatprep.subr.mxu0 0.0
    %1805 = vmatpush1.msra.mxu0 0.0
    %1806 = vmatprep.subr.mxu0 0.0
    %1807 = vmatpush1.msra.mxu0 0.0
    %1808 = vmatprep.subr.mxu0 0.0
    %1809 = vmatpush1.msra.mxu0 0.0
    %1810 = vmatprep.subr.mxu0 0.0
    %1811 = vmatpush1.msra.mxu0 0.0
    %1812 = vmatprep.subr.mxu0 0.0
    %1813 = vmatpush1.msra.mxu0 0.0
    %1814 = vmatprep.subr.mxu0 0.0
    %1815 = vmatpush1.msra.mxu0 0.0
    %1816 = vmatprep.subr.mxu0 0.0
    %1817 = vmatpush1.msra.mxu0 0.0
    %1818 = vmatprep.subr.mxu0 0.0
    %1819 = vmatpush1.msra.mxu0 0.0
    %1820 = vmatprep.subr.mxu0 0.0
    %1821 = vmatpush1.msra.mxu0 0.0
    %1822 = vmatprep.subr.mxu0 0.0
    %1823 = vmatpush1.msra.mxu0 0.0
    %1824 = vmatprep.subr.mxu0 0.0
    %1825 = vmatpush1.msra.mxu0 0.0
    %1826 = vmatprep.subr.mxu0 0.0
    %1827 = vmatpush1.msra.mxu0 0.0
    %1828 = vmatprep.subr.mxu0 0.0
    %1829 = vmatpush1.msra.mxu0 0.0
    %1830 = vmatprep.subr.mxu0 0.0
    %1831 = vmatpush1.msra.mxu0 0.0
    %1832 = vmatprep.subr.mxu0 0.0
    %1833 = vmatpush1.msra.mxu0 0.0
    %1834 = vmatprep.subr.mxu0 0.0
    %1835 = vmatpush1.msra.mxu0 0.0
    %1836 = vmatprep.subr.mxu0 0.0
    %1837 = vmatpush1.msra.mxu0 0.0
    %1838 = vmatprep.mubr.f32.mxu0 0.0
    %v1839 = vand.u32 %v1457, 4294901760
    %1840 = vmatmul.mubr.f32.gmra.mrb[0].mxu0 %v1839
    %v1841 = vpop.f32.mrb[0].mxu0
    %v1842 = vadd.f32 %v1765, %v1841
    %v1843 = vpop.f32.mrb[0].mxu0
    %1844 = vdwg.mxu0
    %1845 = vmatprep.subr.mxu0 0.0
    %v1846 = vand.u32 %v465, 4294901760
    %1847 = vmatpush1.msra.mxu0 %v1846
    %1848 = vmatprep.subr.mxu0 0.0
    %v1849 = vand.u32 %v472, 4294901760
    %1850 = vmatpush1.msra.mxu0 %v1849
    %1851 = vmatprep.subr.mxu0 0.0
    %1852 = vmatpush1.msra.mxu0 0.0
    %1853 = vmatprep.subr.mxu0 0.0
    %1854 = vmatpush1.msra.mxu0 0.0
    %1855 = vmatprep.subr.mxu0 0.0
    %1856 = vmatpush1.msra.mxu0 0.0
    %1857 = vmatprep.subr.mxu0 0.0
    %1858 = vmatpush1.msra.mxu0 0.0
    %1859 = vmatprep.subr.mxu0 0.0
    %1860 = vmatpush1.msra.mxu0 0.0
    %1861 = vmatprep.subr.mxu0 0.0
    %1862 = vmatpush1.msra.mxu0 0.0
    %1863 = vmatprep.subr.mxu0 0.0
    %1864 = vmatpush1.msra.mxu0 0.0
    %1865 = vmatprep.subr.mxu0 0.0
    %1866 = vmatpush1.msra.mxu0 0.0
    %1867 = vmatprep.subr.mxu0 0.0
    %1868 = vmatpush1.msra.mxu0 0.0
    %1869 = vmatprep.subr.mxu0 0.0
    %1870 = vmatpush1.msra.mxu0 0.0
    %1871 = vmatprep.subr.mxu0 0.0
    %1872 = vmatpush1.msra.mxu0 0.0
    %1873 = vmatprep.subr.mxu0 0.0
    %1874 = vmatpush1.msra.mxu0 0.0
    %1875 = vmatprep.subr.mxu0 0.0
    %1876 = vmatpush1.msra.mxu0 0.0
    %1877 = vmatprep.subr.mxu0 0.0
    %1878 = vmatpush1.msra.mxu0 0.0
    %1879 = vmatprep.subr.mxu0 0.0
    %1880 = vmatpush1.msra.mxu0 0.0
    %1881 = vmatprep.subr.mxu0 0.0
    %1882 = vmatpush1.msra.mxu0 0.0
    %1883 = vmatprep.subr.mxu0 0.0
    %1884 = vmatpush1.msra.mxu0 0.0
    %1885 = vmatprep.subr.mxu0 0.0
    %1886 = vmatpush1.msra.mxu0 0.0
    %1887 = vmatprep.subr.mxu0 0.0
    %1888 = vmatpush1.msra.mxu0 0.0
    %1889 = vmatprep.subr.mxu0 0.0
    %1890 = vmatpush1.msra.mxu0 0.0
    %1891 = vmatprep.subr.mxu0 0.0
    %1892 = vmatpush1.msra.mxu0 0.0
    %1893 = vmatprep.subr.mxu0 0.0
    %1894 = vmatpush1.msra.mxu0 0.0
    %1895 = vmatprep.subr.mxu0 0.0
    %1896 = vmatpush1.msra.mxu0 0.0
    %1897 = vmatprep.subr.mxu0 0.0
    %1898 = vmatpush1.msra.mxu0 0.0
    %1899 = vmatprep.subr.mxu0 0.0
    %1900 = vmatpush1.msra.mxu0 0.0
    %1901 = vmatprep.subr.mxu0 0.0
    %1902 = vmatpush1.msra.mxu0 0.0
    %1903 = vmatprep.subr.mxu0 0.0
    %1904 = vmatpush1.msra.mxu0 0.0
    %1905 = vmatprep.subr.mxu0 0.0
    %1906 = vmatpush1.msra.mxu0 0.0
    %1907 = vmatprep.subr.mxu0 0.0
    %1908 = vmatpush1.msra.mxu0 0.0
    %1909 = vmatprep.subr.mxu0 0.0
    %1910 = vmatpush1.msra.mxu0 0.0
    %1911 = vmatprep.mubr.f32.mxu0 0.0
    %v1912 = vand.u32 %v1457, 4294901760
    %1913 = vmatmul.mubr.f32.gmra.mrb[0].mxu0 %v1912
    %v1914 = vpop.f32.mrb[0].mxu0
    %v1915 = vadd.f32 %v1842, %v1914
    %v1916 = vpop.f32.mrb[0].mxu0
    %1917 = vdwg.mxu0
    %v1919 = vrot.slane %v1915, 6
    %v1921 = vadd.f32 %v460, %v1919
    %v1922 = vxor.u32 %v1921, 2147483648
    %v1923 = vmul.f32 %v1922, 1.442695
    %v1924 = vpow.pop %v1923
    %v1925 = vadd.f32 %v1924, 1.0
    %v1926 = vrcp.pop %v1925
    %v1927 = vmul.f32 1.0, %v1926
    %v1928 = vtanh.pop %v1921
    %v1930 = vrot.slane %v1446, 7
    %v1932 = vmul.f32 %v1927, %v1930
    %1934 = vrot.lane.b32.xlu0 %v1928, 104
    %v1935 = vpop.permute.xlu0 %1934
    %v1937 = vmul.f32 %v1927, %v1935
    %1939 = vrot.lane.b32.xlu0 %v1937, 12
    %v1940 = vpop.permute.xlu0 %1939
    %v1942 = vadd.f32 %v1932, %v1940
    %v1943 = vtanh.pop %v1942
    %1945 = vrot.lane.b32.xlu0 %v1943, 24
    %v1946 = vpop.permute.xlu0 %1945
    %v1948 = vmul.f32 %v1927, %v1946
    %v1950 = vrot.slane %v1948, 2
    %1951 = vrot.lane.b32.xlu0 %v1950, 92
    %v1952 = vpop.permute.xlu0 %1951
    %v1953 = vsel %vm298, %v1952, 0
    %1955 = vmatprep.subr.mxu0 0.0
    %v1956 = vand.u32 %v465, 4294901760
    %1957 = vmatpush1.msra.mxu0 %v1956
    %1958 = vmatprep.subr.mxu0 0.0
    %v1959 = vand.u32 %v472, 4294901760
    %1960 = vmatpush1.msra.mxu0 %v1959
    %1961 = vmatprep.subr.mxu0 0.0
    %1962 = vmatpush1.msra.mxu0 0.0
    %1963 = vmatprep.subr.mxu0 0.0
    %1964 = vmatpush1.msra.mxu0 0.0
    %1965 = vmatprep.subr.mxu0 0.0
    %1966 = vmatpush1.msra.mxu0 0.0
    %1967 = vmatprep.subr.mxu0 0.0
    %1968 = vmatpush1.msra.mxu0 0.0
    %1969 = vmatprep.subr.mxu0 0.0
    %1970 = vmatpush1.msra.mxu0 0.0
    %1971 = vmatprep.subr.mxu0 0.0
    %1972 = vmatpush1.msra.mxu0 0.0
    %1973 = vmatprep.subr.mxu0 0.0
    %1974 = vmatpush1.msra.mxu0 0.0
    %1975 = vmatprep.subr.mxu0 0.0
    %1976 = vmatpush1.msra.mxu0 0.0
    %1977 = vmatprep.subr.mxu0 0.0
    %1978 = vmatpush1.msra.mxu0 0.0
    %1979 = vmatprep.subr.mxu0 0.0
    %1980 = vmatpush1.msra.mxu0 0.0
    %1981 = vmatprep.subr.mxu0 0.0
    %1982 = vmatpush1.msra.mxu0 0.0
    %1983 = vmatprep.subr.mxu0 0.0
    %1984 = vmatpush1.msra.mxu0 0.0
    %1985 = vmatprep.subr.mxu0 0.0
    %1986 = vmatpush1.msra.mxu0 0.0
    %1987 = vmatprep.subr.mxu0 0.0
    %1988 = vmatpush1.msra.mxu0 0.0
    %1989 = vmatprep.subr.mxu0 0.0
    %1990 = vmatpush1.msra.mxu0 0.0
    %1991 = vmatprep.subr.mxu0 0.0
    %1992 = vmatpush1.msra.mxu0 0.0
    %1993 = vmatprep.subr.mxu0 0.0
    %1994 = vmatpush1.msra.mxu0 0.0
    %1995 = vmatprep.subr.mxu0 0.0
    %1996 = vmatpush1.msra.mxu0 0.0
    %1997 = vmatprep.subr.mxu0 0.0
    %1998 = vmatpush1.msra.mxu0 0.0
    %1999 = vmatprep.subr.mxu0 0.0
    %2000 = vmatpush1.msra.mxu0 0.0
    %2001 = vmatprep.subr.mxu0 0.0
    %2002 = vmatpush1.msra.mxu0 0.0
    %2003 = vmatprep.subr.mxu0 0.0
    %2004 = vmatpush1.msra.mxu0 0.0
    %2005 = vmatprep.subr.mxu0 0.0
    %2006 = vmatpush1.msra.mxu0 0.0
    %2007 = vmatprep.subr.mxu0 0.0
    %2008 = vmatpush1.msra.mxu0 0.0
    %2009 = vmatprep.subr.mxu0 0.0
    %2010 = vmatpush1.msra.mxu0 0.0
    %2011 = vmatprep.subr.mxu0 0.0
    %2012 = vmatpush1.msra.mxu0 0.0
    %2013 = vmatprep.subr.mxu0 0.0
    %2014 = vmatpush1.msra.mxu0 0.0
    %2015 = vmatprep.subr.mxu0 0.0
    %2016 = vmatpush1.msra.mxu0 0.0
    %2017 = vmatprep.subr.mxu0 0.0
    %2018 = vmatpush1.msra.mxu0 0.0
    %2019 = vmatprep.subr.mxu0 0.0
    %2020 = vmatpush1.msra.mxu0 0.0
    %2021 = vmatprep.mubr.f32.mxu0 0.0
    %v2022 = vand.u32 %v1953, 4294901760
    %v2023 = vsub.f32 %v1953, %v2022
    %v2024 = vand.u32 %v2023, 4294901760
    %v2025 = vsub.f32 %v2023, %v2024
    %v2026 = vand.u32 %v2025, 4294901760
    %2027 = vmatmul.mubr.f32.gmra.mrb[0].mxu0 %v2026
    %v2028 = vpop.f32.mrb[0].mxu0
    %v2029 = vadd.f32 0.0, %v2028
    %v2030 = vpop.f32.mrb[0].mxu0
    %2031 = vdwg.mxu0
    %2032 = vmatprep.subr.mxu0 0.0
    %v2033 = vand.u32 %v465, 4294901760
    %v2034 = vsub.f32 %v465, %v2033
    %v2035 = vand.u32 %v2034, 4294901760
    %v2036 = vsub.f32 %v2034, %v2035
    %v2037 = vand.u32 %v2036, 4294901760
    %2038 = vmatpush1.msra.mxu0 %v2037
    %2039 = vmatprep.subr.mxu0 0.0
    %v2040 = vand.u32 %v472, 4294901760
    %v2041 = vsub.f32 %v472, %v2040
    %v2042 = vand.u32 %v2041, 4294901760
    %v2043 = vsub.f32 %v2041, %v2042
    %v2044 = vand.u32 %v2043, 4294901760
    %2045 = vmatpush1.msra.mxu0 %v2044
    %2046 = vmatprep.subr.mxu0 0.0
    %2047 = vmatpush1.msra.mxu0 0.0
    %2048 = vmatprep.subr.mxu0 0.0
    %2049 = vmatpush1.msra.mxu0 0.0
    %2050 = vmatprep.subr.mxu0 0.0
    %2051 = vmatpush1.msra.mxu0 0.0
    %2052 = vmatprep.subr.mxu0 0.0
    %2053 = vmatpush1.msra.mxu0 0.0
    %2054 = vmatprep.subr.mxu0 0.0
    %2055 = vmatpush1.msra.mxu0 0.0
    %2056 = vmatprep.subr.mxu0 0.0
    %2057 = vmatpush1.msra.mxu0 0.0
    %2058 = vmatprep.subr.mxu0 0.0
    %2059 = vmatpush1.msra.mxu0 0.0
    %2060 = vmatprep.subr.mxu0 0.0
    %2061 = vmatpush1.msra.mxu0 0.0
    %2062 = vmatprep.subr.mxu0 0.0
    %2063 = vmatpush1.msra.mxu0 0.0
    %2064 = vmatprep.subr.mxu0 0.0
    %2065 = vmatpush1.msra.mxu0 0.0
    %2066 = vmatprep.subr.mxu0 0.0
    %2067 = vmatpush1.msra.mxu0 0.0
    %2068 = vmatprep.subr.mxu0 0.0
    %2069 = vmatpush1.msra.mxu0 0.0
    %2070 = vmatprep.subr.mxu0 0.0
    %2071 = vmatpush1.msra.mxu0 0.0
    %2072 = vmatprep.subr.mxu0 0.0
    %2073 = vmatpush1.msra.mxu0 0.0
    %2074 = vmatprep.subr.mxu0 0.0
    %2075 = vmatpush1.msra.mxu0 0.0
    %2076 = vmatprep.subr.mxu0 0.0
    %2077 = vmatpush1.msra.mxu0 0.0
    %2078 = vmatprep.subr.mxu0 0.0
    %2079 = vmatpush1.msra.mxu0 0.0
    %2080 = vmatprep.subr.mxu0 0.0
    %2081 = vmatpush1.msra.mxu0 0.0
    %2082 = vmatprep.subr.mxu0 0.0
    %2083 = vmatpush1.msra.mxu0 0.0
    %2084 = vmatprep.subr.mxu0 0.0
    %2085 = vmatpush1.msra.mxu0 0.0
    %2086 = vmatprep.subr.mxu0 0.0
    %2087 = vmatpush1.msra.mxu0 0.0
    %2088 = vmatprep.subr.mxu0 0.0
    %2089 = vmatpush1.msra.mxu0 0.0
    %2090 = vmatprep.subr.mxu0 0.0
    %2091 = vmatpush1.msra.mxu0 0.0
    %2092 = vmatprep.subr.mxu0 0.0
    %2093 = vmatpush1.msra.mxu0 0.0
    %2094 = vmatprep.subr.mxu0 0.0
    %2095 = vmatpush1.msra.mxu0 0.0
    %2096 = vmatprep.subr.mxu0 0.0
    %2097 = vmatpush1.msra.mxu0 0.0
    %2098 = vmatprep.subr.mxu0 0.0
    %2099 = vmatpush1.msra.mxu0 0.0
    %2100 = vmatprep.subr.mxu0 0.0
    %2101 = vmatpush1.msra.mxu0 0.0
    %2102 = vmatprep.subr.mxu0 0.0
    %2103 = vmatpush1.msra.mxu0 0.0
    %2104 = vmatprep.subr.mxu0 0.0
    %2105 = vmatpush1.msra.mxu0 0.0
    %2106 = vmatprep.mubr.f32.mxu0 0.0
    %v2107 = vand.u32 %v1953, 4294901760
    %2108 = vmatmul.mubr.f32.gmra.mrb[0].mxu0 %v2107
    %v2109 = vpop.f32.mrb[0].mxu0
    %v2110 = vadd.f32 %v2029, %v2109
    %v2111 = vpop.f32.mrb[0].mxu0
    %2112 = vdwg.mxu0
    %2113 = vmatprep.subr.mxu0 0.0
    %v2114 = vand.u32 %v465, 4294901760
    %v2115 = vsub.f32 %v465, %v2114
    %2116 = vmatpush1.msra.mxu0 %v2115
    %2117 = vmatprep.subr.mxu0 0.0
    %v2118 = vand.u32 %v472, 4294901760
    %v2119 = vsub.f32 %v472, %v2118
    %2120 = vmatpush1.msra.mxu0 %v2119
    %2121 = vmatprep.subr.mxu0 0.0
    %2122 = vmatpush1.msra.mxu0 0.0
    %2123 = vmatprep.subr.mxu0 0.0
    %2124 = vmatpush1.msra.mxu0 0.0
    %2125 = vmatprep.subr.mxu0 0.0
    %2126 = vmatpush1.msra.mxu0 0.0
    %2127 = vmatprep.subr.mxu0 0.0
    %2128 = vmatpush1.msra.mxu0 0.0
    %2129 = vmatprep.subr.mxu0 0.0
    %2130 = vmatpush1.msra.mxu0 0.0
    %2131 = vmatprep.subr.mxu0 0.0
    %2132 = vmatpush1.msra.mxu0 0.0
    %2133 = vmatprep.subr.mxu0 0.0
    %2134 = vmatpush1.msra.mxu0 0.0
    %2135 = vmatprep.subr.mxu0 0.0
    %2136 = vmatpush1.msra.mxu0 0.0
    %2137 = vmatprep.subr.mxu0 0.0
    %2138 = vmatpush1.msra.mxu0 0.0
    %2139 = vmatprep.subr.mxu0 0.0
    %2140 = vmatpush1.msra.mxu0 0.0
    %2141 = vmatprep.subr.mxu0 0.0
    %2142 = vmatpush1.msra.mxu0 0.0
    %2143 = vmatprep.subr.mxu0 0.0
    %2144 = vmatpush1.msra.mxu0 0.0
    %2145 = vmatprep.subr.mxu0 0.0
    %2146 = vmatpush1.msra.mxu0 0.0
    %2147 = vmatprep.subr.mxu0 0.0
    %2148 = vmatpush1.msra.mxu0 0.0
    %2149 = vmatprep.subr.mxu0 0.0
    %2150 = vmatpush1.msra.mxu0 0.0
    %2151 = vmatprep.subr.mxu0 0.0
    %2152 = vmatpush1.msra.mxu0 0.0
    %2153 = vmatprep.subr.mxu0 0.0
    %2154 = vmatpush1.msra.mxu0 0.0
    %2155 = vmatprep.subr.mxu0 0.0
    %2156 = vmatpush1.msra.mxu0 0.0
    %2157 = vmatprep.subr.mxu0 0.0
    %2158 = vmatpush1.msra.mxu0 0.0
    %2159 = vmatprep.subr.mxu0 0.0
    %2160 = vmatpush1.msra.mxu0 0.0
    %2161 = vmatprep.subr.mxu0 0.0
    %2162 = vmatpush1.msra.mxu0 0.0
    %2163 = vmatprep.subr.mxu0 0.0
    %2164 = vmatpush1.msra.mxu0 0.0
    %2165 = vmatprep.subr.mxu0 0.0
    %2166 = vmatpush1.msra.mxu0 0.0
    %2167 = vmatprep.subr.mxu0 0.0
    %2168 = vmatpush1.msra.mxu0 0.0
    %2169 = vmatprep.subr.mxu0 0.0
    %2170 = vmatpush1.msra.mxu0 0.0
    %2171 = vmatprep.subr.mxu0 0.0
    %2172 = vmatpush1.msra.mxu0 0.0
    %2173 = vmatprep.subr.mxu0 0.0
    %2174 = vmatpush1.msra.mxu0 0.0
    %2175 = vmatprep.subr.mxu0 0.0
    %2176 = vmatpush1.msra.mxu0 0.0
    %2177 = vmatprep.subr.mxu0 0.0
    %2178 = vmatpush1.msra.mxu0 0.0
    %2179 = vmatprep.subr.mxu0 0.0
    %2180 = vmatpush1.msra.mxu0 0.0
    %2181 = vmatprep.mubr.f32.mxu0 0.0
    %v2182 = vand.u32 %v1953, 4294901760
    %v2183 = vsub.f32 %v1953, %v2182
    %2184 = vmatmul.mubr.f32.gmra.mrb[0].mxu0 %v2183
    %v2185 = vpop.f32.mrb[0].mxu0
    %v2186 = vadd.f32 %v2110, %v2185
    %v2187 = vpop.f32.mrb[0].mxu0
    %2188 = vdwg.mxu0
    %2189 = vmatprep.subr.mxu0 0.0
    %v2190 = vand.u32 %v465, 4294901760
    %2191 = vmatpush1.msra.mxu0 %v2190
    %2192 = vmatprep.subr.mxu0 0.0
    %v2193 = vand.u32 %v472, 4294901760
    %2194 = vmatpush1.msra.mxu0 %v2193
    %2195 = vmatprep.subr.mxu0 0.0
    %2196 = vmatpush1.msra.mxu0 0.0
    %2197 = vmatprep.subr.mxu0 0.0
    %2198 = vmatpush1.msra.mxu0 0.0
    %2199 = vmatprep.subr.mxu0 0.0
    %2200 = vmatpush1.msra.mxu0 0.0
    %2201 = vmatprep.subr.mxu0 0.0
    %2202 = vmatpush1.msra.mxu0 0.0
    %2203 = vmatprep.subr.mxu0 0.0
    %2204 = vmatpush1.msra.mxu0 0.0
    %2205 = vmatprep.subr.mxu0 0.0
    %2206 = vmatpush1.msra.mxu0 0.0
    %2207 = vmatprep.subr.mxu0 0.0
    %2208 = vmatpush1.msra.mxu0 0.0
    %2209 = vmatprep.subr.mxu0 0.0
    %2210 = vmatpush1.msra.mxu0 0.0
    %2211 = vmatprep.subr.mxu0 0.0
    %2212 = vmatpush1.msra.mxu0 0.0
    %2213 = vmatprep.subr.mxu0 0.0
    %2214 = vmatpush1.msra.mxu0 0.0
    %2215 = vmatprep.subr.mxu0 0.0
    %2216 = vmatpush1.msra.mxu0 0.0
    %2217 = vmatprep.subr.mxu0 0.0
    %2218 = vmatpush1.msra.mxu0 0.0
    %2219 = vmatprep.subr.mxu0 0.0
    %2220 = vmatpush1.msra.mxu0 0.0
    %2221 = vmatprep.subr.mxu0 0.0
    %2222 = vmatpush1.msra.mxu0 0.0
    %2223 = vmatprep.subr.mxu0 0.0
    %2224 = vmatpush1.msra.mxu0 0.0
    %2225 = vmatprep.subr.mxu0 0.0
    %2226 = vmatpush1.msra.mxu0 0.0
    %2227 = vmatprep.subr.mxu0 0.0
    %2228 = vmatpush1.msra.mxu0 0.0
    %2229 = vmatprep.subr.mxu0 0.0
    %2230 = vmatpush1.msra.mxu0 0.0
    %2231 = vmatprep.subr.mxu0 0.0
    %2232 = vmatpush1.msra.mxu0 0.0
    %2233 = vmatprep.subr.mxu0 0.0
    %2234 = vmatpush1.msra.mxu0 0.0
    %2235 = vmatprep.subr.mxu0 0.0
    %2236 = vmatpush1.msra.mxu0 0.0
    %2237 = vmatprep.subr.mxu0 0.0
    %2238 = vmatpush1.msra.mxu0 0.0
    %2239 = vmatprep.subr.mxu0 0.0
    %2240 = vmatpush1.msra.mxu0 0.0
    %2241 = vmatprep.subr.mxu0 0.0
    %2242 = vmatpush1.msra.mxu0 0.0
    %2243 = vmatprep.subr.mxu0 0.0
    %2244 = vmatpush1.msra.mxu0 0.0
    %2245 = vmatprep.subr.mxu0 0.0
    %2246 = vmatpush1.msra.mxu0 0.0
    %2247 = vmatprep.subr.mxu0 0.0
    %2248 = vmatpush1.msra.mxu0 0.0
    %2249 = vmatprep.subr.mxu0 0.0
    %2250 = vmatpush1.msra.mxu0 0.0
    %2251 = vmatprep.subr.mxu0 0.0
    %2252 = vmatpush1.msra.mxu0 0.0
    %2253 = vmatprep.subr.mxu0 0.0
    %2254 = vmatpush1.msra.mxu0 0.0
    %2255 = vmatprep.mubr.f32.mxu0 0.0
    %v2256 = vand.u32 %v1953, 4294901760
    %v2257 = vsub.f32 %v1953, %v2256
    %v2258 = vand.u32 %v2257, 4294901760
    %2259 = vmatmul.mubr.f32.gmra.mrb[0].mxu0 %v2258
    %v2260 = vpop.f32.mrb[0].mxu0
    %v2261 = vadd.f32 %v2186, %v2260
    %v2262 = vpop.f32.mrb[0].mxu0
    %2263 = vdwg.mxu0
    %2264 = vmatprep.subr.mxu0 0.0
    %v2265 = vand.u32 %v465, 4294901760
    %v2266 = vsub.f32 %v465, %v2265
    %v2267 = vand.u32 %v2266, 4294901760
    %2268 = vmatpush1.msra.mxu0 %v2267
    %2269 = vmatprep.subr.mxu0 0.0
    %v2270 = vand.u32 %v472, 4294901760
    %v2271 = vsub.f32 %v472, %v2270
    %v2272 = vand.u32 %v2271, 4294901760
    %2273 = vmatpush1.msra.mxu0 %v2272
    %2274 = vmatprep.subr.mxu0 0.0
    %2275 = vmatpush1.msra.mxu0 0.0
    %2276 = vmatprep.subr.mxu0 0.0
    %2277 = vmatpush1.msra.mxu0 0.0
    %2278 = vmatprep.subr.mxu0 0.0
    %2279 = vmatpush1.msra.mxu0 0.0
    %2280 = vmatprep.subr.mxu0 0.0
    %2281 = vmatpush1.msra.mxu0 0.0
    %2282 = vmatprep.subr.mxu0 0.0
    %2283 = vmatpush1.msra.mxu0 0.0
    %2284 = vmatprep.subr.mxu0 0.0
    %2285 = vmatpush1.msra.mxu0 0.0
    %2286 = vmatprep.subr.mxu0 0.0
    %2287 = vmatpush1.msra.mxu0 0.0
    %2288 = vmatprep.subr.mxu0 0.0
    %2289 = vmatpush1.msra.mxu0 0.0
    %2290 = vmatprep.subr.mxu0 0.0
    %2291 = vmatpush1.msra.mxu0 0.0
    %2292 = vmatprep.subr.mxu0 0.0
    %2293 = vmatpush1.msra.mxu0 0.0
    %2294 = vmatprep.subr.mxu0 0.0
    %2295 = vmatpush1.msra.mxu0 0.0
    %2296 = vmatprep.subr.mxu0 0.0
    %2297 = vmatpush1.msra.mxu0 0.0
    %2298 = vmatprep.subr.mxu0 0.0
    %2299 = vmatpush1.msra.mxu0 0.0
    %2300 = vmatprep.subr.mxu0 0.0
    %2301 = vmatpush1.msra.mxu0 0.0
    %2302 = vmatprep.subr.mxu0 0.0
    %2303 = vmatpush1.msra.mxu0 0.0
    %2304 = vmatprep.subr.mxu0 0.0
    %2305 = vmatpush1.msra.mxu0 0.0
    %2306 = vmatprep.subr.mxu0 0.0
    %2307 = vmatpush1.msra.mxu0 0.0
    %2308 = vmatprep.subr.mxu0 0.0
    %2309 = vmatpush1.msra.mxu0 0.0
    %2310 = vmatprep.subr.mxu0 0.0
    %2311 = vmatpush1.msra.mxu0 0.0
    %2312 = vmatprep.subr.mxu0 0.0
    %2313 = vmatpush1.msra.mxu0 0.0
    %2314 = vmatprep.subr.mxu0 0.0
    %2315 = vmatpush1.msra.mxu0 0.0
    %2316 = vmatprep.subr.mxu0 0.0
    %2317 = vmatpush1.msra.mxu0 0.0
    %2318 = vmatprep.subr.mxu0 0.0
    %2319 = vmatpush1.msra.mxu0 0.0
    %2320 = vmatprep.subr.mxu0 0.0
    %2321 = vmatpush1.msra.mxu0 0.0
    %2322 = vmatprep.subr.mxu0 0.0
    %2323 = vmatpush1.msra.mxu0 0.0
    %2324 = vmatprep.subr.mxu0 0.0
    %2325 = vmatpush1.msra.mxu0 0.0
    %2326 = vmatprep.subr.mxu0 0.0
    %2327 = vmatpush1.msra.mxu0 0.0
    %2328 = vmatprep.subr.mxu0 0.0
    %2329 = vmatpush1.msra.mxu0 0.0
    %2330 = vmatprep.subr.mxu0 0.0
    %2331 = vmatpush1.msra.mxu0 0.0
    %2332 = vmatprep.subr.mxu0 0.0
    %2333 = vmatpush1.msra.mxu0 0.0
    %2334 = vmatprep.mubr.f32.mxu0 0.0
    %v2335 = vand.u32 %v1953, 4294901760
    %2336 = vmatmul.mubr.f32.gmra.mrb[0].mxu0 %v2335
    %v2337 = vpop.f32.mrb[0].mxu0
    %v2338 = vadd.f32 %v2261, %v2337
    %v2339 = vpop.f32.mrb[0].mxu0
    %2340 = vdwg.mxu0
    %2341 = vmatprep.subr.mxu0 0.0
    %v2342 = vand.u32 %v465, 4294901760
    %2343 = vmatpush1.msra.mxu0 %v2342
    %2344 = vmatprep.subr.mxu0 0.0
    %v2345 = vand.u32 %v472, 4294901760
    %2346 = vmatpush1.msra.mxu0 %v2345
    %2347 = vmatprep.subr.mxu0 0.0
    %2348 = vmatpush1.msra.mxu0 0.0
    %2349 = vmatprep.subr.mxu0 0.0
    %2350 = vmatpush1.msra.mxu0 0.0
    %2351 = vmatprep.subr.mxu0 0.0
    %2352 = vmatpush1.msra.mxu0 0.0
    %2353 = vmatprep.subr.mxu0 0.0
    %2354 = vmatpush1.msra.mxu0 0.0
    %2355 = vmatprep.subr.mxu0 0.0
    %2356 = vmatpush1.msra.mxu0 0.0
    %2357 = vmatprep.subr.mxu0 0.0
    %2358 = vmatpush1.msra.mxu0 0.0
    %2359 = vmatprep.subr.mxu0 0.0
    %2360 = vmatpush1.msra.mxu0 0.0
    %2361 = vmatprep.subr.mxu0 0.0
    %2362 = vmatpush1.msra.mxu0 0.0
    %2363 = vmatprep.subr.mxu0 0.0
    %2364 = vmatpush1.msra.mxu0 0.0
    %2365 = vmatprep.subr.mxu0 0.0
    %2366 = vmatpush1.msra.mxu0 0.0
    %2367 = vmatprep.subr.mxu0 0.0
    %2368 = vmatpush1.msra.mxu0 0.0
    %2369 = vmatprep.subr.mxu0 0.0
    %2370 = vmatpush1.msra.mxu0 0.0
    %2371 = vmatprep.subr.mxu0 0.0
    %2372 = vmatpush1.msra.mxu0 0.0
    %2373 = vmatprep.subr.mxu0 0.0
    %2374 = vmatpush1.msra.mxu0 0.0
    %2375 = vmatprep.subr.mxu0 0.0
    %2376 = vmatpush1.msra.mxu0 0.0
    %2377 = vmatprep.subr.mxu0 0.0
    %2378 = vmatpush1.msra.mxu0 0.0
    %2379 = vmatprep.subr.mxu0 0.0
    %2380 = vmatpush1.msra.mxu0 0.0
    %2381 = vmatprep.subr.mxu0 0.0
    %2382 = vmatpush1.msra.mxu0 0.0
    %2383 = vmatprep.subr.mxu0 0.0
    %2384 = vmatpush1.msra.mxu0 0.0
    %2385 = vmatprep.subr.mxu0 0.0
    %2386 = vmatpush1.msra.mxu0 0.0
    %2387 = vmatprep.subr.mxu0 0.0
    %2388 = vmatpush1.msra.mxu0 0.0
    %2389 = vmatprep.subr.mxu0 0.0
    %2390 = vmatpush1.msra.mxu0 0.0
    %2391 = vmatprep.subr.mxu0 0.0
    %2392 = vmatpush1.msra.mxu0 0.0
    %2393 = vmatprep.subr.mxu0 0.0
    %2394 = vmatpush1.msra.mxu0 0.0
    %2395 = vmatprep.subr.mxu0 0.0
    %2396 = vmatpush1.msra.mxu0 0.0
    %2397 = vmatprep.subr.mxu0 0.0
    %2398 = vmatpush1.msra.mxu0 0.0
    %2399 = vmatprep.subr.mxu0 0.0
    %2400 = vmatpush1.msra.mxu0 0.0
    %2401 = vmatprep.subr.mxu0 0.0
    %2402 = vmatpush1.msra.mxu0 0.0
    %2403 = vmatprep.subr.mxu0 0.0
    %2404 = vmatpush1.msra.mxu0 0.0
    %2405 = vmatprep.subr.mxu0 0.0
    %2406 = vmatpush1.msra.mxu0 0.0
    %2407 = vmatprep.mubr.f32.mxu0 0.0
    %v2408 = vand.u32 %v1953, 4294901760
    %2409 = vmatmul.mubr.f32.gmra.mrb[0].mxu0 %v2408
    %v2410 = vpop.f32.mrb[0].mxu0
    %v2411 = vadd.f32 %v2338, %v2410
    %v2412 = vpop.f32.mrb[0].mxu0
    %2413 = vdwg.mxu0
    %v2415 = vrot.slane %v2411, 5
    %v2417 = vadd.f32 %v460, %v2415
    %v2418 = vxor.u32 %v2417, 2147483648
    %v2419 = vmul.f32 %v2418, 1.442695
    %v2420 = vpow.pop %v2419
    %v2421 = vadd.f32 %v2420, 1.0
    %v2422 = vrcp.pop %v2421
    %v2423 = vmul.f32 1.0, %v2422
    %v2424 = vtanh.pop %v2417
    %v2426 = vrot.slane %v1942, 7
    %v2428 = vmul.f32 %v2423, %v2426
    %2430 = vrot.lane.b32.xlu0 %v2424, 104
    %v2431 = vpop.permute.xlu0 %2430
    %v2433 = vmul.f32 %v2423, %v2431
    %2435 = vrot.lane.b32.xlu0 %v2433, 12
    %v2436 = vpop.permute.xlu0 %2435
    %v2438 = vadd.f32 %v2428, %v2436
    %v2439 = vtanh.pop %v2438
    %2441 = vrot.lane.b32.xlu0 %v2439, 24
    %v2442 = vpop.permute.xlu0 %2441
    %v2444 = vmul.f32 %v2423, %v2442
    %v2446 = vrot.slane %v2444, 3
    %2447 = vrot.lane.b32.xlu0 %v2446, 92
    %v2448 = vpop.permute.xlu0 %2447
    %v2449 = vsel %vm298, %v2448, 0
    %2451 = vmatprep.subr.mxu0 0.0
    %v2452 = vand.u32 %v465, 4294901760
    %2453 = vmatpush1.msra.mxu0 %v2452
    %2454 = vmatprep.subr.mxu0 0.0
    %v2455 = vand.u32 %v472, 4294901760
    %2456 = vmatpush1.msra.mxu0 %v2455
    %2457 = vmatprep.subr.mxu0 0.0
    %2458 = vmatpush1.msra.mxu0 0.0
    %2459 = vmatprep.subr.mxu0 0.0
    %2460 = vmatpush1.msra.mxu0 0.0
    %2461 = vmatprep.subr.mxu0 0.0
    %2462 = vmatpush1.msra.mxu0 0.0
    %2463 = vmatprep.subr.mxu0 0.0
    %2464 = vmatpush1.msra.mxu0 0.0
    %2465 = vmatprep.subr.mxu0 0.0
    %2466 = vmatpush1.msra.mxu0 0.0
    %2467 = vmatprep.subr.mxu0 0.0
    %2468 = vmatpush1.msra.mxu0 0.0
    %2469 = vmatprep.subr.mxu0 0.0
    %2470 = vmatpush1.msra.mxu0 0.0
    %2471 = vmatprep.subr.mxu0 0.0
    %2472 = vmatpush1.msra.mxu0 0.0
    %2473 = vmatprep.subr.mxu0 0.0
    %2474 = vmatpush1.msra.mxu0 0.0
    %2475 = vmatprep.subr.mxu0 0.0
    %2476 = vmatpush1.msra.mxu0 0.0
    %2477 = vmatprep.subr.mxu0 0.0
    %2478 = vmatpush1.msra.mxu0 0.0
    %2479 = vmatprep.subr.mxu0 0.0
    %2480 = vmatpush1.msra.mxu0 0.0
    %2481 = vmatprep.subr.mxu0 0.0
    %2482 = vmatpush1.msra.mxu0 0.0
    %2483 = vmatprep.subr.mxu0 0.0
    %2484 = vmatpush1.msra.mxu0 0.0
    %2485 = vmatprep.subr.mxu0 0.0
    %2486 = vmatpush1.msra.mxu0 0.0
    %2487 = vmatprep.subr.mxu0 0.0
    %2488 = vmatpush1.msra.mxu0 0.0
    %2489 = vmatprep.subr.mxu0 0.0
    %2490 = vmatpush1.msra.mxu0 0.0
    %2491 = vmatprep.subr.mxu0 0.0
    %2492 = vmatpush1.msra.mxu0 0.0
    %2493 = vmatprep.subr.mxu0 0.0
    %2494 = vmatpush1.msra.mxu0 0.0
    %2495 = vmatprep.subr.mxu0 0.0
    %2496 = vmatpush1.msra.mxu0 0.0
    %2497 = vmatprep.subr.mxu0 0.0
    %2498 = vmatpush1.msra.mxu0 0.0
    %2499 = vmatprep.subr.mxu0 0.0
    %2500 = vmatpush1.msra.mxu0 0.0
    %2501 = vmatprep.subr.mxu0 0.0
    %2502 = vmatpush1.msra.mxu0 0.0
    %2503 = vmatprep.subr.mxu0 0.0
    %2504 = vmatpush1.msra.mxu0 0.0
    %2505 = vmatprep.subr.mxu0 0.0
    %2506 = vmatpush1.msra.mxu0 0.0
    %2507 = vmatprep.subr.mxu0 0.0
    %2508 = vmatpush1.msra.mxu0 0.0
    %2509 = vmatprep.subr.mxu0 0.0
    %2510 = vmatpush1.msra.mxu0 0.0
    %2511 = vmatprep.subr.mxu0 0.0
    %2512 = vmatpush1.msra.mxu0 0.0
    %2513 = vmatprep.subr.mxu0 0.0
    %2514 = vmatpush1.msra.mxu0 0.0
    %2515 = vmatprep.subr.mxu0 0.0
    %2516 = vmatpush1.msra.mxu0 0.0
    %2517 = vmatprep.mubr.f32.mxu0 0.0
    %v2518 = vand.u32 %v2449, 4294901760
    %v2519 = vsub.f32 %v2449, %v2518
    %v2520 = vand.u32 %v2519, 4294901760
    %v2521 = vsub.f32 %v2519, %v2520
    %v2522 = vand.u32 %v2521, 4294901760
    %2523 = vmatmul.mubr.f32.gmra.mrb[0].mxu0 %v2522
    %v2524 = vpop.f32.mrb[0].mxu0
    %v2525 = vadd.f32 0.0, %v2524
    %v2526 = vpop.f32.mrb[0].mxu0
    %2527 = vdwg.mxu0
    %2528 = vmatprep.subr.mxu0 0.0
    %v2529 = vand.u32 %v465, 4294901760
    %v2530 = vsub.f32 %v465, %v2529
    %v2531 = vand.u32 %v2530, 4294901760
    %v2532 = vsub.f32 %v2530, %v2531
    %v2533 = vand.u32 %v2532, 4294901760
    %2534 = vmatpush1.msra.mxu0 %v2533
    %2535 = vmatprep.subr.mxu0 0.0
    %v2536 = vand.u32 %v472, 4294901760
    %v2537 = vsub.f32 %v472, %v2536
    %v2538 = vand.u32 %v2537, 4294901760
    %v2539 = vsub.f32 %v2537, %v2538
    %v2540 = vand.u32 %v2539, 4294901760
    %2541 = vmatpush1.msra.mxu0 %v2540
    %2542 = vmatprep.subr.mxu0 0.0
    %2543 = vmatpush1.msra.mxu0 0.0
    %2544 = vmatprep.subr.mxu0 0.0
    %2545 = vmatpush1.msra.mxu0 0.0
    %2546 = vmatprep.subr.mxu0 0.0
    %2547 = vmatpush1.msra.mxu0 0.0
    %2548 = vmatprep.subr.mxu0 0.0
    %2549 = vmatpush1.msra.mxu0 0.0
    %2550 = vmatprep.subr.mxu0 0.0
    %2551 = vmatpush1.msra.mxu0 0.0
    %2552 = vmatprep.subr.mxu0 0.0
    %2553 = vmatpush1.msra.mxu0 0.0
    %2554 = vmatprep.subr.mxu0 0.0
    %2555 = vmatpush1.msra.mxu0 0.0
    %2556 = vmatprep.subr.mxu0 0.0
    %2557 = vmatpush1.msra.mxu0 0.0
    %2558 = vmatprep.subr.mxu0 0.0
    %2559 = vmatpush1.msra.mxu0 0.0
    %2560 = vmatprep.subr.mxu0 0.0
    %2561 = vmatpush1.msra.mxu0 0.0
    %2562 = vmatprep.subr.mxu0 0.0
    %2563 = vmatpush1.msra.mxu0 0.0
    %2564 = vmatprep.subr.mxu0 0.0
    %2565 = vmatpush1.msra.mxu0 0.0
    %2566 = vmatprep.subr.mxu0 0.0
    %2567 = vmatpush1.msra.mxu0 0.0
    %2568 = vmatprep.subr.mxu0 0.0
    %2569 = vmatpush1.msra.mxu0 0.0
    %2570 = vmatprep.subr.mxu0 0.0
    %2571 = vmatpush1.msra.mxu0 0.0
    %2572 = vmatprep.subr.mxu0 0.0
    %2573 = vmatpush1.msra.mxu0 0.0
    %2574 = vmatprep.subr.mxu0 0.0
    %2575 = vmatpush1.msra.mxu0 0.0
    %2576 = vmatprep.subr.mxu0 0.0
    %2577 = vmatpush1.msra.mxu0 0.0
    %2578 = vmatprep.subr.mxu0 0.0
    %2579 = vmatpush1.msra.mxu0 0.0
    %2580 = vmatprep.subr.mxu0 0.0
    %2581 = vmatpush1.msra.mxu0 0.0
    %2582 = vmatprep.subr.mxu0 0.0
    %2583 = vmatpush1.msra.mxu0 0.0
    %2584 = vmatprep.subr.mxu0 0.0
    %2585 = vmatpush1.msra.mxu0 0.0
    %2586 = vmatprep.subr.mxu0 0.0
    %2587 = vmatpush1.msra.mxu0 0.0
    %2588 = vmatprep.subr.mxu0 0.0
    %2589 = vmatpush1.msra.mxu0 0.0
    %2590 = vmatprep.subr.mxu0 0.0
    %2591 = vmatpush1.msra.mxu0 0.0
    %2592 = vmatprep.subr.mxu0 0.0
    %2593 = vmatpush1.msra.mxu0 0.0
    %2594 = vmatprep.subr.mxu0 0.0
    %2595 = vmatpush1.msra.mxu0 0.0
    %2596 = vmatprep.subr.mxu0 0.0
    %2597 = vmatpush1.msra.mxu0 0.0
    %2598 = vmatprep.subr.mxu0 0.0
    %2599 = vmatpush1.msra.mxu0 0.0
    %2600 = vmatprep.subr.mxu0 0.0
    %2601 = vmatpush1.msra.mxu0 0.0
    %2602 = vmatprep.mubr.f32.mxu0 0.0
    %v2603 = vand.u32 %v2449, 4294901760
    %2604 = vmatmul.mubr.f32.gmra.mrb[0].mxu0 %v2603
    %v2605 = vpop.f32.mrb[0].mxu0
    %v2606 = vadd.f32 %v2525, %v2605
    %v2607 = vpop.f32.mrb[0].mxu0
    %2608 = vdwg.mxu0
    %2609 = vmatprep.subr.mxu0 0.0
    %v2610 = vand.u32 %v465, 4294901760
    %v2611 = vsub.f32 %v465, %v2610
    %2612 = vmatpush1.msra.mxu0 %v2611
    %2613 = vmatprep.subr.mxu0 0.0
    %v2614 = vand.u32 %v472, 4294901760
    %v2615 = vsub.f32 %v472, %v2614
    %2616 = vmatpush1.msra.mxu0 %v2615
    %2617 = vmatprep.subr.mxu0 0.0
    %2618 = vmatpush1.msra.mxu0 0.0
    %2619 = vmatprep.subr.mxu0 0.0
    %2620 = vmatpush1.msra.mxu0 0.0
    %2621 = vmatprep.subr.mxu0 0.0
    %2622 = vmatpush1.msra.mxu0 0.0
    %2623 = vmatprep.subr.mxu0 0.0
    %2624 = vmatpush1.msra.mxu0 0.0
    %2625 = vmatprep.subr.mxu0 0.0
    %2626 = vmatpush1.msra.mxu0 0.0
    %2627 = vmatprep.subr.mxu0 0.0
    %2628 = vmatpush1.msra.mxu0 0.0
    %2629 = vmatprep.subr.mxu0 0.0
    %2630 = vmatpush1.msra.mxu0 0.0
    %2631 = vmatprep.subr.mxu0 0.0
    %2632 = vmatpush1.msra.mxu0 0.0
    %2633 = vmatprep.subr.mxu0 0.0
    %2634 = vmatpush1.msra.mxu0 0.0
    %2635 = vmatprep.subr.mxu0 0.0
    %2636 = vmatpush1.msra.mxu0 0.0
    %2637 = vmatprep.subr.mxu0 0.0
    %2638 = vmatpush1.msra.mxu0 0.0
    %2639 = vmatprep.subr.mxu0 0.0
    %2640 = vmatpush1.msra.mxu0 0.0
    %2641 = vmatprep.subr.mxu0 0.0
    %2642 = vmatpush1.msra.mxu0 0.0
    %2643 = vmatprep.subr.mxu0 0.0
    %2644 = vmatpush1.msra.mxu0 0.0
    %2645 = vmatprep.subr.mxu0 0.0
    %2646 = vmatpush1.msra.mxu0 0.0
    %2647 = vmatprep.subr.mxu0 0.0
    %2648 = vmatpush1.msra.mxu0 0.0
    %2649 = vmatprep.subr.mxu0 0.0
    %2650 = vmatpush1.msra.mxu0 0.0
    %2651 = vmatprep.subr.mxu0 0.0
    %2652 = vmatpush1.msra.mxu0 0.0
    %2653 = vmatprep.subr.mxu0 0.0
    %2654 = vmatpush1.msra.mxu0 0.0
    %2655 = vmatprep.subr.mxu0 0.0
    %2656 = vmatpush1.msra.mxu0 0.0
    %2657 = vmatprep.subr.mxu0 0.0
    %2658 = vmatpush1.msra.mxu0 0.0
    %2659 = vmatprep.subr.mxu0 0.0
    %2660 = vmatpush1.msra.mxu0 0.0
    %2661 = vmatprep.subr.mxu0 0.0
    %2662 = vmatpush1.msra.mxu0 0.0
    %2663 = vmatprep.subr.mxu0 0.0
    %2664 = vmatpush1.msra.mxu0 0.0
    %2665 = vmatprep.subr.mxu0 0.0
    %2666 = vmatpush1.msra.mxu0 0.0
    %2667 = vmatprep.subr.mxu0 0.0
    %2668 = vmatpush1.msra.mxu0 0.0
    %2669 = vmatprep.subr.mxu0 0.0
    %2670 = vmatpush1.msra.mxu0 0.0
    %2671 = vmatprep.subr.mxu0 0.0
    %2672 = vmatpush1.msra.mxu0 0.0
    %2673 = vmatprep.subr.mxu0 0.0
    %2674 = vmatpush1.msra.mxu0 0.0
    %2675 = vmatprep.subr.mxu0 0.0
    %2676 = vmatpush1.msra.mxu0 0.0
    %2677 = vmatprep.mubr.f32.mxu0 0.0
    %v2678 = vand.u32 %v2449, 4294901760
    %v2679 = vsub.f32 %v2449, %v2678
    %2680 = vmatmul.mubr.f32.gmra.mrb[0].mxu0 %v2679
    %v2681 = vpop.f32.mrb[0].mxu0
    %v2682 = vadd.f32 %v2606, %v2681
    %v2683 = vpop.f32.mrb[0].mxu0
    %2684 = vdwg.mxu0
    %2685 = vmatprep.subr.mxu0 0.0
    %v2686 = vand.u32 %v465, 4294901760
    %2687 = vmatpush1.msra.mxu0 %v2686
    %2688 = vmatprep.subr.mxu0 0.0
    %v2689 = vand.u32 %v472, 4294901760
    %2690 = vmatpush1.msra.mxu0 %v2689
    %2691 = vmatprep.subr.mxu0 0.0
    %2692 = vmatpush1.msra.mxu0 0.0
    %2693 = vmatprep.subr.mxu0 0.0
    %2694 = vmatpush1.msra.mxu0 0.0
    %2695 = vmatprep.subr.mxu0 0.0
    %2696 = vmatpush1.msra.mxu0 0.0
    %2697 = vmatprep.subr.mxu0 0.0
    %2698 = vmatpush1.msra.mxu0 0.0
    %2699 = vmatprep.subr.mxu0 0.0
    %2700 = vmatpush1.msra.mxu0 0.0
    %2701 = vmatprep.subr.mxu0 0.0
    %2702 = vmatpush1.msra.mxu0 0.0
    %2703 = vmatprep.subr.mxu0 0.0
    %2704 = vmatpush1.msra.mxu0 0.0
    %2705 = vmatprep.subr.mxu0 0.0
    %2706 = vmatpush1.msra.mxu0 0.0
    %2707 = vmatprep.subr.mxu0 0.0
    %2708 = vmatpush1.msra.mxu0 0.0
    %2709 = vmatprep.subr.mxu0 0.0
    %2710 = vmatpush1.msra.mxu0 0.0
    %2711 = vmatprep.subr.mxu0 0.0
    %2712 = vmatpush1.msra.mxu0 0.0
    %2713 = vmatprep.subr.mxu0 0.0
    %2714 = vmatpush1.msra.mxu0 0.0
    %2715 = vmatprep.subr.mxu0 0.0
    %2716 = vmatpush1.msra.mxu0 0.0
    %2717 = vmatprep.subr.mxu0 0.0
    %2718 = vmatpush1.msra.mxu0 0.0
    %2719 = vmatprep.subr.mxu0 0.0
    %2720 = vmatpush1.msra.mxu0 0.0
    %2721 = vmatprep.subr.mxu0 0.0
    %2722 = vmatpush1.msra.mxu0 0.0
    %2723 = vmatprep.subr.mxu0 0.0
    %2724 = vmatpush1.msra.mxu0 0.0
    %2725 = vmatprep.subr.mxu0 0.0
    %2726 = vmatpush1.msra.mxu0 0.0
    %2727 = vmatprep.subr.mxu0 0.0
    %2728 = vmatpush1.msra.mxu0 0.0
    %2729 = vmatprep.subr.mxu0 0.0
    %2730 = vmatpush1.msra.mxu0 0.0
    %2731 = vmatprep.subr.mxu0 0.0
    %2732 = vmatpush1.msra.mxu0 0.0
    %2733 = vmatprep.subr.mxu0 0.0
    %2734 = vmatpush1.msra.mxu0 0.0
    %2735 = vmatprep.subr.mxu0 0.0
    %2736 = vmatpush1.msra.mxu0 0.0
    %2737 = vmatprep.subr.mxu0 0.0
    %2738 = vmatpush1.msra.mxu0 0.0
    %2739 = vmatprep.subr.mxu0 0.0
    %2740 = vmatpush1.msra.mxu0 0.0
    %2741 = vmatprep.subr.mxu0 0.0
    %2742 = vmatpush1.msra.mxu0 0.0
    %2743 = vmatprep.subr.mxu0 0.0
    %2744 = vmatpush1.msra.mxu0 0.0
    %2745 = vmatprep.subr.mxu0 0.0
    %2746 = vmatpush1.msra.mxu0 0.0
    %2747 = vmatprep.subr.mxu0 0.0
    %2748 = vmatpush1.msra.mxu0 0.0
    %2749 = vmatprep.subr.mxu0 0.0
    %2750 = vmatpush1.msra.mxu0 0.0
    %2751 = vmatprep.mubr.f32.mxu0 0.0
    %v2752 = vand.u32 %v2449, 4294901760
    %v2753 = vsub.f32 %v2449, %v2752
    %v2754 = vand.u32 %v2753, 4294901760
    %2755 = vmatmul.mubr.f32.gmra.mrb[0].mxu0 %v2754
    %v2756 = vpop.f32.mrb[0].mxu0
    %v2757 = vadd.f32 %v2682, %v2756
    %v2758 = vpop.f32.mrb[0].mxu0
    %2759 = vdwg.mxu0
    %2760 = vmatprep.subr.mxu0 0.0
    %v2761 = vand.u32 %v465, 4294901760
    %v2762 = vsub.f32 %v465, %v2761
    %v2763 = vand.u32 %v2762, 4294901760
    %2764 = vmatpush1.msra.mxu0 %v2763
    %2765 = vmatprep.subr.mxu0 0.0
    %v2766 = vand.u32 %v472, 4294901760
    %v2767 = vsub.f32 %v472, %v2766
    %v2768 = vand.u32 %v2767, 4294901760
    %2769 = vmatpush1.msra.mxu0 %v2768
    %2770 = vmatprep.subr.mxu0 0.0
    %2771 = vmatpush1.msra.mxu0 0.0
    %2772 = vmatprep.subr.mxu0 0.0
    %2773 = vmatpush1.msra.mxu0 0.0
    %2774 = vmatprep.subr.mxu0 0.0
    %2775 = vmatpush1.msra.mxu0 0.0
    %2776 = vmatprep.subr.mxu0 0.0
    %2777 = vmatpush1.msra.mxu0 0.0
    %2778 = vmatprep.subr.mxu0 0.0
    %2779 = vmatpush1.msra.mxu0 0.0
    %2780 = vmatprep.subr.mxu0 0.0
    %2781 = vmatpush1.msra.mxu0 0.0
    %2782 = vmatprep.subr.mxu0 0.0
    %2783 = vmatpush1.msra.mxu0 0.0
    %2784 = vmatprep.subr.mxu0 0.0
    %2785 = vmatpush1.msra.mxu0 0.0
    %2786 = vmatprep.subr.mxu0 0.0
    %2787 = vmatpush1.msra.mxu0 0.0
    %2788 = vmatprep.subr.mxu0 0.0
    %2789 = vmatpush1.msra.mxu0 0.0
    %2790 = vmatprep.subr.mxu0 0.0
    %2791 = vmatpush1.msra.mxu0 0.0
    %2792 = vmatprep.subr.mxu0 0.0
    %2793 = vmatpush1.msra.mxu0 0.0
    %2794 = vmatprep.subr.mxu0 0.0
    %2795 = vmatpush1.msra.mxu0 0.0
    %2796 = vmatprep.subr.mxu0 0.0
    %2797 = vmatpush1.msra.mxu0 0.0
    %2798 = vmatprep.subr.mxu0 0.0
    %2799 = vmatpush1.msra.mxu0 0.0
    %2800 = vmatprep.subr.mxu0 0.0
    %2801 = vmatpush1.msra.mxu0 0.0
    %2802 = vmatprep.subr.mxu0 0.0
    %2803 = vmatpush1.msra.mxu0 0.0
    %2804 = vmatprep.subr.mxu0 0.0
    %2805 = vmatpush1.msra.mxu0 0.0
    %2806 = vmatprep.subr.mxu0 0.0
    %2807 = vmatpush1.msra.mxu0 0.0
    %2808 = vmatprep.subr.mxu0 0.0
    %2809 = vmatpush1.msra.mxu0 0.0
    %2810 = vmatprep.subr.mxu0 0.0
    %2811 = vmatpush1.msra.mxu0 0.0
    %2812 = vmatprep.subr.mxu0 0.0
    %2813 = vmatpush1.msra.mxu0 0.0
    %2814 = vmatprep.subr.mxu0 0.0
    %2815 = vmatpush1.msra.mxu0 0.0
    %2816 = vmatprep.subr.mxu0 0.0
    %2817 = vmatpush1.msra.mxu0 0.0
    %2818 = vmatprep.subr.mxu0 0.0
    %2819 = vmatpush1.msra.mxu0 0.0
    %2820 = vmatprep.subr.mxu0 0.0
    %2821 = vmatpush1.msra.mxu0 0.0
    %2822 = vmatprep.subr.mxu0 0.0
    %2823 = vmatpush1.msra.mxu0 0.0
    %2824 = vmatprep.subr.mxu0 0.0
    %2825 = vmatpush1.msra.mxu0 0.0
    %2826 = vmatprep.subr.mxu0 0.0
    %2827 = vmatpush1.msra.mxu0 0.0
    %2828 = vmatprep.subr.mxu0 0.0
    %2829 = vmatpush1.msra.mxu0 0.0
    %2830 = vmatprep.mubr.f32.mxu0 0.0
    %v2831 = vand.u32 %v2449, 4294901760
    %2832 = vmatmul.mubr.f32.gmra.mrb[0].mxu0 %v2831
    %v2833 = vpop.f32.mrb[0].mxu0
    %v2834 = vadd.f32 %v2757, %v2833
    %v2835 = vpop.f32.mrb[0].mxu0
    %2836 = vdwg.mxu0
    %2837 = vmatprep.subr.mxu0 0.0
    %v2838 = vand.u32 %v465, 4294901760
    %2839 = vmatpush1.msra.mxu0 %v2838
    %2840 = vmatprep.subr.mxu0 0.0
    %v2841 = vand.u32 %v472, 4294901760
    %2842 = vmatpush1.msra.mxu0 %v2841
    %2843 = vmatprep.subr.mxu0 0.0
    %2844 = vmatpush1.msra.mxu0 0.0
    %2845 = vmatprep.subr.mxu0 0.0
    %2846 = vmatpush1.msra.mxu0 0.0
    %2847 = vmatprep.subr.mxu0 0.0
    %2848 = vmatpush1.msra.mxu0 0.0
    %2849 = vmatprep.subr.mxu0 0.0
    %2850 = vmatpush1.msra.mxu0 0.0
    %2851 = vmatprep.subr.mxu0 0.0
    %2852 = vmatpush1.msra.mxu0 0.0
    %2853 = vmatprep.subr.mxu0 0.0
    %2854 = vmatpush1.msra.mxu0 0.0
    %2855 = vmatprep.subr.mxu0 0.0
    %2856 = vmatpush1.msra.mxu0 0.0
    %2857 = vmatprep.subr.mxu0 0.0
    %2858 = vmatpush1.msra.mxu0 0.0
    %2859 = vmatprep.subr.mxu0 0.0
    %2860 = vmatpush1.msra.mxu0 0.0
    %2861 = vmatprep.subr.mxu0 0.0
    %2862 = vmatpush1.msra.mxu0 0.0
    %2863 = vmatprep.subr.mxu0 0.0
    %2864 = vmatpush1.msra.mxu0 0.0
    %2865 = vmatprep.subr.mxu0 0.0
    %2866 = vmatpush1.msra.mxu0 0.0
    %2867 = vmatprep.subr.mxu0 0.0
    %2868 = vmatpush1.msra.mxu0 0.0
    %2869 = vmatprep.subr.mxu0 0.0
    %2870 = vmatpush1.msra.mxu0 0.0
    %2871 = vmatprep.subr.mxu0 0.0
    %2872 = vmatpush1.msra.mxu0 0.0
    %2873 = vmatprep.subr.mxu0 0.0
    %2874 = vmatpush1.msra.mxu0 0.0
    %2875 = vmatprep.subr.mxu0 0.0
    %2876 = vmatpush1.msra.mxu0 0.0
    %2877 = vmatprep.subr.mxu0 0.0
    %2878 = vmatpush1.msra.mxu0 0.0
    %2879 = vmatprep.subr.mxu0 0.0
    %2880 = vmatpush1.msra.mxu0 0.0
    %2881 = vmatprep.subr.mxu0 0.0
    %2882 = vmatpush1.msra.mxu0 0.0
    %2883 = vmatprep.subr.mxu0 0.0
    %2884 = vmatpush1.msra.mxu0 0.0
    %2885 = vmatprep.subr.mxu0 0.0
    %2886 = vmatpush1.msra.mxu0 0.0
    %2887 = vmatprep.subr.mxu0 0.0
    %2888 = vmatpush1.msra.mxu0 0.0
    %2889 = vmatprep.subr.mxu0 0.0
    %2890 = vmatpush1.msra.mxu0 0.0
    %2891 = vmatprep.subr.mxu0 0.0
    %2892 = vmatpush1.msra.mxu0 0.0
    %2893 = vmatprep.subr.mxu0 0.0
    %2894 = vmatpush1.msra.mxu0 0.0
    %2895 = vmatprep.subr.mxu0 0.0
    %2896 = vmatpush1.msra.mxu0 0.0
    %2897 = vmatprep.subr.mxu0 0.0
    %2898 = vmatpush1.msra.mxu0 0.0
    %2899 = vmatprep.subr.mxu0 0.0
    %2900 = vmatpush1.msra.mxu0 0.0
    %2901 = vmatprep.subr.mxu0 0.0
    %2902 = vmatpush1.msra.mxu0 0.0
    %2903 = vmatprep.mubr.f32.mxu0 0.0
    %v2904 = vand.u32 %v2449, 4294901760
    %2905 = vmatmul.mubr.f32.gmra.mrb[0].mxu0 %v2904
    %v2906 = vpop.f32.mrb[0].mxu0
    %v2907 = vadd.f32 %v2834, %v2906
    %v2908 = vpop.f32.mrb[0].mxu0
    %2909 = vdwg.mxu0
    %v2911 = vrot.slane %v2907, 4
    %v2913 = vadd.f32 %v460, %v2911
    %v2914 = vxor.u32 %v2913, 2147483648
    %v2915 = vmul.f32 %v2914, 1.442695
    %v2916 = vpow.pop %v2915
    %v2917 = vadd.f32 %v2916, 1.0
    %v2918 = vrcp.pop %v2917
    %v2919 = vmul.f32 1.0, %v2918
    %v2920 = vtanh.pop %v2913
    %v2922 = vrot.slane %v2438, 7
    %v2924 = vmul.f32 %v2919, %v2922
    %2926 = vrot.lane.b32.xlu0 %v2920, 104
    %v2927 = vpop.permute.xlu0 %2926
    %v2929 = vmul.f32 %v2919, %v2927
    %2931 = vrot.lane.b32.xlu0 %v2929, 12
    %v2932 = vpop.permute.xlu0 %2931
    %v2934 = vadd.f32 %v2924, %v2932
    %v2935 = vtanh.pop %v2934
    %2937 = vrot.lane.b32.xlu0 %v2935, 24
    %v2938 = vpop.permute.xlu0 %2937
    %v2940 = vmul.f32 %v2919, %v2938
    %v2942 = vrot.slane %v2940, 4
    %2943 = vrot.lane.b32.xlu0 %v2942, 92
    %v2944 = vpop.permute.xlu0 %2943
    %v2945 = vsel %vm298, %v2944, 0
    %2947 = vmatprep.subr.mxu0 0.0
    %v2948 = vand.u32 %v465, 4294901760
    %2949 = vmatpush1.msra.mxu0 %v2948
    %2950 = vmatprep.subr.mxu0 0.0
    %v2951 = vand.u32 %v472, 4294901760
    %2952 = vmatpush1.msra.mxu0 %v2951
    %2953 = vmatprep.subr.mxu0 0.0
    %2954 = vmatpush1.msra.mxu0 0.0
    %2955 = vmatprep.subr.mxu0 0.0
    %2956 = vmatpush1.msra.mxu0 0.0
    %2957 = vmatprep.subr.mxu0 0.0
    %2958 = vmatpush1.msra.mxu0 0.0
    %2959 = vmatprep.subr.mxu0 0.0
    %2960 = vmatpush1.msra.mxu0 0.0
    %2961 = vmatprep.subr.mxu0 0.0
    %2962 = vmatpush1.msra.mxu0 0.0
    %2963 = vmatprep.subr.mxu0 0.0
    %2964 = vmatpush1.msra.mxu0 0.0
    %2965 = vmatprep.subr.mxu0 0.0
    %2966 = vmatpush1.msra.mxu0 0.0
    %2967 = vmatprep.subr.mxu0 0.0
    %2968 = vmatpush1.msra.mxu0 0.0
    %2969 = vmatprep.subr.mxu0 0.0
    %2970 = vmatpush1.msra.mxu0 0.0
    %2971 = vmatprep.subr.mxu0 0.0
    %2972 = vmatpush1.msra.mxu0 0.0
    %2973 = vmatprep.subr.mxu0 0.0
    %2974 = vmatpush1.msra.mxu0 0.0
    %2975 = vmatprep.subr.mxu0 0.0
    %2976 = vmatpush1.msra.mxu0 0.0
    %2977 = vmatprep.subr.mxu0 0.0
    %2978 = vmatpush1.msra.mxu0 0.0
    %2979 = vmatprep.subr.mxu0 0.0
    %2980 = vmatpush1.msra.mxu0 0.0
    %2981 = vmatprep.subr.mxu0 0.0
    %2982 = vmatpush1.msra.mxu0 0.0
    %2983 = vmatprep.subr.mxu0 0.0
    %2984 = vmatpush1.msra.mxu0 0.0
    %2985 = vmatprep.subr.mxu0 0.0
    %2986 = vmatpush1.msra.mxu0 0.0
    %2987 = vmatprep.subr.mxu0 0.0
    %2988 = vmatpush1.msra.mxu0 0.0
    %2989 = vmatprep.subr.mxu0 0.0
    %2990 = vmatpush1.msra.mxu0 0.0
    %2991 = vmatprep.subr.mxu0 0.0
    %2992 = vmatpush1.msra.mxu0 0.0
    %2993 = vmatprep.subr.mxu0 0.0
    %2994 = vmatpush1.msra.mxu0 0.0
    %2995 = vmatprep.subr.mxu0 0.0
    %2996 = vmatpush1.msra.mxu0 0.0
    %2997 = vmatprep.subr.mxu0 0.0
    %2998 = vmatpush1.msra.mxu0 0.0
    %2999 = vmatprep.subr.mxu0 0.0
    %3000 = vmatpush1.msra.mxu0 0.0
    %3001 = vmatprep.subr.mxu0 0.0
    %3002 = vmatpush1.msra.mxu0 0.0
    %3003 = vmatprep.subr.mxu0 0.0
    %3004 = vmatpush1.msra.mxu0 0.0
    %3005 = vmatprep.subr.mxu0 0.0
    %3006 = vmatpush1.msra.mxu0 0.0
    %3007 = vmatprep.subr.mxu0 0.0
    %3008 = vmatpush1.msra.mxu0 0.0
    %3009 = vmatprep.subr.mxu0 0.0
    %3010 = vmatpush1.msra.mxu0 0.0
    %3011 = vmatprep.subr.mxu0 0.0
    %3012 = vmatpush1.msra.mxu0 0.0
    %3013 = vmatprep.mubr.f32.mxu0 0.0
    %v3014 = vand.u32 %v2945, 4294901760
    %v3015 = vsub.f32 %v2945, %v3014
    %v3016 = vand.u32 %v3015, 4294901760
    %v3017 = vsub.f32 %v3015, %v3016
    %v3018 = vand.u32 %v3017, 4294901760
    %3019 = vmatmul.mubr.f32.gmra.mrb[0].mxu0 %v3018
    %v3020 = vpop.f32.mrb[0].mxu0
    %v3021 = vadd.f32 0.0, %v3020
    %v3022 = vpop.f32.mrb[0].mxu0
    %3023 = vdwg.mxu0
    %3024 = vmatprep.subr.mxu0 0.0
    %v3025 = vand.u32 %v465, 4294901760
    %v3026 = vsub.f32 %v465, %v3025
    %v3027 = vand.u32 %v3026, 4294901760
    %v3028 = vsub.f32 %v3026, %v3027
    %v3029 = vand.u32 %v3028, 4294901760
    %3030 = vmatpush1.msra.mxu0 %v3029
    %3031 = vmatprep.subr.mxu0 0.0
    %v3032 = vand.u32 %v472, 4294901760
    %v3033 = vsub.f32 %v472, %v3032
    %v3034 = vand.u32 %v3033, 4294901760
    %v3035 = vsub.f32 %v3033, %v3034
    %v3036 = vand.u32 %v3035, 4294901760
    %3037 = vmatpush1.msra.mxu0 %v3036
    %3038 = vmatprep.subr.mxu0 0.0
    %3039 = vmatpush1.msra.mxu0 0.0
    %3040 = vmatprep.subr.mxu0 0.0
    %3041 = vmatpush1.msra.mxu0 0.0
    %3042 = vmatprep.subr.mxu0 0.0
    %3043 = vmatpush1.msra.mxu0 0.0
    %3044 = vmatprep.subr.mxu0 0.0
    %3045 = vmatpush1.msra.mxu0 0.0
    %3046 = vmatprep.subr.mxu0 0.0
    %3047 = vmatpush1.msra.mxu0 0.0
    %3048 = vmatprep.subr.mxu0 0.0
    %3049 = vmatpush1.msra.mxu0 0.0
    %3050 = vmatprep.subr.mxu0 0.0
    %3051 = vmatpush1.msra.mxu0 0.0
    %3052 = vmatprep.subr.mxu0 0.0
    %3053 = vmatpush1.msra.mxu0 0.0
    %3054 = vmatprep.subr.mxu0 0.0
    %3055 = vmatpush1.msra.mxu0 0.0
    %3056 = vmatprep.subr.mxu0 0.0
    %3057 = vmatpush1.msra.mxu0 0.0
    %3058 = vmatprep.subr.mxu0 0.0
    %3059 = vmatpush1.msra.mxu0 0.0
    %3060 = vmatprep.subr.mxu0 0.0
    %3061 = vmatpush1.msra.mxu0 0.0
    %3062 = vmatprep.subr.mxu0 0.0
    %3063 = vmatpush1.msra.mxu0 0.0
    %3064 = vmatprep.subr.mxu0 0.0
    %3065 = vmatpush1.msra.mxu0 0.0
    %3066 = vmatprep.subr.mxu0 0.0
    %3067 = vmatpush1.msra.mxu0 0.0
    %3068 = vmatprep.subr.mxu0 0.0
    %3069 = vmatpush1.msra.mxu0 0.0
    %3070 = vmatprep.subr.mxu0 0.0
    %3071 = vmatpush1.msra.mxu0 0.0
    %3072 = vmatprep.subr.mxu0 0.0
    %3073 = vmatpush1.msra.mxu0 0.0
    %3074 = vmatprep.subr.mxu0 0.0
    %3075 = vmatpush1.msra.mxu0 0.0
    %3076 = vmatprep.subr.mxu0 0.0
    %3077 = vmatpush1.msra.mxu0 0.0
    %3078 = vmatprep.subr.mxu0 0.0
    %3079 = vmatpush1.msra.mxu0 0.0
    %3080 = vmatprep.subr.mxu0 0.0
    %3081 = vmatpush1.msra.mxu0 0.0
    %3082 = vmatprep.subr.mxu0 0.0
    %3083 = vmatpush1.msra.mxu0 0.0
    %3084 = vmatprep.subr.mxu0 0.0
    %3085 = vmatpush1.msra.mxu0 0.0
    %3086 = vmatprep.subr.mxu0 0.0
    %3087 = vmatpush1.msra.mxu0 0.0
    %3088 = vmatprep.subr.mxu0 0.0
    %3089 = vmatpush1.msra.mxu0 0.0
    %3090 = vmatprep.subr.mxu0 0.0
    %3091 = vmatpush1.msra.mxu0 0.0
    %3092 = vmatprep.subr.mxu0 0.0
    %3093 = vmatpush1.msra.mxu0 0.0
    %3094 = vmatprep.subr.mxu0 0.0
    %3095 = vmatpush1.msra.mxu0 0.0
    %3096 = vmatprep.subr.mxu0 0.0
    %3097 = vmatpush1.msra.mxu0 0.0
    %3098 = vmatprep.mubr.f32.mxu0 0.0
    %v3099 = vand.u32 %v2945, 4294901760
    %3100 = vmatmul.mubr.f32.gmra.mrb[0].mxu0 %v3099
    %v3101 = vpop.f32.mrb[0].mxu0
    %v3102 = vadd.f32 %v3021, %v3101
    %v3103 = vpop.f32.mrb[0].mxu0
    %3104 = vdwg.mxu0
    %3105 = vmatprep.subr.mxu0 0.0
    %v3106 = vand.u32 %v465, 4294901760
    %v3107 = vsub.f32 %v465, %v3106
    %3108 = vmatpush1.msra.mxu0 %v3107
    %3109 = vmatprep.subr.mxu0 0.0
    %v3110 = vand.u32 %v472, 4294901760
    %v3111 = vsub.f32 %v472, %v3110
    %3112 = vmatpush1.msra.mxu0 %v3111
    %3113 = vmatprep.subr.mxu0 0.0
    %3114 = vmatpush1.msra.mxu0 0.0
    %3115 = vmatprep.subr.mxu0 0.0
    %3116 = vmatpush1.msra.mxu0 0.0
    %3117 = vmatprep.subr.mxu0 0.0
    %3118 = vmatpush1.msra.mxu0 0.0
    %3119 = vmatprep.subr.mxu0 0.0
    %3120 = vmatpush1.msra.mxu0 0.0
    %3121 = vmatprep.subr.mxu0 0.0
    %3122 = vmatpush1.msra.mxu0 0.0
    %3123 = vmatprep.subr.mxu0 0.0
    %3124 = vmatpush1.msra.mxu0 0.0
    %3125 = vmatprep.subr.mxu0 0.0
    %3126 = vmatpush1.msra.mxu0 0.0
    %3127 = vmatprep.subr.mxu0 0.0
    %3128 = vmatpush1.msra.mxu0 0.0
    %3129 = vmatprep.subr.mxu0 0.0
    %3130 = vmatpush1.msra.mxu0 0.0
    %3131 = vmatprep.subr.mxu0 0.0
    %3132 = vmatpush1.msra.mxu0 0.0
    %3133 = vmatprep.subr.mxu0 0.0
    %3134 = vmatpush1.msra.mxu0 0.0
    %3135 = vmatprep.subr.mxu0 0.0
    %3136 = vmatpush1.msra.mxu0 0.0
    %3137 = vmatprep.subr.mxu0 0.0
    %3138 = vmatpush1.msra.mxu0 0.0
    %3139 = vmatprep.subr.mxu0 0.0
    %3140 = vmatpush1.msra.mxu0 0.0
    %3141 = vmatprep.subr.mxu0 0.0
    %3142 = vmatpush1.msra.mxu0 0.0
    %3143 = vmatprep.subr.mxu0 0.0
    %3144 = vmatpush1.msra.mxu0 0.0
    %3145 = vmatprep.subr.mxu0 0.0
    %3146 = vmatpush1.msra.mxu0 0.0
    %3147 = vmatprep.subr.mxu0 0.0
    %3148 = vmatpush1.msra.mxu0 0.0
    %3149 = vmatprep.subr.mxu0 0.0
    %3150 = vmatpush1.msra.mxu0 0.0
    %3151 = vmatprep.subr.mxu0 0.0
    %3152 = vmatpush1.msra.mxu0 0.0
    %3153 = vmatprep.subr.mxu0 0.0
    %3154 = vmatpush1.msra.mxu0 0.0
    %3155 = vmatprep.subr.mxu0 0.0
    %3156 = vmatpush1.msra.mxu0 0.0
    %3157 = vmatprep.subr.mxu0 0.0
    %3158 = vmatpush1.msra.mxu0 0.0
    %3159 = vmatprep.subr.mxu0 0.0
    %3160 = vmatpush1.msra.mxu0 0.0
    %3161 = vmatprep.subr.mxu0 0.0
    %3162 = vmatpush1.msra.mxu0 0.0
    %3163 = vmatprep.subr.mxu0 0.0
    %3164 = vmatpush1.msra.mxu0 0.0
    %3165 = vmatprep.subr.mxu0 0.0
    %3166 = vmatpush1.msra.mxu0 0.0
    %3167 = vmatprep.subr.mxu0 0.0
    %3168 = vmatpush1.msra.mxu0 0.0
    %3169 = vmatprep.subr.mxu0 0.0
    %3170 = vmatpush1.msra.mxu0 0.0
    %3171 = vmatprep.subr.mxu0 0.0
    %3172 = vmatpush1.msra.mxu0 0.0
    %3173 = vmatprep.mubr.f32.mxu0 0.0
    %v3174 = vand.u32 %v2945, 4294901760
    %v3175 = vsub.f32 %v2945, %v3174
    %3176 = vmatmul.mubr.f32.gmra.mrb[0].mxu0 %v3175
    %v3177 = vpop.f32.mrb[0].mxu0
    %v3178 = vadd.f32 %v3102, %v3177
    %v3179 = vpop.f32.mrb[0].mxu0
    %3180 = vdwg.mxu0
    %3181 = vmatprep.subr.mxu0 0.0
    %v3182 = vand.u32 %v465, 4294901760
    %3183 = vmatpush1.msra.mxu0 %v3182
    %3184 = vmatprep.subr.mxu0 0.0
    %v3185 = vand.u32 %v472, 4294901760
    %3186 = vmatpush1.msra.mxu0 %v3185
    %3187 = vmatprep.subr.mxu0 0.0
    %3188 = vmatpush1.msra.mxu0 0.0
    %3189 = vmatprep.subr.mxu0 0.0
    %3190 = vmatpush1.msra.mxu0 0.0
    %3191 = vmatprep.subr.mxu0 0.0
    %3192 = vmatpush1.msra.mxu0 0.0
    %3193 = vmatprep.subr.mxu0 0.0
    %3194 = vmatpush1.msra.mxu0 0.0
    %3195 = vmatprep.subr.mxu0 0.0
    %3196 = vmatpush1.msra.mxu0 0.0
    %3197 = vmatprep.subr.mxu0 0.0
    %3198 = vmatpush1.msra.mxu0 0.0
    %3199 = vmatprep.subr.mxu0 0.0
    %3200 = vmatpush1.msra.mxu0 0.0
    %3201 = vmatprep.subr.mxu0 0.0
    %3202 = vmatpush1.msra.mxu0 0.0
    %3203 = vmatprep.subr.mxu0 0.0
    %3204 = vmatpush1.msra.mxu0 0.0
    %3205 = vmatprep.subr.mxu0 0.0
    %3206 = vmatpush1.msra.mxu0 0.0
    %3207 = vmatprep.subr.mxu0 0.0
    %3208 = vmatpush1.msra.mxu0 0.0
    %3209 = vmatprep.subr.mxu0 0.0
    %3210 = vmatpush1.msra.mxu0 0.0
    %3211 = vmatprep.subr.mxu0 0.0
    %3212 = vmatpush1.msra.mxu0 0.0
    %3213 = vmatprep.subr.mxu0 0.0
    %3214 = vmatpush1.msra.mxu0 0.0
    %3215 = vmatprep.subr.mxu0 0.0
    %3216 = vmatpush1.msra.mxu0 0.0
    %3217 = vmatprep.subr.mxu0 0.0
    %3218 = vmatpush1.msra.mxu0 0.0
    %3219 = vmatprep.subr.mxu0 0.0
    %3220 = vmatpush1.msra.mxu0 0.0
    %3221 = vmatprep.subr.mxu0 0.0
    %3222 = vmatpush1.msra.mxu0 0.0
    %3223 = vmatprep.subr.mxu0 0.0
    %3224 = vmatpush1.msra.mxu0 0.0
    %3225 = vmatprep.subr.mxu0 0.0
    %3226 = vmatpush1.msra.mxu0 0.0
    %3227 = vmatprep.subr.mxu0 0.0
    %3228 = vmatpush1.msra.mxu0 0.0
    %3229 = vmatprep.subr.mxu0 0.0
    %3230 = vmatpush1.msra.mxu0 0.0
    %3231 = vmatprep.subr.mxu0 0.0
    %3232 = vmatpush1.msra.mxu0 0.0
    %3233 = vmatprep.subr.mxu0 0.0
    %3234 = vmatpush1.msra.mxu0 0.0
    %3235 = vmatprep.subr.mxu0 0.0
    %3236 = vmatpush1.msra.mxu0 0.0
    %3237 = vmatprep.subr.mxu0 0.0
    %3238 = vmatpush1.msra.mxu0 0.0
    %3239 = vmatprep.subr.mxu0 0.0
    %3240 = vmatpush1.msra.mxu0 0.0
    %3241 = vmatprep.subr.mxu0 0.0
    %3242 = vmatpush1.msra.mxu0 0.0
    %3243 = vmatprep.subr.mxu0 0.0
    %3244 = vmatpush1.msra.mxu0 0.0
    %3245 = vmatprep.subr.mxu0 0.0
    %3246 = vmatpush1.msra.mxu0 0.0
    %3247 = vmatprep.mubr.f32.mxu0 0.0
    %v3248 = vand.u32 %v2945, 4294901760
    %v3249 = vsub.f32 %v2945, %v3248
    %v3250 = vand.u32 %v3249, 4294901760
    %3251 = vmatmul.mubr.f32.gmra.mrb[0].mxu0 %v3250
    %v3252 = vpop.f32.mrb[0].mxu0
    %v3253 = vadd.f32 %v3178, %v3252
    %v3254 = vpop.f32.mrb[0].mxu0
    %3255 = vdwg.mxu0
    %3256 = vmatprep.subr.mxu0 0.0
    %v3257 = vand.u32 %v465, 4294901760
    %v3258 = vsub.f32 %v465, %v3257
    %v3259 = vand.u32 %v3258, 4294901760
    %3260 = vmatpush1.msra.mxu0 %v3259
    %3261 = vmatprep.subr.mxu0 0.0
    %v3262 = vand.u32 %v472, 4294901760
    %v3263 = vsub.f32 %v472, %v3262
    %v3264 = vand.u32 %v3263, 4294901760
    %3265 = vmatpush1.msra.mxu0 %v3264
    %3266 = vmatprep.subr.mxu0 0.0
    %3267 = vmatpush1.msra.mxu0 0.0
    %3268 = vmatprep.subr.mxu0 0.0
    %3269 = vmatpush1.msra.mxu0 0.0
    %3270 = vmatprep.subr.mxu0 0.0
    %3271 = vmatpush1.msra.mxu0 0.0
    %3272 = vmatprep.subr.mxu0 0.0
    %3273 = vmatpush1.msra.mxu0 0.0
    %3274 = vmatprep.subr.mxu0 0.0
    %3275 = vmatpush1.msra.mxu0 0.0
    %3276 = vmatprep.subr.mxu0 0.0
    %3277 = vmatpush1.msra.mxu0 0.0
    %3278 = vmatprep.subr.mxu0 0.0
    %3279 = vmatpush1.msra.mxu0 0.0
    %3280 = vmatprep.subr.mxu0 0.0
    %3281 = vmatpush1.msra.mxu0 0.0
    %3282 = vmatprep.subr.mxu0 0.0
    %3283 = vmatpush1.msra.mxu0 0.0
    %3284 = vmatprep.subr.mxu0 0.0
    %3285 = vmatpush1.msra.mxu0 0.0
    %3286 = vmatprep.subr.mxu0 0.0
    %3287 = vmatpush1.msra.mxu0 0.0
    %3288 = vmatprep.subr.mxu0 0.0
    %3289 = vmatpush1.msra.mxu0 0.0
    %3290 = vmatprep.subr.mxu0 0.0
    %3291 = vmatpush1.msra.mxu0 0.0
    %3292 = vmatprep.subr.mxu0 0.0
    %3293 = vmatpush1.msra.mxu0 0.0
    %3294 = vmatprep.subr.mxu0 0.0
    %3295 = vmatpush1.msra.mxu0 0.0
    %3296 = vmatprep.subr.mxu0 0.0
    %3297 = vmatpush1.msra.mxu0 0.0
    %3298 = vmatprep.subr.mxu0 0.0
    %3299 = vmatpush1.msra.mxu0 0.0
    %3300 = vmatprep.subr.mxu0 0.0
    %3301 = vmatpush1.msra.mxu0 0.0
    %3302 = vmatprep.subr.mxu0 0.0
    %3303 = vmatpush1.msra.mxu0 0.0
    %3304 = vmatprep.subr.mxu0 0.0
    %3305 = vmatpush1.msra.mxu0 0.0
    %3306 = vmatprep.subr.mxu0 0.0
    %3307 = vmatpush1.msra.mxu0 0.0
    %3308 = vmatprep.subr.mxu0 0.0
    %3309 = vmatpush1.msra.mxu0 0.0
    %3310 = vmatprep.subr.mxu0 0.0
    %3311 = vmatpush1.msra.mxu0 0.0
    %3312 = vmatprep.subr.mxu0 0.0
    %3313 = vmatpush1.msra.mxu0 0.0
    %3314 = vmatprep.subr.mxu0 0.0
    %3315 = vmatpush1.msra.mxu0 0.0
    %3316 = vmatprep.subr.mxu0 0.0
    %3317 = vmatpush1.msra.mxu0 0.0
    %3318 = vmatprep.subr.mxu0 0.0
    %3319 = vmatpush1.msra.mxu0 0.0
    %3320 = vmatprep.subr.mxu0 0.0
    %3321 = vmatpush1.msra.mxu0 0.0
    %3322 = vmatprep.subr.mxu0 0.0
    %3323 = vmatpush1.msra.mxu0 0.0
    %3324 = vmatprep.subr.mxu0 0.0
    %3325 = vmatpush1.msra.mxu0 0.0
    %3326 = vmatprep.mubr.f32.mxu0 0.0
    %v3327 = vand.u32 %v2945, 4294901760
    %3328 = vmatmul.mubr.f32.gmra.mrb[0].mxu0 %v3327
    %v3329 = vpop.f32.mrb[0].mxu0
    %v3330 = vadd.f32 %v3253, %v3329
    %v3331 = vpop.f32.mrb[0].mxu0
    %3332 = vdwg.mxu0
    %3333 = vmatprep.subr.mxu0 0.0
    %v3334 = vand.u32 %v465, 4294901760
    %3335 = vmatpush1.msra.mxu0 %v3334
    %3336 = vmatprep.subr.mxu0 0.0
    %v3337 = vand.u32 %v472, 4294901760
    %3338 = vmatpush1.msra.mxu0 %v3337
    %3339 = vmatprep.subr.mxu0 0.0
    %3340 = vmatpush1.msra.mxu0 0.0
    %3341 = vmatprep.subr.mxu0 0.0
    %3342 = vmatpush1.msra.mxu0 0.0
    %3343 = vmatprep.subr.mxu0 0.0
    %3344 = vmatpush1.msra.mxu0 0.0
    %3345 = vmatprep.subr.mxu0 0.0
    %3346 = vmatpush1.msra.mxu0 0.0
    %3347 = vmatprep.subr.mxu0 0.0
    %3348 = vmatpush1.msra.mxu0 0.0
    %3349 = vmatprep.subr.mxu0 0.0
    %3350 = vmatpush1.msra.mxu0 0.0
    %3351 = vmatprep.subr.mxu0 0.0
    %3352 = vmatpush1.msra.mxu0 0.0
    %3353 = vmatprep.subr.mxu0 0.0
    %3354 = vmatpush1.msra.mxu0 0.0
    %3355 = vmatprep.subr.mxu0 0.0
    %3356 = vmatpush1.msra.mxu0 0.0
    %3357 = vmatprep.subr.mxu0 0.0
    %3358 = vmatpush1.msra.mxu0 0.0
    %3359 = vmatprep.subr.mxu0 0.0
    %3360 = vmatpush1.msra.mxu0 0.0
    %3361 = vmatprep.subr.mxu0 0.0
    %3362 = vmatpush1.msra.mxu0 0.0
    %3363 = vmatprep.subr.mxu0 0.0
    %3364 = vmatpush1.msra.mxu0 0.0
    %3365 = vmatprep.subr.mxu0 0.0
    %3366 = vmatpush1.msra.mxu0 0.0
    %3367 = vmatprep.subr.mxu0 0.0
    %3368 = vmatpush1.msra.mxu0 0.0
    %3369 = vmatprep.subr.mxu0 0.0
    %3370 = vmatpush1.msra.mxu0 0.0
    %3371 = vmatprep.subr.mxu0 0.0
    %3372 = vmatpush1.msra.mxu0 0.0
    %3373 = vmatprep.subr.mxu0 0.0
    %3374 = vmatpush1.msra.mxu0 0.0
    %3375 = vmatprep.subr.mxu0 0.0
    %3376 = vmatpush1.msra.mxu0 0.0
    %3377 = vmatprep.subr.mxu0 0.0
    %3378 = vmatpush1.msra.mxu0 0.0
    %3379 = vmatprep.subr.mxu0 0.0
    %3380 = vmatpush1.msra.mxu0 0.0
    %3381 = vmatprep.subr.mxu0 0.0
    %3382 = vmatpush1.msra.mxu0 0.0
    %3383 = vmatprep.subr.mxu0 0.0
    %3384 = vmatpush1.msra.mxu0 0.0
    %3385 = vmatprep.subr.mxu0 0.0
    %3386 = vmatpush1.msra.mxu0 0.0
    %3387 = vmatprep.subr.mxu0 0.0
    %3388 = vmatpush1.msra.mxu0 0.0
    %3389 = vmatprep.subr.mxu0 0.0
    %3390 = vmatpush1.msra.mxu0 0.0
    %3391 = vmatprep.subr.mxu0 0.0
    %3392 = vmatpush1.msra.mxu0 0.0
    %3393 = vmatprep.subr.mxu0 0.0
    %3394 = vmatpush1.msra.mxu0 0.0
    %3395 = vmatprep.subr.mxu0 0.0
    %3396 = vmatpush1.msra.mxu0 0.0
    %3397 = vmatprep.subr.mxu0 0.0
    %3398 = vmatpush1.msra.mxu0 0.0
    %3399 = vmatprep.mubr.f32.mxu0 0.0
    %v3400 = vand.u32 %v2945, 4294901760
    %3401 = vmatmul.mubr.f32.gmra.mrb[0].mxu0 %v3400
    %v3402 = vpop.f32.mrb[0].mxu0
    %v3403 = vadd.f32 %v3330, %v3402
    %v3404 = vpop.f32.mrb[0].mxu0
    %3405 = vdwg.mxu0
    %v3407 = vrot.slane %v3403, 3
    %v3409 = vadd.f32 %v460, %v3407
    %v3410 = vxor.u32 %v3409, 2147483648
    %v3411 = vmul.f32 %v3410, 1.442695
    %v3412 = vpow.pop %v3411
    %v3413 = vadd.f32 %v3412, 1.0
    %v3414 = vrcp.pop %v3413
    %v3415 = vmul.f32 1.0, %v3414
    %v3416 = vtanh.pop %v3409
    %v3418 = vrot.slane %v2934, 7
    %v3420 = vmul.f32 %v3415, %v3418
    %3422 = vrot.lane.b32.xlu0 %v3416, 104
    %v3423 = vpop.permute.xlu0 %3422
    %v3425 = vmul.f32 %v3415, %v3423
    %3427 = vrot.lane.b32.xlu0 %v3425, 12
    %v3428 = vpop.permute.xlu0 %3427
    %v3430 = vadd.f32 %v3420, %v3428
    %v3431 = vtanh.pop %v3430
    %3433 = vrot.lane.b32.xlu0 %v3431, 24
    %v3434 = vpop.permute.xlu0 %3433
    %v3436 = vmul.f32 %v3415, %v3434
    %v3438 = vrot.slane %v3436, 5
    %3439 = vrot.lane.b32.xlu0 %v3438, 92
    %v3440 = vpop.permute.xlu0 %3439
    %v3441 = vsel %vm298, %v3440, 0
    %3443 = vmatprep.subr.mxu0 0.0
    %v3444 = vand.u32 %v465, 4294901760
    %3445 = vmatpush1.msra.mxu0 %v3444
    %3446 = vmatprep.subr.mxu0 0.0
    %v3447 = vand.u32 %v472, 4294901760
    %3448 = vmatpush1.msra.mxu0 %v3447
    %3449 = vmatprep.subr.mxu0 0.0
    %3450 = vmatpush1.msra.mxu0 0.0
    %3451 = vmatprep.subr.mxu0 0.0
    %3452 = vmatpush1.msra.mxu0 0.0
    %3453 = vmatprep.subr.mxu0 0.0
    %3454 = vmatpush1.msra.mxu0 0.0
    %3455 = vmatprep.subr.mxu0 0.0
    %3456 = vmatpush1.msra.mxu0 0.0
    %3457 = vmatprep.subr.mxu0 0.0
    %3458 = vmatpush1.msra.mxu0 0.0
    %3459 = vmatprep.subr.mxu0 0.0
    %3460 = vmatpush1.msra.mxu0 0.0
    %3461 = vmatprep.subr.mxu0 0.0
    %3462 = vmatpush1.msra.mxu0 0.0
    %3463 = vmatprep.subr.mxu0 0.0
    %3464 = vmatpush1.msra.mxu0 0.0
    %3465 = vmatprep.subr.mxu0 0.0
    %3466 = vmatpush1.msra.mxu0 0.0
    %3467 = vmatprep.subr.mxu0 0.0
    %3468 = vmatpush1.msra.mxu0 0.0
    %3469 = vmatprep.subr.mxu0 0.0
    %3470 = vmatpush1.msra.mxu0 0.0
    %3471 = vmatprep.subr.mxu0 0.0
    %3472 = vmatpush1.msra.mxu0 0.0
    %3473 = vmatprep.subr.mxu0 0.0
    %3474 = vmatpush1.msra.mxu0 0.0
    %3475 = vmatprep.subr.mxu0 0.0
    %3476 = vmatpush1.msra.mxu0 0.0
    %3477 = vmatprep.subr.mxu0 0.0
    %3478 = vmatpush1.msra.mxu0 0.0
    %3479 = vmatprep.subr.mxu0 0.0
    %3480 = vmatpush1.msra.mxu0 0.0
    %3481 = vmatprep.subr.mxu0 0.0
    %3482 = vmatpush1.msra.mxu0 0.0
    %3483 = vmatprep.subr.mxu0 0.0
    %3484 = vmatpush1.msra.mxu0 0.0
    %3485 = vmatprep.subr.mxu0 0.0
    %3486 = vmatpush1.msra.mxu0 0.0
    %3487 = vmatprep.subr.mxu0 0.0
    %3488 = vmatpush1.msra.mxu0 0.0
    %3489 = vmatprep.subr.mxu0 0.0
    %3490 = vmatpush1.msra.mxu0 0.0
    %3491 = vmatprep.subr.mxu0 0.0
    %3492 = vmatpush1.msra.mxu0 0.0
    %3493 = vmatprep.subr.mxu0 0.0
    %3494 = vmatpush1.msra.mxu0 0.0
    %3495 = vmatprep.subr.mxu0 0.0
    %3496 = vmatpush1.msra.mxu0 0.0
    %3497 = vmatprep.subr.mxu0 0.0
    %3498 = vmatpush1.msra.mxu0 0.0
    %3499 = vmatprep.subr.mxu0 0.0
    %3500 = vmatpush1.msra.mxu0 0.0
    %3501 = vmatprep.subr.mxu0 0.0
    %3502 = vmatpush1.msra.mxu0 0.0
    %3503 = vmatprep.subr.mxu0 0.0
    %3504 = vmatpush1.msra.mxu0 0.0
    %3505 = vmatprep.subr.mxu0 0.0
    %3506 = vmatpush1.msra.mxu0 0.0
    %3507 = vmatprep.subr.mxu0 0.0
    %3508 = vmatpush1.msra.mxu0 0.0
    %3509 = vmatprep.mubr.f32.mxu0 0.0
    %v3510 = vand.u32 %v3441, 4294901760
    %v3511 = vsub.f32 %v3441, %v3510
    %v3512 = vand.u32 %v3511, 4294901760
    %v3513 = vsub.f32 %v3511, %v3512
    %v3514 = vand.u32 %v3513, 4294901760
    %3515 = vmatmul.mubr.f32.gmra.mrb[0].mxu0 %v3514
    %v3516 = vpop.f32.mrb[0].mxu0
    %v3517 = vadd.f32 0.0, %v3516
    %v3518 = vpop.f32.mrb[0].mxu0
    %3519 = vdwg.mxu0
    %3520 = vmatprep.subr.mxu0 0.0
    %v3521 = vand.u32 %v465, 4294901760
    %v3522 = vsub.f32 %v465, %v3521
    %v3523 = vand.u32 %v3522, 4294901760
    %v3524 = vsub.f32 %v3522, %v3523
    %v3525 = vand.u32 %v3524, 4294901760
    %3526 = vmatpush1.msra.mxu0 %v3525
    %3527 = vmatprep.subr.mxu0 0.0
    %v3528 = vand.u32 %v472, 4294901760
    %v3529 = vsub.f32 %v472, %v3528
    %v3530 = vand.u32 %v3529, 4294901760
    %v3531 = vsub.f32 %v3529, %v3530
    %v3532 = vand.u32 %v3531, 4294901760
    %3533 = vmatpush1.msra.mxu0 %v3532
    %3534 = vmatprep.subr.mxu0 0.0
    %3535 = vmatpush1.msra.mxu0 0.0
    %3536 = vmatprep.subr.mxu0 0.0
    %3537 = vmatpush1.msra.mxu0 0.0
    %3538 = vmatprep.subr.mxu0 0.0
    %3539 = vmatpush1.msra.mxu0 0.0
    %3540 = vmatprep.subr.mxu0 0.0
    %3541 = vmatpush1.msra.mxu0 0.0
    %3542 = vmatprep.subr.mxu0 0.0
    %3543 = vmatpush1.msra.mxu0 0.0
    %3544 = vmatprep.subr.mxu0 0.0
    %3545 = vmatpush1.msra.mxu0 0.0
    %3546 = vmatprep.subr.mxu0 0.0
    %3547 = vmatpush1.msra.mxu0 0.0
    %3548 = vmatprep.subr.mxu0 0.0
    %3549 = vmatpush1.msra.mxu0 0.0
    %3550 = vmatprep.subr.mxu0 0.0
    %3551 = vmatpush1.msra.mxu0 0.0
    %3552 = vmatprep.subr.mxu0 0.0
    %3553 = vmatpush1.msra.mxu0 0.0
    %3554 = vmatprep.subr.mxu0 0.0
    %3555 = vmatpush1.msra.mxu0 0.0
    %3556 = vmatprep.subr.mxu0 0.0
    %3557 = vmatpush1.msra.mxu0 0.0
    %3558 = vmatprep.subr.mxu0 0.0
    %3559 = vmatpush1.msra.mxu0 0.0
    %3560 = vmatprep.subr.mxu0 0.0
    %3561 = vmatpush1.msra.mxu0 0.0
    %3562 = vmatprep.subr.mxu0 0.0
    %3563 = vmatpush1.msra.mxu0 0.0
    %3564 = vmatprep.subr.mxu0 0.0
    %3565 = vmatpush1.msra.mxu0 0.0
    %3566 = vmatprep.subr.mxu0 0.0
    %3567 = vmatpush1.msra.mxu0 0.0
    %3568 = vmatprep.subr.mxu0 0.0
    %3569 = vmatpush1.msra.mxu0 0.0
    %3570 = vmatprep.subr.mxu0 0.0
    %3571 = vmatpush1.msra.mxu0 0.0
    %3572 = vmatprep.subr.mxu0 0.0
    %3573 = vmatpush1.msra.mxu0 0.0
    %3574 = vmatprep.subr.mxu0 0.0
    %3575 = vmatpush1.msra.mxu0 0.0
    %3576 = vmatprep.subr.mxu0 0.0
    %3577 = vmatpush1.msra.mxu0 0.0
    %3578 = vmatprep.subr.mxu0 0.0
    %3579 = vmatpush1.msra.mxu0 0.0
    %3580 = vmatprep.subr.mxu0 0.0
    %3581 = vmatpush1.msra.mxu0 0.0
    %3582 = vmatprep.subr.mxu0 0.0
    %3583 = vmatpush1.msra.mxu0 0.0
    %3584 = vmatprep.subr.mxu0 0.0
    %3585 = vmatpush1.msra.mxu0 0.0
    %3586 = vmatprep.subr.mxu0 0.0
    %3587 = vmatpush1.msra.mxu0 0.0
    %3588 = vmatprep.subr.mxu0 0.0
    %3589 = vmatpush1.msra.mxu0 0.0
    %3590 = vmatprep.subr.mxu0 0.0
    %3591 = vmatpush1.msra.mxu0 0.0
    %3592 = vmatprep.subr.mxu0 0.0
    %3593 = vmatpush1.msra.mxu0 0.0
    %3594 = vmatprep.mubr.f32.mxu0 0.0
    %v3595 = vand.u32 %v3441, 4294901760
    %3596 = vmatmul.mubr.f32.gmra.mrb[0].mxu0 %v3595
    %v3597 = vpop.f32.mrb[0].mxu0
    %v3598 = vadd.f32 %v3517, %v3597
    %v3599 = vpop.f32.mrb[0].mxu0
    %3600 = vdwg.mxu0
    %3601 = vmatprep.subr.mxu0 0.0
    %v3602 = vand.u32 %v465, 4294901760
    %v3603 = vsub.f32 %v465, %v3602
    %3604 = vmatpush1.msra.mxu0 %v3603
    %3605 = vmatprep.subr.mxu0 0.0
    %v3606 = vand.u32 %v472, 4294901760
    %v3607 = vsub.f32 %v472, %v3606
    %3608 = vmatpush1.msra.mxu0 %v3607
    %3609 = vmatprep.subr.mxu0 0.0
    %3610 = vmatpush1.msra.mxu0 0.0
    %3611 = vmatprep.subr.mxu0 0.0
    %3612 = vmatpush1.msra.mxu0 0.0
    %3613 = vmatprep.subr.mxu0 0.0
    %3614 = vmatpush1.msra.mxu0 0.0
    %3615 = vmatprep.subr.mxu0 0.0
    %3616 = vmatpush1.msra.mxu0 0.0
    %3617 = vmatprep.subr.mxu0 0.0
    %3618 = vmatpush1.msra.mxu0 0.0
    %3619 = vmatprep.subr.mxu0 0.0
    %3620 = vmatpush1.msra.mxu0 0.0
    %3621 = vmatprep.subr.mxu0 0.0
    %3622 = vmatpush1.msra.mxu0 0.0
    %3623 = vmatprep.subr.mxu0 0.0
    %3624 = vmatpush1.msra.mxu0 0.0
    %3625 = vmatprep.subr.mxu0 0.0
    %3626 = vmatpush1.msra.mxu0 0.0
    %3627 = vmatprep.subr.mxu0 0.0
    %3628 = vmatpush1.msra.mxu0 0.0
    %3629 = vmatprep.subr.mxu0 0.0
    %3630 = vmatpush1.msra.mxu0 0.0
    %3631 = vmatprep.subr.mxu0 0.0
    %3632 = vmatpush1.msra.mxu0 0.0
    %3633 = vmatprep.subr.mxu0 0.0
    %3634 = vmatpush1.msra.mxu0 0.0
    %3635 = vmatprep.subr.mxu0 0.0
    %3636 = vmatpush1.msra.mxu0 0.0
    %3637 = vmatprep.subr.mxu0 0.0
    %3638 = vmatpush1.msra.mxu0 0.0
    %3639 = vmatprep.subr.mxu0 0.0
    %3640 = vmatpush1.msra.mxu0 0.0
    %3641 = vmatprep.subr.mxu0 0.0
    %3642 = vmatpush1.msra.mxu0 0.0
    %3643 = vmatprep.subr.mxu0 0.0
    %3644 = vmatpush1.msra.mxu0 0.0
    %3645 = vmatprep.subr.mxu0 0.0
    %3646 = vmatpush1.msra.mxu0 0.0
    %3647 = vmatprep.subr.mxu0 0.0
    %3648 = vmatpush1.msra.mxu0 0.0
    %3649 = vmatprep.subr.mxu0 0.0
    %3650 = vmatpush1.msra.mxu0 0.0
    %3651 = vmatprep.subr.mxu0 0.0
    %3652 = vmatpush1.msra.mxu0 0.0
    %3653 = vmatprep.subr.mxu0 0.0
    %3654 = vmatpush1.msra.mxu0 0.0
    %3655 = vmatprep.subr.mxu0 0.0
    %3656 = vmatpush1.msra.mxu0 0.0
    %3657 = vmatprep.subr.mxu0 0.0
    %3658 = vmatpush1.msra.mxu0 0.0
    %3659 = vmatprep.subr.mxu0 0.0
    %3660 = vmatpush1.msra.mxu0 0.0
    %3661 = vmatprep.subr.mxu0 0.0
    %3662 = vmatpush1.msra.mxu0 0.0
    %3663 = vmatprep.subr.mxu0 0.0
    %3664 = vmatpush1.msra.mxu0 0.0
    %3665 = vmatprep.subr.mxu0 0.0
    %3666 = vmatpush1.msra.mxu0 0.0
    %3667 = vmatprep.subr.mxu0 0.0
    %3668 = vmatpush1.msra.mxu0 0.0
    %3669 = vmatprep.mubr.f32.mxu0 0.0
    %v3670 = vand.u32 %v3441, 4294901760
    %v3671 = vsub.f32 %v3441, %v3670
    %3672 = vmatmul.mubr.f32.gmra.mrb[0].mxu0 %v3671
    %v3673 = vpop.f32.mrb[0].mxu0
    %v3674 = vadd.f32 %v3598, %v3673
    %v3675 = vpop.f32.mrb[0].mxu0
    %3676 = vdwg.mxu0
    %3677 = vmatprep.subr.mxu0 0.0
    %v3678 = vand.u32 %v465, 4294901760
    %3679 = vmatpush1.msra.mxu0 %v3678
    %3680 = vmatprep.subr.mxu0 0.0
    %v3681 = vand.u32 %v472, 4294901760
    %3682 = vmatpush1.msra.mxu0 %v3681
    %3683 = vmatprep.subr.mxu0 0.0
    %3684 = vmatpush1.msra.mxu0 0.0
    %3685 = vmatprep.subr.mxu0 0.0
    %3686 = vmatpush1.msra.mxu0 0.0
    %3687 = vmatprep.subr.mxu0 0.0
    %3688 = vmatpush1.msra.mxu0 0.0
    %3689 = vmatprep.subr.mxu0 0.0
    %3690 = vmatpush1.msra.mxu0 0.0
    %3691 = vmatprep.subr.mxu0 0.0
    %3692 = vmatpush1.msra.mxu0 0.0
    %3693 = vmatprep.subr.mxu0 0.0
    %3694 = vmatpush1.msra.mxu0 0.0
    %3695 = vmatprep.subr.mxu0 0.0
    %3696 = vmatpush1.msra.mxu0 0.0
    %3697 = vmatprep.subr.mxu0 0.0
    %3698 = vmatpush1.msra.mxu0 0.0
    %3699 = vmatprep.subr.mxu0 0.0
    %3700 = vmatpush1.msra.mxu0 0.0
    %3701 = vmatprep.subr.mxu0 0.0
    %3702 = vmatpush1.msra.mxu0 0.0
    %3703 = vmatprep.subr.mxu0 0.0
    %3704 = vmatpush1.msra.mxu0 0.0
    %3705 = vmatprep.subr.mxu0 0.0
    %3706 = vmatpush1.msra.mxu0 0.0
    %3707 = vmatprep.subr.mxu0 0.0
    %3708 = vmatpush1.msra.mxu0 0.0
    %3709 = vmatprep.subr.mxu0 0.0
    %3710 = vmatpush1.msra.mxu0 0.0
    %3711 = vmatprep.subr.mxu0 0.0
    %3712 = vmatpush1.msra.mxu0 0.0
    %3713 = vmatprep.subr.mxu0 0.0
    %3714 = vmatpush1.msra.mxu0 0.0
    %3715 = vmatprep.subr.mxu0 0.0
    %3716 = vmatpush1.msra.mxu0 0.0
    %3717 = vmatprep.subr.mxu0 0.0
    %3718 = vmatpush1.msra.mxu0 0.0
    %3719 = vmatprep.subr.mxu0 0.0
    %3720 = vmatpush1.msra.mxu0 0.0
    %3721 = vmatprep.subr.mxu0 0.0
    %3722 = vmatpush1.msra.mxu0 0.0
    %3723 = vmatprep.subr.mxu0 0.0
    %3724 = vmatpush1.msra.mxu0 0.0
    %3725 = vmatprep.subr.mxu0 0.0
    %3726 = vmatpush1.msra.mxu0 0.0
    %3727 = vmatprep.subr.mxu0 0.0
    %3728 = vmatpush1.msra.mxu0 0.0
    %3729 = vmatprep.subr.mxu0 0.0
    %3730 = vmatpush1.msra.mxu0 0.0
    %3731 = vmatprep.subr.mxu0 0.0
    %3732 = vmatpush1.msra.mxu0 0.0
    %3733 = vmatprep.subr.mxu0 0.0
    %3734 = vmatpush1.msra.mxu0 0.0
    %3735 = vmatprep.subr.mxu0 0.0
    %3736 = vmatpush1.msra.mxu0 0.0
    %3737 = vmatprep.subr.mxu0 0.0
    %3738 = vmatpush1.msra.mxu0 0.0
    %3739 = vmatprep.subr.mxu0 0.0
    %3740 = vmatpush1.msra.mxu0 0.0
    %3741 = vmatprep.subr.mxu0 0.0
    %3742 = vmatpush1.msra.mxu0 0.0
    %3743 = vmatprep.mubr.f32.mxu0 0.0
    %v3744 = vand.u32 %v3441, 4294901760
    %v3745 = vsub.f32 %v3441, %v3744
    %v3746 = vand.u32 %v3745, 4294901760
    %3747 = vmatmul.mubr.f32.gmra.mrb[0].mxu0 %v3746
    %v3748 = vpop.f32.mrb[0].mxu0
    %v3749 = vadd.f32 %v3674, %v3748
    %v3750 = vpop.f32.mrb[0].mxu0
    %3751 = vdwg.mxu0
    %3752 = vmatprep.subr.mxu0 0.0
    %v3753 = vand.u32 %v465, 4294901760
    %v3754 = vsub.f32 %v465, %v3753
    %v3755 = vand.u32 %v3754, 4294901760
    %3756 = vmatpush1.msra.mxu0 %v3755
    %3757 = vmatprep.subr.mxu0 0.0
    %v3758 = vand.u32 %v472, 4294901760
    %v3759 = vsub.f32 %v472, %v3758
    %v3760 = vand.u32 %v3759, 4294901760
    %3761 = vmatpush1.msra.mxu0 %v3760
    %3762 = vmatprep.subr.mxu0 0.0
    %3763 = vmatpush1.msra.mxu0 0.0
    %3764 = vmatprep.subr.mxu0 0.0
    %3765 = vmatpush1.msra.mxu0 0.0
    %3766 = vmatprep.subr.mxu0 0.0
    %3767 = vmatpush1.msra.mxu0 0.0
    %3768 = vmatprep.subr.mxu0 0.0
    %3769 = vmatpush1.msra.mxu0 0.0
    %3770 = vmatprep.subr.mxu0 0.0
    %3771 = vmatpush1.msra.mxu0 0.0
    %3772 = vmatprep.subr.mxu0 0.0
    %3773 = vmatpush1.msra.mxu0 0.0
    %3774 = vmatprep.subr.mxu0 0.0
    %3775 = vmatpush1.msra.mxu0 0.0
    %3776 = vmatprep.subr.mxu0 0.0
    %3777 = vmatpush1.msra.mxu0 0.0
    %3778 = vmatprep.subr.mxu0 0.0
    %3779 = vmatpush1.msra.mxu0 0.0
    %3780 = vmatprep.subr.mxu0 0.0
    %3781 = vmatpush1.msra.mxu0 0.0
    %3782 = vmatprep.subr.mxu0 0.0
    %3783 = vmatpush1.msra.mxu0 0.0
    %3784 = vmatprep.subr.mxu0 0.0
    %3785 = vmatpush1.msra.mxu0 0.0
    %3786 = vmatprep.subr.mxu0 0.0
    %3787 = vmatpush1.msra.mxu0 0.0
    %3788 = vmatprep.subr.mxu0 0.0
    %3789 = vmatpush1.msra.mxu0 0.0
    %3790 = vmatprep.subr.mxu0 0.0
    %3791 = vmatpush1.msra.mxu0 0.0
    %3792 = vmatprep.subr.mxu0 0.0
    %3793 = vmatpush1.msra.mxu0 0.0
    %3794 = vmatprep.subr.mxu0 0.0
    %3795 = vmatpush1.msra.mxu0 0.0
    %3796 = vmatprep.subr.mxu0 0.0
    %3797 = vmatpush1.msra.mxu0 0.0
    %3798 = vmatprep.subr.mxu0 0.0
    %3799 = vmatpush1.msra.mxu0 0.0
    %3800 = vmatprep.subr.mxu0 0.0
    %3801 = vmatpush1.msra.mxu0 0.0
    %3802 = vmatprep.subr.mxu0 0.0
    %3803 = vmatpush1.msra.mxu0 0.0
    %3804 = vmatprep.subr.mxu0 0.0
    %3805 = vmatpush1.msra.mxu0 0.0
    %3806 = vmatprep.subr.mxu0 0.0
    %3807 = vmatpush1.msra.mxu0 0.0
    %3808 = vmatprep.subr.mxu0 0.0
    %3809 = vmatpush1.msra.mxu0 0.0
    %3810 = vmatprep.subr.mxu0 0.0
    %3811 = vmatpush1.msra.mxu0 0.0
    %3812 = vmatprep.subr.mxu0 0.0
    %3813 = vmatpush1.msra.mxu0 0.0
    %3814 = vmatprep.subr.mxu0 0.0
    %3815 = vmatpush1.msra.mxu0 0.0
    %3816 = vmatprep.subr.mxu0 0.0
    %3817 = vmatpush1.msra.mxu0 0.0
    %3818 = vmatprep.subr.mxu0 0.0
    %3819 = vmatpush1.msra.mxu0 0.0
    %3820 = vmatprep.subr.mxu0 0.0
    %3821 = vmatpush1.msra.mxu0 0.0
    %3822 = vmatprep.mubr.f32.mxu0 0.0
    %v3823 = vand.u32 %v3441, 4294901760
    %3824 = vmatmul.mubr.f32.gmra.mrb[0].mxu0 %v3823
    %v3825 = vpop.f32.mrb[0].mxu0
    %v3826 = vadd.f32 %v3749, %v3825
    %v3827 = vpop.f32.mrb[0].mxu0
    %3828 = vdwg.mxu0
    %3829 = vmatprep.subr.mxu0 0.0
    %v3830 = vand.u32 %v465, 4294901760
    %3831 = vmatpush1.msra.mxu0 %v3830
    %3832 = vmatprep.subr.mxu0 0.0
    %v3833 = vand.u32 %v472, 4294901760
    %3834 = vmatpush1.msra.mxu0 %v3833
    %3835 = vmatprep.subr.mxu0 0.0
    %3836 = vmatpush1.msra.mxu0 0.0
    %3837 = vmatprep.subr.mxu0 0.0
    %3838 = vmatpush1.msra.mxu0 0.0
    %3839 = vmatprep.subr.mxu0 0.0
    %3840 = vmatpush1.msra.mxu0 0.0
    %3841 = vmatprep.subr.mxu0 0.0
    %3842 = vmatpush1.msra.mxu0 0.0
    %3843 = vmatprep.subr.mxu0 0.0
    %3844 = vmatpush1.msra.mxu0 0.0
    %3845 = vmatprep.subr.mxu0 0.0
    %3846 = vmatpush1.msra.mxu0 0.0
    %3847 = vmatprep.subr.mxu0 0.0
    %3848 = vmatpush1.msra.mxu0 0.0
    %3849 = vmatprep.subr.mxu0 0.0
    %3850 = vmatpush1.msra.mxu0 0.0
    %3851 = vmatprep.subr.mxu0 0.0
    %3852 = vmatpush1.msra.mxu0 0.0
    %3853 = vmatprep.subr.mxu0 0.0
    %3854 = vmatpush1.msra.mxu0 0.0
    %3855 = vmatprep.subr.mxu0 0.0
    %3856 = vmatpush1.msra.mxu0 0.0
    %3857 = vmatprep.subr.mxu0 0.0
    %3858 = vmatpush1.msra.mxu0 0.0
    %3859 = vmatprep.subr.mxu0 0.0
    %3860 = vmatpush1.msra.mxu0 0.0
    %3861 = vmatprep.subr.mxu0 0.0
    %3862 = vmatpush1.msra.mxu0 0.0
    %3863 = vmatprep.subr.mxu0 0.0
    %3864 = vmatpush1.msra.mxu0 0.0
    %3865 = vmatprep.subr.mxu0 0.0
    %3866 = vmatpush1.msra.mxu0 0.0
    %3867 = vmatprep.subr.mxu0 0.0
    %3868 = vmatpush1.msra.mxu0 0.0
    %3869 = vmatprep.subr.mxu0 0.0
    %3870 = vmatpush1.msra.mxu0 0.0
    %3871 = vmatprep.subr.mxu0 0.0
    %3872 = vmatpush1.msra.mxu0 0.0
    %3873 = vmatprep.subr.mxu0 0.0
    %3874 = vmatpush1.msra.mxu0 0.0
    %3875 = vmatprep.subr.mxu0 0.0
    %3876 = vmatpush1.msra.mxu0 0.0
    %3877 = vmatprep.subr.mxu0 0.0
    %3878 = vmatpush1.msra.mxu0 0.0
    %3879 = vmatprep.subr.mxu0 0.0
    %3880 = vmatpush1.msra.mxu0 0.0
    %3881 = vmatprep.subr.mxu0 0.0
    %3882 = vmatpush1.msra.mxu0 0.0
    %3883 = vmatprep.subr.mxu0 0.0
    %3884 = vmatpush1.msra.mxu0 0.0
    %3885 = vmatprep.subr.mxu0 0.0
    %3886 = vmatpush1.msra.mxu0 0.0
    %3887 = vmatprep.subr.mxu0 0.0
    %3888 = vmatpush1.msra.mxu0 0.0
    %3889 = vmatprep.subr.mxu0 0.0
    %3890 = vmatpush1.msra.mxu0 0.0
    %3891 = vmatprep.subr.mxu0 0.0
    %3892 = vmatpush1.msra.mxu0 0.0
    %3893 = vmatprep.subr.mxu0 0.0
    %3894 = vmatpush1.msra.mxu0 0.0
    %3895 = vmatprep.mubr.f32.mxu0 0.0
    %v3896 = vand.u32 %v3441, 4294901760
    %3897 = vmatmul.mubr.f32.gmra.mrb[0].mxu0 %v3896
    %v3898 = vpop.f32.mrb[0].mxu0
    %v3899 = vadd.f32 %v3826, %v3898
    %v3900 = vpop.f32.mrb[0].mxu0
    %3901 = vdwg.mxu0
    %v3903 = vrot.slane %v3899, 2
    %v3905 = vadd.f32 %v460, %v3903
    %v3906 = vxor.u32 %v3905, 2147483648
    %v3907 = vmul.f32 %v3906, 1.442695
    %v3908 = vpow.pop %v3907
    %v3909 = vadd.f32 %v3908, 1.0
    %v3910 = vrcp.pop %v3909
    %v3911 = vmul.f32 1.0, %v3910
    %v3912 = vtanh.pop %v3905
    %v3914 = vrot.slane %v3430, 7
    %v3916 = vmul.f32 %v3911, %v3914
    %3918 = vrot.lane.b32.xlu0 %v3912, 104
    %v3919 = vpop.permute.xlu0 %3918
    %v3921 = vmul.f32 %v3911, %v3919
    %3923 = vrot.lane.b32.xlu0 %v3921, 12
    %v3924 = vpop.permute.xlu0 %3923
    %v3926 = vadd.f32 %v3916, %v3924
    %v3927 = vtanh.pop %v3926
    %3929 = vrot.lane.b32.xlu0 %v3927, 24
    %v3930 = vpop.permute.xlu0 %3929
    %v3932 = vmul.f32 %v3911, %v3930
    %v3934 = vrot.slane %v3932, 6
    %3935 = vrot.lane.b32.xlu0 %v3934, 92
    %v3936 = vpop.permute.xlu0 %3935
    %v3937 = vsel %vm298, %v3936, 0
    %3939 = vmatprep.subr.mxu0 0.0
    %v3940 = vand.u32 %v465, 4294901760
    %3941 = vmatpush1.msra.mxu0 %v3940
    %3942 = vmatprep.subr.mxu0 0.0
    %v3943 = vand.u32 %v472, 4294901760
    %3944 = vmatpush1.msra.mxu0 %v3943
    %3945 = vmatprep.subr.mxu0 0.0
    %3946 = vmatpush1.msra.mxu0 0.0
    %3947 = vmatprep.subr.mxu0 0.0
    %3948 = vmatpush1.msra.mxu0 0.0
    %3949 = vmatprep.subr.mxu0 0.0
    %3950 = vmatpush1.msra.mxu0 0.0
    %3951 = vmatprep.subr.mxu0 0.0
    %3952 = vmatpush1.msra.mxu0 0.0
    %3953 = vmatprep.subr.mxu0 0.0
    %3954 = vmatpush1.msra.mxu0 0.0
    %3955 = vmatprep.subr.mxu0 0.0
    %3956 = vmatpush1.msra.mxu0 0.0
    %3957 = vmatprep.subr.mxu0 0.0
    %3958 = vmatpush1.msra.mxu0 0.0
    %3959 = vmatprep.subr.mxu0 0.0
    %3960 = vmatpush1.msra.mxu0 0.0
    %3961 = vmatprep.subr.mxu0 0.0
    %3962 = vmatpush1.msra.mxu0 0.0
    %3963 = vmatprep.subr.mxu0 0.0
    %3964 = vmatpush1.msra.mxu0 0.0
    %3965 = vmatprep.subr.mxu0 0.0
    %3966 = vmatpush1.msra.mxu0 0.0
    %3967 = vmatprep.subr.mxu0 0.0
    %3968 = vmatpush1.msra.mxu0 0.0
    %3969 = vmatprep.subr.mxu0 0.0
    %3970 = vmatpush1.msra.mxu0 0.0
    %3971 = vmatprep.subr.mxu0 0.0
    %3972 = vmatpush1.msra.mxu0 0.0
    %3973 = vmatprep.subr.mxu0 0.0
    %3974 = vmatpush1.msra.mxu0 0.0
    %3975 = vmatprep.subr.mxu0 0.0
    %3976 = vmatpush1.msra.mxu0 0.0
    %3977 = vmatprep.subr.mxu0 0.0
    %3978 = vmatpush1.msra.mxu0 0.0
    %3979 = vmatprep.subr.mxu0 0.0
    %3980 = vmatpush1.msra.mxu0 0.0
    %3981 = vmatprep.subr.mxu0 0.0
    %3982 = vmatpush1.msra.mxu0 0.0
    %3983 = vmatprep.subr.mxu0 0.0
    %3984 = vmatpush1.msra.mxu0 0.0
    %3985 = vmatprep.subr.mxu0 0.0
    %3986 = vmatpush1.msra.mxu0 0.0
    %3987 = vmatprep.subr.mxu0 0.0
    %3988 = vmatpush1.msra.mxu0 0.0
    %3989 = vmatprep.subr.mxu0 0.0
    %3990 = vmatpush1.msra.mxu0 0.0
    %3991 = vmatprep.subr.mxu0 0.0
    %3992 = vmatpush1.msra.mxu0 0.0
    %3993 = vmatprep.subr.mxu0 0.0
    %3994 = vmatpush1.msra.mxu0 0.0
    %3995 = vmatprep.subr.mxu0 0.0
    %3996 = vmatpush1.msra.mxu0 0.0
    %3997 = vmatprep.subr.mxu0 0.0
    %3998 = vmatpush1.msra.mxu0 0.0
    %3999 = vmatprep.subr.mxu0 0.0
    %4000 = vmatpush1.msra.mxu0 0.0
    %4001 = vmatprep.subr.mxu0 0.0
    %4002 = vmatpush1.msra.mxu0 0.0
    %4003 = vmatprep.subr.mxu0 0.0
    %4004 = vmatpush1.msra.mxu0 0.0
    %4005 = vmatprep.mubr.f32.mxu0 0.0
    %v4006 = vand.u32 %v3937, 4294901760
    %v4007 = vsub.f32 %v3937, %v4006
    %v4008 = vand.u32 %v4007, 4294901760
    %v4009 = vsub.f32 %v4007, %v4008
    %v4010 = vand.u32 %v4009, 4294901760
    %4011 = vmatmul.mubr.f32.gmra.mrb[0].mxu0 %v4010
    %v4012 = vpop.f32.mrb[0].mxu0
    %v4013 = vadd.f32 0.0, %v4012
    %v4014 = vpop.f32.mrb[0].mxu0
    %4015 = vdwg.mxu0
    %4016 = vmatprep.subr.mxu0 0.0
    %v4017 = vand.u32 %v465, 4294901760
    %v4018 = vsub.f32 %v465, %v4017
    %v4019 = vand.u32 %v4018, 4294901760
    %v4020 = vsub.f32 %v4018, %v4019
    %v4021 = vand.u32 %v4020, 4294901760
    %4022 = vmatpush1.msra.mxu0 %v4021
    %4023 = vmatprep.subr.mxu0 0.0
    %v4024 = vand.u32 %v472, 4294901760
    %v4025 = vsub.f32 %v472, %v4024
    %v4026 = vand.u32 %v4025, 4294901760
    %v4027 = vsub.f32 %v4025, %v4026
    %v4028 = vand.u32 %v4027, 4294901760
    %4029 = vmatpush1.msra.mxu0 %v4028
    %4030 = vmatprep.subr.mxu0 0.0
    %4031 = vmatpush1.msra.mxu0 0.0
    %4032 = vmatprep.subr.mxu0 0.0
    %4033 = vmatpush1.msra.mxu0 0.0
    %4034 = vmatprep.subr.mxu0 0.0
    %4035 = vmatpush1.msra.mxu0 0.0
    %4036 = vmatprep.subr.mxu0 0.0
    %4037 = vmatpush1.msra.mxu0 0.0
    %4038 = vmatprep.subr.mxu0 0.0
    %4039 = vmatpush1.msra.mxu0 0.0
    %4040 = vmatprep.subr.mxu0 0.0
    %4041 = vmatpush1.msra.mxu0 0.0
    %4042 = vmatprep.subr.mxu0 0.0
    %4043 = vmatpush1.msra.mxu0 0.0
    %4044 = vmatprep.subr.mxu0 0.0
    %4045 = vmatpush1.msra.mxu0 0.0
    %4046 = vmatprep.subr.mxu0 0.0
    %4047 = vmatpush1.msra.mxu0 0.0
    %4048 = vmatprep.subr.mxu0 0.0
    %4049 = vmatpush1.msra.mxu0 0.0
    %4050 = vmatprep.subr.mxu0 0.0
    %4051 = vmatpush1.msra.mxu0 0.0
    %4052 = vmatprep.subr.mxu0 0.0
    %4053 = vmatpush1.msra.mxu0 0.0
    %4054 = vmatprep.subr.mxu0 0.0
    %4055 = vmatpush1.msra.mxu0 0.0
    %4056 = vmatprep.subr.mxu0 0.0
    %4057 = vmatpush1.msra.mxu0 0.0
    %4058 = vmatprep.subr.mxu0 0.0
    %4059 = vmatpush1.msra.mxu0 0.0
    %4060 = vmatprep.subr.mxu0 0.0
    %4061 = vmatpush1.msra.mxu0 0.0
    %4062 = vmatprep.subr.mxu0 0.0
    %4063 = vmatpush1.msra.mxu0 0.0
    %4064 = vmatprep.subr.mxu0 0.0
    %4065 = vmatpush1.msra.mxu0 0.0
    %4066 = vmatprep.subr.mxu0 0.0
    %4067 = vmatpush1.msra.mxu0 0.0
    %4068 = vmatprep.subr.mxu0 0.0
    %4069 = vmatpush1.msra.mxu0 0.0
    %4070 = vmatprep.subr.mxu0 0.0
    %4071 = vmatpush1.msra.mxu0 0.0
    %4072 = vmatprep.subr.mxu0 0.0
    %4073 = vmatpush1.msra.mxu0 0.0
    %4074 = vmatprep.subr.mxu0 0.0
    %4075 = vmatpush1.msra.mxu0 0.0
    %4076 = vmatprep.subr.mxu0 0.0
    %4077 = vmatpush1.msra.mxu0 0.0
    %4078 = vmatprep.subr.mxu0 0.0
    %4079 = vmatpush1.msra.mxu0 0.0
    %4080 = vmatprep.subr.mxu0 0.0
    %4081 = vmatpush1.msra.mxu0 0.0
    %4082 = vmatprep.subr.mxu0 0.0
    %4083 = vmatpush1.msra.mxu0 0.0
    %4084 = vmatprep.subr.mxu0 0.0
    %4085 = vmatpush1.msra.mxu0 0.0
    %4086 = vmatprep.subr.mxu0 0.0
    %4087 = vmatpush1.msra.mxu0 0.0
    %4088 = vmatprep.subr.mxu0 0.0
    %4089 = vmatpush1.msra.mxu0 0.0
    %4090 = vmatprep.mubr.f32.mxu0 0.0
    %v4091 = vand.u32 %v3937, 4294901760
    %4092 = vmatmul.mubr.f32.gmra.mrb[0].mxu0 %v4091
    %v4093 = vpop.f32.mrb[0].mxu0
    %v4094 = vadd.f32 %v4013, %v4093
    %v4095 = vpop.f32.mrb[0].mxu0
    %4096 = vdwg.mxu0
    %4097 = vmatprep.subr.mxu0 0.0
    %v4098 = vand.u32 %v465, 4294901760
    %v4099 = vsub.f32 %v465, %v4098
    %4100 = vmatpush1.msra.mxu0 %v4099
    %4101 = vmatprep.subr.mxu0 0.0
    %v4102 = vand.u32 %v472, 4294901760
    %v4103 = vsub.f32 %v472, %v4102
    %4104 = vmatpush1.msra.mxu0 %v4103
    %4105 = vmatprep.subr.mxu0 0.0
    %4106 = vmatpush1.msra.mxu0 0.0
    %4107 = vmatprep.subr.mxu0 0.0
    %4108 = vmatpush1.msra.mxu0 0.0
    %4109 = vmatprep.subr.mxu0 0.0
    %4110 = vmatpush1.msra.mxu0 0.0
    %4111 = vmatprep.subr.mxu0 0.0
    %4112 = vmatpush1.msra.mxu0 0.0
    %4113 = vmatprep.subr.mxu0 0.0
    %4114 = vmatpush1.msra.mxu0 0.0
    %4115 = vmatprep.subr.mxu0 0.0
    %4116 = vmatpush1.msra.mxu0 0.0
    %4117 = vmatprep.subr.mxu0 0.0
    %4118 = vmatpush1.msra.mxu0 0.0
    %4119 = vmatprep.subr.mxu0 0.0
    %4120 = vmatpush1.msra.mxu0 0.0
    %4121 = vmatprep.subr.mxu0 0.0
    %4122 = vmatpush1.msra.mxu0 0.0
    %4123 = vmatprep.subr.mxu0 0.0
    %4124 = vmatpush1.msra.mxu0 0.0
    %4125 = vmatprep.subr.mxu0 0.0
    %4126 = vmatpush1.msra.mxu0 0.0
    %4127 = vmatprep.subr.mxu0 0.0
    %4128 = vmatpush1.msra.mxu0 0.0
    %4129 = vmatprep.subr.mxu0 0.0
    %4130 = vmatpush1.msra.mxu0 0.0
    %4131 = vmatprep.subr.mxu0 0.0
    %4132 = vmatpush1.msra.mxu0 0.0
    %4133 = vmatprep.subr.mxu0 0.0
    %4134 = vmatpush1.msra.mxu0 0.0
    %4135 = vmatprep.subr.mxu0 0.0
    %4136 = vmatpush1.msra.mxu0 0.0
    %4137 = vmatprep.subr.mxu0 0.0
    %4138 = vmatpush1.msra.mxu0 0.0
    %4139 = vmatprep.subr.mxu0 0.0
    %4140 = vmatpush1.msra.mxu0 0.0
    %4141 = vmatprep.subr.mxu0 0.0
    %4142 = vmatpush1.msra.mxu0 0.0
    %4143 = vmatprep.subr.mxu0 0.0
    %4144 = vmatpush1.msra.mxu0 0.0
    %4145 = vmatprep.subr.mxu0 0.0
    %4146 = vmatpush1.msra.mxu0 0.0
    %4147 = vmatprep.subr.mxu0 0.0
    %4148 = vmatpush1.msra.mxu0 0.0
    %4149 = vmatprep.subr.mxu0 0.0
    %4150 = vmatpush1.msra.mxu0 0.0
    %4151 = vmatprep.subr.mxu0 0.0
    %4152 = vmatpush1.msra.mxu0 0.0
    %4153 = vmatprep.subr.mxu0 0.0
    %4154 = vmatpush1.msra.mxu0 0.0
    %4155 = vmatprep.subr.mxu0 0.0
    %4156 = vmatpush1.msra.mxu0 0.0
    %4157 = vmatprep.subr.mxu0 0.0
    %4158 = vmatpush1.msra.mxu0 0.0
    %4159 = vmatprep.subr.mxu0 0.0
    %4160 = vmatpush1.msra.mxu0 0.0
    %4161 = vmatprep.subr.mxu0 0.0
    %4162 = vmatpush1.msra.mxu0 0.0
    %4163 = vmatprep.subr.mxu0 0.0
    %4164 = vmatpush1.msra.mxu0 0.0
    %4165 = vmatprep.mubr.f32.mxu0 0.0
    %v4166 = vand.u32 %v3937, 4294901760
    %v4167 = vsub.f32 %v3937, %v4166
    %4168 = vmatmul.mubr.f32.gmra.mrb[0].mxu0 %v4167
    %v4169 = vpop.f32.mrb[0].mxu0
    %v4170 = vadd.f32 %v4094, %v4169
    %v4171 = vpop.f32.mrb[0].mxu0
    %4172 = vdwg.mxu0
    %4173 = vmatprep.subr.mxu0 0.0
    %v4174 = vand.u32 %v465, 4294901760
    %4175 = vmatpush1.msra.mxu0 %v4174
    %4176 = vmatprep.subr.mxu0 0.0
    %v4177 = vand.u32 %v472, 4294901760
    %4178 = vmatpush1.msra.mxu0 %v4177
    %4179 = vmatprep.subr.mxu0 0.0
    %4180 = vmatpush1.msra.mxu0 0.0
    %4181 = vmatprep.subr.mxu0 0.0
    %4182 = vmatpush1.msra.mxu0 0.0
    %4183 = vmatprep.subr.mxu0 0.0
    %4184 = vmatpush1.msra.mxu0 0.0
    %4185 = vmatprep.subr.mxu0 0.0
    %4186 = vmatpush1.msra.mxu0 0.0
    %4187 = vmatprep.subr.mxu0 0.0
    %4188 = vmatpush1.msra.mxu0 0.0
    %4189 = vmatprep.subr.mxu0 0.0
    %4190 = vmatpush1.msra.mxu0 0.0
    %4191 = vmatprep.subr.mxu0 0.0
    %4192 = vmatpush1.msra.mxu0 0.0
    %4193 = vmatprep.subr.mxu0 0.0
    %4194 = vmatpush1.msra.mxu0 0.0
    %4195 = vmatprep.subr.mxu0 0.0
    %4196 = vmatpush1.msra.mxu0 0.0
    %4197 = vmatprep.subr.mxu0 0.0
    %4198 = vmatpush1.msra.mxu0 0.0
    %4199 = vmatprep.subr.mxu0 0.0
    %4200 = vmatpush1.msra.mxu0 0.0
    %4201 = vmatprep.subr.mxu0 0.0
    %4202 = vmatpush1.msra.mxu0 0.0
    %4203 = vmatprep.subr.mxu0 0.0
    %4204 = vmatpush1.msra.mxu0 0.0
    %4205 = vmatprep.subr.mxu0 0.0
    %4206 = vmatpush1.msra.mxu0 0.0
    %4207 = vmatprep.subr.mxu0 0.0
    %4208 = vmatpush1.msra.mxu0 0.0
    %4209 = vmatprep.subr.mxu0 0.0
    %4210 = vmatpush1.msra.mxu0 0.0
    %4211 = vmatprep.subr.mxu0 0.0
    %4212 = vmatpush1.msra.mxu0 0.0
    %4213 = vmatprep.subr.mxu0 0.0
    %4214 = vmatpush1.msra.mxu0 0.0
    %4215 = vmatprep.subr.mxu0 0.0
    %4216 = vmatpush1.msra.mxu0 0.0
    %4217 = vmatprep.subr.mxu0 0.0
    %4218 = vmatpush1.msra.mxu0 0.0
    %4219 = vmatprep.subr.mxu0 0.0
    %4220 = vmatpush1.msra.mxu0 0.0
    %4221 = vmatprep.subr.mxu0 0.0
    %4222 = vmatpush1.msra.mxu0 0.0
    %4223 = vmatprep.subr.mxu0 0.0
    %4224 = vmatpush1.msra.mxu0 0.0
    %4225 = vmatprep.subr.mxu0 0.0
    %4226 = vmatpush1.msra.mxu0 0.0
    %4227 = vmatprep.subr.mxu0 0.0
    %4228 = vmatpush1.msra.mxu0 0.0
    %4229 = vmatprep.subr.mxu0 0.0
    %4230 = vmatpush1.msra.mxu0 0.0
    %4231 = vmatprep.subr.mxu0 0.0
    %4232 = vmatpush1.msra.mxu0 0.0
    %4233 = vmatprep.subr.mxu0 0.0
    %4234 = vmatpush1.msra.mxu0 0.0
    %4235 = vmatprep.subr.mxu0 0.0
    %4236 = vmatpush1.msra.mxu0 0.0
    %4237 = vmatprep.subr.mxu0 0.0
    %4238 = vmatpush1.msra.mxu0 0.0
    %4239 = vmatprep.mubr.f32.mxu0 0.0
    %v4240 = vand.u32 %v3937, 4294901760
    %v4241 = vsub.f32 %v3937, %v4240
    %v4242 = vand.u32 %v4241, 4294901760
    %4243 = vmatmul.mubr.f32.gmra.mrb[0].mxu0 %v4242
    %v4244 = vpop.f32.mrb[0].mxu0
    %v4245 = vadd.f32 %v4170, %v4244
    %v4246 = vpop.f32.mrb[0].mxu0
    %4247 = vdwg.mxu0
    %4248 = vmatprep.subr.mxu0 0.0
    %v4249 = vand.u32 %v465, 4294901760
    %v4250 = vsub.f32 %v465, %v4249
    %v4251 = vand.u32 %v4250, 4294901760
    %4252 = vmatpush1.msra.mxu0 %v4251
    %4253 = vmatprep.subr.mxu0 0.0
    %v4254 = vand.u32 %v472, 4294901760
    %v4255 = vsub.f32 %v472, %v4254
    %v4256 = vand.u32 %v4255, 4294901760
    %4257 = vmatpush1.msra.mxu0 %v4256
    %4258 = vmatprep.subr.mxu0 0.0
    %4259 = vmatpush1.msra.mxu0 0.0
    %4260 = vmatprep.subr.mxu0 0.0
    %4261 = vmatpush1.msra.mxu0 0.0
    %4262 = vmatprep.subr.mxu0 0.0
    %4263 = vmatpush1.msra.mxu0 0.0
    %4264 = vmatprep.subr.mxu0 0.0
    %4265 = vmatpush1.msra.mxu0 0.0
    %4266 = vmatprep.subr.mxu0 0.0
    %4267 = vmatpush1.msra.mxu0 0.0
    %4268 = vmatprep.subr.mxu0 0.0
    %4269 = vmatpush1.msra.mxu0 0.0
    %4270 = vmatprep.subr.mxu0 0.0
    %4271 = vmatpush1.msra.mxu0 0.0
    %4272 = vmatprep.subr.mxu0 0.0
    %4273 = vmatpush1.msra.mxu0 0.0
    %4274 = vmatprep.subr.mxu0 0.0
    %4275 = vmatpush1.msra.mxu0 0.0
    %4276 = vmatprep.subr.mxu0 0.0
    %4277 = vmatpush1.msra.mxu0 0.0
    %4278 = vmatprep.subr.mxu0 0.0
    %4279 = vmatpush1.msra.mxu0 0.0
    %4280 = vmatprep.subr.mxu0 0.0
    %4281 = vmatpush1.msra.mxu0 0.0
    %4282 = vmatprep.subr.mxu0 0.0
    %4283 = vmatpush1.msra.mxu0 0.0
    %4284 = vmatprep.subr.mxu0 0.0
    %4285 = vmatpush1.msra.mxu0 0.0
    %4286 = vmatprep.subr.mxu0 0.0
    %4287 = vmatpush1.msra.mxu0 0.0
    %4288 = vmatprep.subr.mxu0 0.0
    %4289 = vmatpush1.msra.mxu0 0.0
    %4290 = vmatprep.subr.mxu0 0.0
    %4291 = vmatpush1.msra.mxu0 0.0
    %4292 = vmatprep.subr.mxu0 0.0
    %4293 = vmatpush1.msra.mxu0 0.0
    %4294 = vmatprep.subr.mxu0 0.0
    %4295 = vmatpush1.msra.mxu0 0.0
    %4296 = vmatprep.subr.mxu0 0.0
    %4297 = vmatpush1.msra.mxu0 0.0
    %4298 = vmatprep.subr.mxu0 0.0
    %4299 = vmatpush1.msra.mxu0 0.0
    %4300 = vmatprep.subr.mxu0 0.0
    %4301 = vmatpush1.msra.mxu0 0.0
    %4302 = vmatprep.subr.mxu0 0.0
    %4303 = vmatpush1.msra.mxu0 0.0
    %4304 = vmatprep.subr.mxu0 0.0
    %4305 = vmatpush1.msra.mxu0 0.0
    %4306 = vmatprep.subr.mxu0 0.0
    %4307 = vmatpush1.msra.mxu0 0.0
    %4308 = vmatprep.subr.mxu0 0.0
    %4309 = vmatpush1.msra.mxu0 0.0
    %4310 = vmatprep.subr.mxu0 0.0
    %4311 = vmatpush1.msra.mxu0 0.0
    %4312 = vmatprep.subr.mxu0 0.0
    %4313 = vmatpush1.msra.mxu0 0.0
    %4314 = vmatprep.subr.mxu0 0.0
    %4315 = vmatpush1.msra.mxu0 0.0
    %4316 = vmatprep.subr.mxu0 0.0
    %4317 = vmatpush1.msra.mxu0 0.0
    %4318 = vmatprep.mubr.f32.mxu0 0.0
    %v4319 = vand.u32 %v3937, 4294901760
    %4320 = vmatmul.mubr.f32.gmra.mrb[0].mxu0 %v4319
    %v4321 = vpop.f32.mrb[0].mxu0
    %v4322 = vadd.f32 %v4245, %v4321
    %v4323 = vpop.f32.mrb[0].mxu0
    %4324 = vdwg.mxu0
    %4325 = vmatprep.subr.mxu0 0.0
    %v4326 = vand.u32 %v465, 4294901760
    %4327 = vmatpush1.msra.mxu0 %v4326
    %4328 = vmatprep.subr.mxu0 0.0
    %v4329 = vand.u32 %v472, 4294901760
    %4330 = vmatpush1.msra.mxu0 %v4329
    %4331 = vmatprep.subr.mxu0 0.0
    %4332 = vmatpush1.msra.mxu0 0.0
    %4333 = vmatprep.subr.mxu0 0.0
    %4334 = vmatpush1.msra.mxu0 0.0
    %4335 = vmatprep.subr.mxu0 0.0
    %4336 = vmatpush1.msra.mxu0 0.0
    %4337 = vmatprep.subr.mxu0 0.0
    %4338 = vmatpush1.msra.mxu0 0.0
    %4339 = vmatprep.subr.mxu0 0.0
    %4340 = vmatpush1.msra.mxu0 0.0
    %4341 = vmatprep.subr.mxu0 0.0
    %4342 = vmatpush1.msra.mxu0 0.0
    %4343 = vmatprep.subr.mxu0 0.0
    %4344 = vmatpush1.msra.mxu0 0.0
    %4345 = vmatprep.subr.mxu0 0.0
    %4346 = vmatpush1.msra.mxu0 0.0
    %4347 = vmatprep.subr.mxu0 0.0
    %4348 = vmatpush1.msra.mxu0 0.0
    %4349 = vmatprep.subr.mxu0 0.0
    %4350 = vmatpush1.msra.mxu0 0.0
    %4351 = vmatprep.subr.mxu0 0.0
    %4352 = vmatpush1.msra.mxu0 0.0
    %4353 = vmatprep.subr.mxu0 0.0
    %4354 = vmatpush1.msra.mxu0 0.0
    %4355 = vmatprep.subr.mxu0 0.0
    %4356 = vmatpush1.msra.mxu0 0.0
    %4357 = vmatprep.subr.mxu0 0.0
    %4358 = vmatpush1.msra.mxu0 0.0
    %4359 = vmatprep.subr.mxu0 0.0
    %4360 = vmatpush1.msra.mxu0 0.0
    %4361 = vmatprep.subr.mxu0 0.0
    %4362 = vmatpush1.msra.mxu0 0.0
    %4363 = vmatprep.subr.mxu0 0.0
    %4364 = vmatpush1.msra.mxu0 0.0
    %4365 = vmatprep.subr.mxu0 0.0
    %4366 = vmatpush1.msra.mxu0 0.0
    %4367 = vmatprep.subr.mxu0 0.0
    %4368 = vmatpush1.msra.mxu0 0.0
    %4369 = vmatprep.subr.mxu0 0.0
    %4370 = vmatpush1.msra.mxu0 0.0
    %4371 = vmatprep.subr.mxu0 0.0
    %4372 = vmatpush1.msra.mxu0 0.0
    %4373 = vmatprep.subr.mxu0 0.0
    %4374 = vmatpush1.msra.mxu0 0.0
    %4375 = vmatprep.subr.mxu0 0.0
    %4376 = vmatpush1.msra.mxu0 0.0
    %4377 = vmatprep.subr.mxu0 0.0
    %4378 = vmatpush1.msra.mxu0 0.0
    %4379 = vmatprep.subr.mxu0 0.0
    %4380 = vmatpush1.msra.mxu0 0.0
    %4381 = vmatprep.subr.mxu0 0.0
    %4382 = vmatpush1.msra.mxu0 0.0
    %4383 = vmatprep.subr.mxu0 0.0
    %4384 = vmatpush1.msra.mxu0 0.0
    %4385 = vmatprep.subr.mxu0 0.0
    %4386 = vmatpush1.msra.mxu0 0.0
    %4387 = vmatprep.subr.mxu0 0.0
    %4388 = vmatpush1.msra.mxu0 0.0
    %4389 = vmatprep.subr.mxu0 0.0
    %4390 = vmatpush1.msra.mxu0 0.0
    %4391 = vmatprep.mubr.f32.mxu0 0.0
    %v4392 = vand.u32 %v3937, 4294901760
    %4393 = vmatmul.mubr.f32.gmra.mrb[0].mxu0 %v4392
    %v4394 = vpop.f32.mrb[0].mxu0
    %v4395 = vadd.f32 %v4322, %v4394
    %v4396 = vpop.f32.mrb[0].mxu0
    %4397 = vdwg.mxu0
    %v4399 = vrot.slane %v4395, 1
    %v4401 = vadd.f32 %v460, %v4399
    %v4402 = vxor.u32 %v4401, 2147483648
    %v4403 = vmul.f32 %v4402, 1.442695
    %v4404 = vpow.pop %v4403
    %v4405 = vadd.f32 %v4404, 1.0
    %v4406 = vrcp.pop %v4405
    %v4407 = vmul.f32 1.0, %v4406
    %v4408 = vtanh.pop %v4401
    %v4410 = vrot.slane %v3926, 7
    %v4412 = vmul.f32 %v4407, %v4410
    %4414 = vrot.lane.b32.xlu0 %v4408, 104
    %v4415 = vpop.permute.xlu0 %4414
    %v4417 = vmul.f32 %v4407, %v4415
    %4419 = vrot.lane.b32.xlu0 %v4417, 12
    %v4420 = vpop.permute.xlu0 %4419
    %v4422 = vadd.f32 %v4412, %v4420
    %v4423 = vtanh.pop %v4422
    %4425 = vrot.lane.b32.xlu0 %v4423, 24
    %v4426 = vpop.permute.xlu0 %4425
    %v4428 = vmul.f32 %v4407, %v4426
    %vm4429 = vcmask 1040384
    %v4430 = vsel %vm4429, %v957, %v1452
    %v4431 = vsel %vm199, %v4430, %v1948
    %vm4432 = vcmask 1042432
    %v4433 = vsel %vm4432, %v4431, %v2444
    %v4434 = vsel %vm302, %v4433, %v2940
    %vm4435 = vcmask 1044480
    %v4436 = vsel %vm4435, %v4434, %v3436
    %v4437 = vsel %vm32, %v4436, %v3932
    %vm4438 = vcmask 1046528
    %v4439 = vsel %vm4438, %v4437, %v4428
    %v4440 = vlaneseq
    %v4441 = vshrl.u32 %v4440, 7
    %v4442 = vsub.s32 1, %v4441
    %v4443 = vrot.slane %v27, %v4442
    %4445 = vrot.lane.b32.xlu0 %v4439, 92
    %v4446 = vpop.permute.xlu0 %4445
    %v4448 = vrot.slane %v25, 2
    %v4449 = vrot.slane %v26, 2
    %v4450 = vsel %vm32, %v4448, %v4449
    %v4452 = vsel %vm298, %v4446, 0
    %v4454 = vsel %vm302, %v4449, 0
    %4456 = vmatprep.subr.mxu0 0.0
    %4457 = vmatpush1.msra.mxu0 %v4450
    %4458 = vmatprep.subr.mxu0 0.0
    %4459 = vmatpush1.msra.mxu0 %v4454
    %4460 = vmatprep.subr.mxu0 0.0
    %4461 = vmatpush1.msra.mxu0 0.0
    %4462 = vmatprep.subr.mxu0 0.0
    %4463 = vmatpush1.msra.mxu0 0.0
    %4464 = vmatprep.subr.mxu0 0.0
    %4465 = vmatpush1.msra.mxu0 0.0
    %4466 = vmatprep.subr.mxu0 0.0
    %4467 = vmatpush1.msra.mxu0 0.0
    %4468 = vmatprep.subr.mxu0 0.0
    %4469 = vmatpush1.msra.mxu0 0.0
    %4470 = vmatprep.subr.mxu0 0.0
    %4471 = vmatpush1.msra.mxu0 0.0
    %4472 = vmatprep.subr.mxu0 0.0
    %4473 = vmatpush1.msra.mxu0 0.0
    %4474 = vmatprep.subr.mxu0 0.0
    %4475 = vmatpush1.msra.mxu0 0.0
    %4476 = vmatprep.subr.mxu0 0.0
    %4477 = vmatpush1.msra.mxu0 0.0
    %4478 = vmatprep.subr.mxu0 0.0
    %4479 = vmatpush1.msra.mxu0 0.0
    %4480 = vmatprep.subr.mxu0 0.0
    %4481 = vmatpush1.msra.mxu0 0.0
    %4482 = vmatprep.subr.mxu0 0.0
    %4483 = vmatpush1.msra.mxu0 0.0
    %4484 = vmatprep.subr.mxu0 0.0
    %4485 = vmatpush1.msra.mxu0 0.0
    %4486 = vmatprep.subr.mxu0 0.0
    %4487 = vmatpush1.msra.mxu0 0.0
    %4488 = vmatprep.subr.mxu0 0.0
    %4489 = vmatpush1.msra.mxu0 0.0
    %4490 = vmatprep.subr.mxu0 0.0
    %4491 = vmatpush1.msra.mxu0 0.0
    %4492 = vmatprep.subr.mxu0 0.0
    %4493 = vmatpush1.msra.mxu0 0.0
    %4494 = vmatprep.subr.mxu0 0.0
    %4495 = vmatpush1.msra.mxu0 0.0
    %4496 = vmatprep.subr.mxu0 0.0
    %4497 = vmatpush1.msra.mxu0 0.0
    %4498 = vmatprep.subr.mxu0 0.0
    %4499 = vmatpush1.msra.mxu0 0.0
    %4500 = vmatprep.subr.mxu0 0.0
    %4501 = vmatpush1.msra.mxu0 0.0
    %4502 = vmatprep.subr.mxu0 0.0
    %4503 = vmatpush1.msra.mxu0 0.0
    %4504 = vmatprep.subr.mxu0 0.0
    %4505 = vmatpush1.msra.mxu0 0.0
    %4506 = vmatprep.subr.mxu0 0.0
    %4507 = vmatpush1.msra.mxu0 0.0
    %4508 = vmatprep.subr.mxu0 0.0
    %4509 = vmatpush1.msra.mxu0 0.0
    %4510 = vmatprep.subr.mxu0 0.0
    %4511 = vmatpush1.msra.mxu0 0.0
    %4512 = vmatprep.subr.mxu0 0.0
    %4513 = vmatpush1.msra.mxu0 0.0
    %4514 = vmatprep.subr.mxu0 0.0
    %4515 = vmatpush1.msra.mxu0 0.0
    %4516 = vmatprep.subr.mxu0 0.0
    %4517 = vmatpush1.msra.mxu0 0.0
    %4518 = vmatprep.subr.mxu0 0.0
    %4519 = vmatpush1.msra.mxu0 0.0
    %4520 = vmatprep.mubr.f32.mxu0 0.0
    %4521 = vmatmul.mubr.f32.gmra.mrb[0].mxu0 %v4452
    %v4522 = vpop.f32.mrb[0].mxu0
    %v4523 = vadd.f32 %v4443, %v4522
    %v4524 = vpop.f32.mrb[0].mxu0
    %4525 = vdwg.mxu0
    %4526 = vst.msk [vmem:[#allocation2] sm:$0xff] %vm28, %v4523
    // Predicated region
    $region10: #{tpu_custom_call.1} parent=1 // pred_check
      _
    $region11: #{tpu_custom_call.1} parent=1 // pred_check_branch
      %4528 = sbr.rel (0) target = $region13
    $region12: #{tpu_custom_call.1} parent=1 // pred_region
      %s4530 = ssub.s32 128, 128
      %4531 = vsyncadd [#allocation3], %s4530
      %s4533 = sshll.u32 [#allocation2], 4
      %s4534 = int_to_ptr.vmem [resolvable:$true] %s4533
      %4536 = dma.vmem_to_hbm [thread:$0]  %s4534, 128, %s2, [#allocation3]
    $region13: #{tpu_custom_call.1} parent=1 // pred_fallthru
      _
    // Predicated region
    $region14: #{tpu_custom_call.1} parent=1 // pred_check
      _
    $region15: #{tpu_custom_call.1} parent=1 // pred_check_branch
      %4538 = sbr.rel (0) target = $region17
    $region16: #{tpu_custom_call.1} parent=1 // pred_region
      %4539 = dma.done [#allocation3], 128
    $region17: #{tpu_custom_call.1} parent=1 // pred_fallthru
      _
    %4540 = vsyncpa [#allocation3], 1

</llo_original>
